<compile_context>
chip_gen: v7x
topology: tpu7x:2x2x1
jax: 0.10.0
libtpu: 0.0.40
codegen_flags: <defaults>
</compile_context>

<pallas_src>
import numpy as np
import jax
import jax.numpy as jnp
from jax.experimental import pallas as pl
from jax.experimental.pallas import tpu as pltpu


# ----------------------------------------------------------------------------
# Host-side (numpy) packing: each layer as one dense matrix acting on
# row-vector activations flattened channels-last:  feature = (i*W + j)*C + c.
# ----------------------------------------------------------------------------
def _conv3x3_s2_p1_as_matrix(h, w, weight):
    """Dense (h*w*cin, ho*wo*cout) matrix of Conv2d(k=3, stride=2, pad=1)."""
    cout, cin, _, _ = weight.shape
    ho, wo = (h + 1) // 2, (w + 1) // 2
    m = np.zeros((h * w * cin, ho * wo * cout), np.float32)
    for oi in range(ho):
        for oj in range(wo):
            c0 = (oi * wo + oj) * cout
            for di in range(3):
                pi = 2 * oi - 1 + di
                if not 0 <= pi < h:
                    continue
                for dj in range(3):
                    pj = 2 * oj - 1 + dj
                    if not 0 <= pj < w:
                        continue
                    r0 = (pi * w + pj) * cin
                    m[r0:r0 + cin, c0:c0 + cout] += weight[:, :, di, dj].T
    return m, ho, wo


def _convT2x2_s2_as_matrix(n_positions, weight):
    """Block-diagonal (P*cin, P*4*cout) matrix of ConvTranspose2d(k=2, s=2).

    Output column order per position: (di*2+dj)*cout + co.
    """
    cin, cout, _, _ = weight.shape
    blk = weight.transpose(0, 2, 3, 1).reshape(cin, 4 * cout).astype(np.float32)
    return np.kron(np.eye(n_positions, dtype=np.float32), blk)


# ----------------------------------------------------------------------------
# Kernels: a chain of lane-dense dense layers, all intermediates in vregs/VMEM.
# ----------------------------------------------------------------------------
def _dense(x, w_ref, b_ref, relu):
    y = jnp.dot(x.astype(jnp.bfloat16), w_ref[...],
                preferred_element_type=jnp.float32) + b_ref[...]
    return jnp.maximum(y, 0.0) if relu else y


def _encode_kernel(x_ref, m1_ref, b1_ref, m2_ref, b2_ref, z_ref):
    h1 = _dense(x_ref[0], m1_ref, b1_ref, True)           # (bb, H1*W1*Ch)
    z_ref[0] = _dense(h1, m2_ref, b2_ref, True)            # (bb, H2*W2*Cl)


def _forward_kernel(x_ref, m1_ref, b1_ref, m2_ref, b2_ref,
                    d1_ref, bd1_ref, d2_ref, bd2_ref, y_ref):
    h1 = _dense(x_ref[0], m1_ref, b1_ref, True)
    z = _dense(h1, m2_ref, b2_ref, True)
    g1 = _dense(z, d1_ref, bd1_ref, True)                  # (bb, H2*W2*4*Ch)
    y_ref[0] = _dense(g1, d2_ref, bd2_ref, False)          # (bb, H2*W2*16*Cin)


# ----------------------------------------------------------------------------
# pallas_call wrappers
# ----------------------------------------------------------------------------
def _const_spec(shape):
    shape = tuple(int(d) for d in shape)
    nd = len(shape)
    return pl.BlockSpec(shape, lambda s, _nd=nd: (0,) * _nd)


def _nbytes(shape, dtype):
    return int(np.prod(shape)) * int(np.dtype(dtype).itemsize)


def _run_encode(xf, m1, b1, m2, b2):
    steps, bb, fin = (int(d) for d in xf.shape)
    fz = int(m2.shape[1])
    out_sds = jax.ShapeDtypeStruct((steps, bb, fz), jnp.float32)
    flops = 2 * steps * bb * (int(m1.shape[0]) * int(m1.shape[1])
                              + int(m2.shape[0]) * int(m2.shape[1]))
    bytes_acc = sum(_nbytes(a.shape, a.dtype) for a in (xf, m1, b1, m2, b2))
    bytes_acc += _nbytes(out_sds.shape, out_sds.dtype)
    return pl.pallas_call(
        _encode_kernel,
        out_shape=out_sds,
        grid=(steps,),
        in_specs=[pl.BlockSpec((1, bb, fin), lambda s: (s, 0, 0)),
                  _const_spec(m1.shape), _const_spec(b1.shape),
                  _const_spec(m2.shape), _const_spec(b2.shape)],
        out_specs=pl.BlockSpec((1, bb, fz), lambda s: (s, 0, 0)),
        compiler_params=pltpu.CompilerParams(
            dimension_semantics=("parallel",)),
        cost_estimate=pl.CostEstimate(flops=flops, transcendentals=0,
                                      bytes_accessed=bytes_acc),
    )(xf, m1, b1, m2, b2)


def _run_forward(xf, m1, b1, m2, b2, d1, bd1, d2, bd2):
    steps, bb, fin = (int(d) for d in xf.shape)
    fy = int(d2.shape[1])
    out_sds = jax.ShapeDtypeStruct((steps, bb, fy), jnp.float32)
    flops = 2 * steps * bb * sum(int(w.shape[0]) * int(w.shape[1])
                                 for w in (m1, m2, d1, d2))
    bytes_acc = sum(_nbytes(a.shape, a.dtype)
                    for a in (xf, m1, b1, m2, b2, d1, bd1, d2, bd2))
    bytes_acc += _nbytes(out_sds.shape, out_sds.dtype)
    return pl.pallas_call(
        _forward_kernel,
        out_shape=out_sds,
        grid=(steps,),
        in_specs=[pl.BlockSpec((1, bb, fin), lambda s: (s, 0, 0)),
                  _const_spec(m1.shape), _const_spec(b1.shape),
                  _const_spec(m2.shape), _const_spec(b2.shape),
                  _const_spec(d1.shape), _const_spec(bd1.shape),
                  _const_spec(d2.shape), _const_spec(bd2.shape)],
        out_specs=pl.BlockSpec((1, bb, fy), lambda s: (s, 0, 0)),
        compiler_params=pltpu.CompilerParams(
            dimension_semantics=("parallel",)),
        cost_estimate=pl.CostEstimate(flops=flops, transcendentals=0,
                                      bytes_accessed=bytes_acc),
    )(xf, m1, b1, m2, b2, d1, bd1, d2, bd2)


# ----------------------------------------------------------------------------
# jitted NCHW <-> lane-dense plumbing around the fused kernels
# ----------------------------------------------------------------------------
def _fold_batch(x):
    """NCHW -> (steps, images_per_step, H*W*C) bf16, batch folded into M."""
    n, c, h, w = x.shape
    steps = 2 if n >= 2 else 1            # keep 2 steps for v7x's 2 TensorCores
    bb = -(-n // steps)
    npad = steps * bb
    xf = jnp.transpose(x, (0, 2, 3, 1)).reshape(n, h * w * c)
    xf = xf.astype(jnp.bfloat16)
    if npad != n:
        xf = jnp.pad(xf, ((0, npad - n), (0, 0)))
    return xf.reshape(steps, bb, h * w * c), steps, bb, npad


@jax.jit
def _encode_impl(x, m1, b1, m2, b2):
    n, c, h, w = x.shape
    h1, w1 = (h + 1) // 2, (w + 1) // 2
    h2, w2 = (h1 + 1) // 2, (w1 + 1) // 2
    cl = int(m2.shape[1]) // (h2 * w2)
    xf, steps, bb, npad = _fold_batch(x)
    z = _run_encode(xf, m1, b1, m2, b2)                    # (steps, bb, h2*w2*cl)
    z = z.reshape(npad, h2, w2, cl)[:n]
    return jnp.transpose(z, (0, 3, 1, 2))                  # NHWC -> NCHW


@jax.jit
def _forward_impl(x, m1, b1, m2, b2, d1, bd1, d2, bd2):
    n, c, h, w = x.shape
    h1, w1 = (h + 1) // 2, (w + 1) // 2
    h2, w2 = (h1 + 1) // 2, (w1 + 1) // 2
    cout = int(d2.shape[1]) // (h2 * w2 * 16)
    xf, steps, bb, npad = _fold_batch(x)
    y = _run_forward(xf, m1, b1, m2, b2, d1, bd1, d2, bd2)  # (steps, bb, 16*h2*w2*cout)
    # columns are (i2, j2, di1, dj1, di2, dj2, c); unscramble outside the kernel.
    y = y.reshape(npad, h2, w2, 2, 2, 2, 2, cout)[:n]
    y = jnp.transpose(y, (0, 7, 1, 3, 5, 2, 4, 6))
    return y.reshape(n, cout, 4 * h2, 4 * w2)               # NCHW


# ----------------------------------------------------------------------------
# Autoencoder + TrainableEncoder dispatcher
# ----------------------------------------------------------------------------
class EncoderConfig:
    def __init__(self, encoder_type="autoencoder",
                 in_channels=4, hidden_channels=8, latent_channels=8):
        self.encoder_type = encoder_type
        self.in_channels = in_channels
        self.hidden_channels = hidden_channels
        self.latent_channels = latent_channels


class Autoencoder:
    """Conv autoencoder with a fully fused Pallas forward/encode path."""

    def __init__(self, config):
        self.config = config
        c_in, c_h, c_l = (config.in_channels, config.hidden_channels,
                          config.latent_channels)
        ks = jax.random.split(jax.random.PRNGKey(0), 8)
        s = 0.1
        # Raw parameters in PyTorch layouts (host numpy; also used by the
        # plain-XLA reference).
        self.w_e1 = np.asarray(s * jax.random.normal(ks[0], (c_h, c_in, 3, 3)))
        self.b_e1 = np.asarray(s * jax.random.normal(ks[1], (c_h,)))
        self.w_e2 = np.asarray(s * jax.random.normal(ks[2], (c_l, c_h, 3, 3)))
        self.b_e2 = np.asarray(s * jax.random.normal(ks[3], (c_l,)))
        self.w_d1 = np.asarray(s * jax.random.normal(ks[4], (c_l, c_h, 2, 2)))
        self.b_d1 = np.asarray(s * jax.random.normal(ks[5], (c_h,)))
        self.w_d2 = np.asarray(s * jax.random.normal(ks[6], (c_h, c_in, 2, 2)))
        self.b_d2 = np.asarray(s * jax.random.normal(ks[7], (c_in,)))
        # Packed per-(H, W) layer matrices, built once on the host (numpy),
        # stored as concrete device arrays -> no tracer can ever leak here.
        self._packed = {}

    def _get_packed(self, h, w):
        key = (h, w)
        if key in self._packed:
            return self._packed[key]
        m1, h1, w1 = _conv3x3_s2_p1_as_matrix(h, w, self.w_e1)
        m2, h2, w2 = _conv3x3_s2_p1_as_matrix(h1, w1, self.w_e2)
        d1 = _convT2x2_s2_as_matrix(h2 * w2, self.w_d1)
        d2 = _convT2x2_s2_as_matrix(h2 * w2 * 4, self.w_d2)
        packed = dict(
            m1=jnp.asarray(m1, jnp.bfloat16),
            b1=jnp.asarray(np.tile(self.b_e1, h1 * w1)[None, :], jnp.float32),
            m2=jnp.asarray(m2, jnp.bfloat16),
            b2=jnp.asarray(np.tile(self.b_e2, h2 * w2)[None, :], jnp.float32),
            d1=jnp.asarray(d1, jnp.bfloat16),
            bd1=jnp.asarray(np.tile(self.b_d1, h2 * w2 * 4)[None, :],
                            jnp.float32),
            d2=jnp.asarray(d2, jnp.bfloat16),
            bd2=jnp.asarray(np.tile(self.b_d2, h2 * w2 * 16)[None, :],
                            jnp.float32),
        )
        self._packed[key] = packed
        return packed

    def encode(self, x_nchw):
        p = self._get_packed(int(x_nchw.shape[2]), int(x_nchw.shape[3]))
        return _encode_impl(x_nchw, p["m1"], p["b1"], p["m2"], p["b2"])

    def forward(self, x_nchw):
        p = self._get_packed(int(x_nchw.shape[2]), int(x_nchw.shape[3]))
        return _forward_impl(x_nchw, p["m1"], p["b1"], p["m2"], p["b2"],
                             p["d1"], p["bd1"], p["d2"], p["bd2"])


def get_autoencoder_instace(config):
    return Autoencoder(config)


encoder_type_to_function = {"autoencoder": get_autoencoder_instace}


class TrainableEncoder:
    """JAX/Pallas analogue of the PyTorch TrainableEncoder dispatcher."""

    def __init__(self, encoder_config):
        self.config = encoder_config
        self.model = encoder_type_to_function[self.config.encoder_type](
            self.config)

    def forward(self, *args, **kwargs):
        return self.model.forward(*args, **kwargs)

    def encode(self, *args, **kwargs):
        return self.model.encode(*args, **kwargs)


# ----------------------------------------------------------------------------
# Plain-JAX/XLA f32 reference (independent formulation).
# ----------------------------------------------------------------------------
def _ref_dense(x, w, b, relu):
    y = jnp.dot(x, w, precision="highest") + b.reshape(1, -1)
    return jnp.maximum(y, 0.0) if relu else y


def _ref_conv3x3_s2_p1(x_nhwc, w, b, relu):
    n, h, wd, c = x_nhwc.shape
    xp = jnp.pad(x_nhwc, ((0, 0), (1, 1), (1, 1), (0, 0)))
    ho = (h + 2 - 3) // 2 + 1
    wo = (wd + 2 - 3) // 2 + 1
    cols = []
    for di in range(3):
        for dj in range(3):
            cols.append(xp[:, di:di + 2 * ho:2, dj:dj + 2 * wo:2, :])
    cols = jnp.concatenate(cols, axis=-1).reshape(n * ho * wo, 9 * c)
    w2 = jnp.transpose(jnp.asarray(w), (2, 3, 1, 0)).reshape(9 * c, -1)
    y = _ref_dense(cols, w2, jnp.asarray(b), relu)
    return y.reshape(n, ho, wo, -1)


def _ref_convT2x2_s2(x_nhwc, w, b, relu):
    n, h, wd, cin = x_nhwc.shape
    cout = w.shape[1]
    w2 = jnp.transpose(jnp.asarray(w), (0, 2, 3, 1)).reshape(cin, 4 * cout)
    b2 = jnp.tile(jnp.asarray(b), 4)
    y = _ref_dense(x_nhwc.reshape(n * h * wd, cin), w2, b2, relu)
    y = y.reshape(n, h, wd, 2, 2, cout)
    return jnp.transpose(y, (0, 1, 3, 2, 4, 5)).reshape(n, 2 * h, 2 * wd, cout)


def reference_encode(model, x_nchw):
    x = jnp.transpose(x_nchw, (0, 2, 3, 1))
    h = _ref_conv3x3_s2_p1(x, model.w_e1, model.b_e1, True)
    z = _ref_conv3x3_s2_p1(h, model.w_e2, model.b_e2, True)
    return jnp.transpose(z, (0, 3, 1, 2))


def reference_forward(model, x_nchw):
    z = reference_encode(model, x_nchw)
    zh = jnp.transpose(z, (0, 2, 3, 1))
    h = _ref_convT2x2_s2(zh, model.w_d1, model.b_d1, True)
    y = _ref_convT2x2_s2(h, model.w_d2, model.b_d2, False)
    return jnp.transpose(y, (0, 3, 1, 2))


# ----------------------------------------------------------------------------
if __name__ == "__main__":
    cfg = EncoderConfig(encoder_type="autoencoder",
                        in_channels=4, hidden_channels=8, latent_channels=8)
    x = jax.random.normal(jax.random.PRNGKey(0), (2, 4, 16, 16), jnp.float32)

    enc = TrainableEncoder(cfg)
    recon = jax.block_until_ready(enc.forward(x))     # fused 4-layer Pallas call
    latent = jax.block_until_ready(enc.encode(x))     # fused 2-layer Pallas call

    recon_ref = jax.block_until_ready(reference_forward(enc.model, x))
    latent_ref = jax.block_until_ready(reference_encode(enc.model, x))

    assert recon.shape == (2, 4, 16, 16) and recon.dtype == jnp.float32
    assert latent.shape == (2, 8, 4, 4) and latent.dtype == jnp.float32
    # Tolerance covers bf16 MXU operands (f32 accumulation) vs f32 XLA reference.
    assert jnp.allclose(recon, recon_ref, atol=3e-2, rtol=3e-2), \
        float(jnp.max(jnp.abs(recon - recon_ref)))
    assert jnp.allclose(latent, latent_ref, atol=3e-2, rtol=3e-2), \
        float(jnp.max(jnp.abs(latent - latent_ref)))

    print("KERNEL_OK")
</pallas_src>

<mosaic_0001>
module attributes {stable_mosaic.version = 11 : i64} {
  func.func @_forward_kernel(%arg0: i32, %arg1: memref<1x1x1024xbf16, #tpu.memory_space<vmem>>, %arg2: memref<1024x512xbf16, #tpu.memory_space<vmem>>, %arg3: memref<1x512xf32, #tpu.memory_space<vmem>>, %arg4: memref<512x128xbf16, #tpu.memory_space<vmem>>, %arg5: memref<1x128xf32, #tpu.memory_space<vmem>>, %arg6: memref<128x512xbf16, #tpu.memory_space<vmem>>, %arg7: memref<1x512xf32, #tpu.memory_space<vmem>>, %arg8: memref<512x1024xbf16, #tpu.memory_space<vmem>>, %arg9: memref<1x1024xf32, #tpu.memory_space<vmem>>, %arg10: memref<1x1x1024xf32, #tpu.memory_space<vmem>>) attributes {dimension_semantics = [#tpu.dimension_semantics<parallel>], iteration_bounds = array<i64: 2>, scalar_prefetch = 0 : i64, scratch_operands = 0 : i64, tpu.core_type = #tpu.core_type<tc>, window_params = [{transform_indices = @transform_0, window_bounds = array<i64: 1, 1, 1024>}, {pipeline_mode = #tpu.pipeline_mode<synchronous>, transform_indices = @transform_1, window_bounds = array<i64: 1024, 512>}, {pipeline_mode = #tpu.pipeline_mode<synchronous>, transform_indices = @transform_2, window_bounds = array<i64: 1, 512>}, {pipeline_mode = #tpu.pipeline_mode<synchronous>, transform_indices = @transform_3, window_bounds = array<i64: 512, 128>}, {pipeline_mode = #tpu.pipeline_mode<synchronous>, transform_indices = @transform_4, window_bounds = array<i64: 1, 128>}, {pipeline_mode = #tpu.pipeline_mode<synchronous>, transform_indices = @transform_5, window_bounds = array<i64: 128, 512>}, {pipeline_mode = #tpu.pipeline_mode<synchronous>, transform_indices = @transform_6, window_bounds = array<i64: 1, 512>}, {pipeline_mode = #tpu.pipeline_mode<synchronous>, transform_indices = @transform_7, window_bounds = array<i64: 512, 1024>}, {pipeline_mode = #tpu.pipeline_mode<synchronous>, transform_indices = @transform_8, window_bounds = array<i64: 1, 1024>}, {transform_indices = @transform_9, window_bounds = array<i64: 1, 1, 1024>}]} {
    %c0 = arith.constant 0 : index
    %c0_0 = arith.constant 0 : index
    %c0_1 = arith.constant 0 : index
    %0 = vector.load %arg1[%c0, %c0_0, %c0_1] : memref<1x1x1024xbf16, #tpu.memory_space<vmem>>, vector<1x1x1024xbf16>
    %1 = vector.shape_cast %0 : vector<1x1x1024xbf16> to vector<1x1024xbf16>
    %c0_2 = arith.constant 0 : index
    %c0_3 = arith.constant 0 : index
    %2 = vector.load %arg2[%c0_2, %c0_3] : memref<1024x512xbf16, #tpu.memory_space<vmem>>, vector<1024x512xbf16>
    %cst = arith.constant dense<0.000000e+00> : vector<1x512xf32>
    %3 = tpu.matmul %1, %2, %cst {dimension_numbers = #tpu.dot_dimension_numbers<[1], [0], [0], [1], [0, 0, 1, 1], [], []>} : vector<1x1024xbf16>, vector<1024x512xbf16>, vector<1x512xf32> -> vector<1x512xf32>
    %c0_4 = arith.constant 0 : index
    %c0_5 = arith.constant 0 : index
    %4 = vector.load %arg3[%c0_4, %c0_5] : memref<1x512xf32, #tpu.memory_space<vmem>>, vector<1x512xf32>
    %5 = arith.addf %3, %4 : vector<1x512xf32>
    %cst_6 = arith.constant 0.000000e+00 : f32
    %6 = vector.broadcast %cst_6 : f32 to vector<1x512xf32>
    %7 = arith.maximumf %5, %6 : vector<1x512xf32>
    %8 = arith.truncf %7 : vector<1x512xf32> to vector<1x512xbf16>
    %c0_7 = arith.constant 0 : index
    %c0_8 = arith.constant 0 : index
    %9 = vector.load %arg4[%c0_7, %c0_8] : memref<512x128xbf16, #tpu.memory_space<vmem>>, vector<512x128xbf16>
    %cst_9 = arith.constant dense<0.000000e+00> : vector<1x128xf32>
    %10 = tpu.matmul %8, %9, %cst_9 {dimension_numbers = #tpu.dot_dimension_numbers<[1], [0], [0], [1], [0, 0, 1, 1], [], []>} : vector<1x512xbf16>, vector<512x128xbf16>, vector<1x128xf32> -> vector<1x128xf32>
    %c0_10 = arith.constant 0 : index
    %c0_11 = arith.constant 0 : index
    %11 = vector.load %arg5[%c0_10, %c0_11] : memref<1x128xf32, #tpu.memory_space<vmem>>, vector<1x128xf32>
    %12 = arith.addf %10, %11 : vector<1x128xf32>
    %cst_12 = arith.constant 0.000000e+00 : f32
    %13 = vector.broadcast %cst_12 : f32 to vector<1x128xf32>
    %14 = arith.maximumf %12, %13 : vector<1x128xf32>
    %15 = arith.truncf %14 : vector<1x128xf32> to vector<1x128xbf16>
    %c0_13 = arith.constant 0 : index
    %c0_14 = arith.constant 0 : index
    %16 = vector.load %arg6[%c0_13, %c0_14] : memref<128x512xbf16, #tpu.memory_space<vmem>>, vector<128x512xbf16>
    %cst_15 = arith.constant dense<0.000000e+00> : vector<1x512xf32>
    %17 = tpu.matmul %15, %16, %cst_15 {dimension_numbers = #tpu.dot_dimension_numbers<[1], [0], [0], [1], [0, 0, 1, 1], [], []>} : vector<1x128xbf16>, vector<128x512xbf16>, vector<1x512xf32> -> vector<1x512xf32>
    %c0_16 = arith.constant 0 : index
    %c0_17 = arith.constant 0 : index
    %18 = vector.load %arg7[%c0_16, %c0_17] : memref<1x512xf32, #tpu.memory_space<vmem>>, vector<1x512xf32>
    %19 = arith.addf %17, %18 : vector<1x512xf32>
    %cst_18 = arith.constant 0.000000e+00 : f32
    %20 = vector.broadcast %cst_18 : f32 to vector<1x512xf32>
    %21 = arith.maximumf %19, %20 : vector<1x512xf32>
    %22 = arith.truncf %21 : vector<1x512xf32> to vector<1x512xbf16>
    %c0_19 = arith.constant 0 : index
    %c0_20 = arith.constant 0 : index
    %23 = vector.load %arg8[%c0_19, %c0_20] : memref<512x1024xbf16, #tpu.memory_space<vmem>>, vector<512x1024xbf16>
    %cst_21 = arith.constant dense<0.000000e+00> : vector<1x1024xf32>
    %24 = tpu.matmul %22, %23, %cst_21 {dimension_numbers = #tpu.dot_dimension_numbers<[1], [0], [0], [1], [0, 0, 1, 1], [], []>} : vector<1x512xbf16>, vector<512x1024xbf16>, vector<1x1024xf32> -> vector<1x1024xf32>
    %c0_22 = arith.constant 0 : index
    %c0_23 = arith.constant 0 : index
    %25 = vector.load %arg9[%c0_22, %c0_23] : memref<1x1024xf32, #tpu.memory_space<vmem>>, vector<1x1024xf32>
    %26 = arith.addf %24, %25 : vector<1x1024xf32>
    %c0_24 = arith.constant 0 : index
    %c0_25 = arith.constant 0 : index
    %c0_26 = arith.constant 0 : index
    %27 = vector.load %arg10[%c0_24, %c0_25, %c0_26] : memref<1x1x1024xf32, #tpu.memory_space<vmem>>, vector<1x1x1024xf32>
    %28 = vector.shape_cast %27 : vector<1x1x1024xf32> to vector<1x1024xf32>
    %29 = vector.shape_cast %26 : vector<1x1024xf32> to vector<1x1x1024xf32>
    tpu.vector_store %arg10[%c0_24, %c0_25, %c0_26], %29 {strides = array<i32>} : memref<1x1x1024xf32, #tpu.memory_space<vmem>>, vector<1x1x1024xf32>,
    return
  }
  func.func @transform_0(%arg0: i32) -> (i32, i32, i32) {
    %c0_i32 = arith.constant 0 : i32
    %c0_i32_0 = arith.constant 0 : i32
    %c0_i32_1 = arith.constant 0 : i32
    return %arg0, %c0_i32, %c0_i32_0 : i32, i32, i32
  }
  func.func @transform_1(%arg0: i32) -> (i32, i32) {
    %c0_i32 = arith.constant 0 : i32
    %c0_i32_0 = arith.constant 0 : i32
    %c0_i32_1 = arith.constant 0 : i32
    return %c0_i32, %c0_i32_0 : i32, i32
  }
  func.func @transform_2(%arg0: i32) -> (i32, i32) {
    %c0_i32 = arith.constant 0 : i32
    %c0_i32_0 = arith.constant 0 : i32
    %c0_i32_1 = arith.constant 0 : i32
    return %c0_i32, %c0_i32_0 : i32, i32
  }
  func.func @transform_3(%arg0: i32) -> (i32, i32) {
    %c0_i32 = arith.constant 0 : i32
    %c0_i32_0 = arith.constant 0 : i32
    %c0_i32_1 = arith.constant 0 : i32
    return %c0_i32, %c0_i32_0 : i32, i32
  }
  func.func @transform_4(%arg0: i32) -> (i32, i32) {
    %c0_i32 = arith.constant 0 : i32
    %c0_i32_0 = arith.constant 0 : i32
    %c0_i32_1 = arith.constant 0 : i32
    return %c0_i32, %c0_i32_0 : i32, i32
  }
  func.func @transform_5(%arg0: i32) -> (i32, i32) {
    %c0_i32 = arith.constant 0 : i32
    %c0_i32_0 = arith.constant 0 : i32
    %c0_i32_1 = arith.constant 0 : i32
    return %c0_i32, %c0_i32_0 : i32, i32
  }
  func.func @transform_6(%arg0: i32) -> (i32, i32) {
    %c0_i32 = arith.constant 0 : i32
    %c0_i32_0 = arith.constant 0 : i32
    %c0_i32_1 = arith.constant 0 : i32
    return %c0_i32, %c0_i32_0 : i32, i32
  }
  func.func @transform_7(%arg0: i32) -> (i32, i32) {
    %c0_i32 = arith.constant 0 : i32
    %c0_i32_0 = arith.constant 0 : i32
    %c0_i32_1 = arith.constant 0 : i32
    return %c0_i32, %c0_i32_0 : i32, i32
  }
  func.func @transform_8(%arg0: i32) -> (i32, i32) {
    %c0_i32 = arith.constant 0 : i32
    %c0_i32_0 = arith.constant 0 : i32
    %c0_i32_1 = arith.constant 0 : i32
    return %c0_i32, %c0_i32_0 : i32, i32
  }
  func.func @transform_9(%arg0: i32) -> (i32, i32, i32) {
    %c0_i32 = arith.constant 0 : i32
    %c0_i32_0 = arith.constant 0 : i32
    %c0_i32_1 = arith.constant 0 : i32
    return %arg0, %c0_i32, %c0_i32_0 : i32, i32, i32
  }
}

</mosaic_0001>

<llo_original>
// kernel: _forward_impl.1
$region0: #{_forward_impl.1}
  #allocation0 [shape = 'u32[]', space=smem, size = 0x4, offset = 0x4, fixed_abs, tag = 'smem constant byte address 0x4 - core index']
  #allocation1 [shape = 'u32[144,128]{1,0:T(1,128)}', space=vmem, size = 0x12000, scoped, tag = 'internal scratch']
  %s0 = inlined_call_operand.vmem [shape: bf16[2,1,1024], index: 0, kind: input, shape index: {}]
  %s1 = inlined_call_operand.hbm [shape: bf16[1024,512], index: 1, kind: input, shape index: {}]
  %s2 = inlined_call_operand.vmem [shape: f32[1,512], index: 2, kind: input, shape index: {}]
  %s3 = inlined_call_operand.vmem [shape: bf16[512,128], index: 3, kind: input, shape index: {}]
  %s4 = inlined_call_operand.vmem [shape: f32[1,128], index: 4, kind: input, shape index: {}]
  %s5 = inlined_call_operand.vmem [shape: bf16[128,512], index: 5, kind: input, shape index: {}]
  %s6 = inlined_call_operand.vmem [shape: f32[1,512], index: 6, kind: input, shape index: {}]
  %s7 = inlined_call_operand.hbm [shape: bf16[512,1024], index: 7, kind: input, shape index: {}]
  %s8 = inlined_call_operand.vmem [shape: f32[1,1024], index: 8, kind: input, shape index: {}]
  %s9 = inlined_call_operand.vmem [shape: f32[2,1,1024], index: 9, kind: output, shape index: {}]
  %s10 = sld [smem:[#allocation0]]
  $region77: #{_forward_impl.1} parent=0
    _
  %s12 = ssub.s32 1, %s10
  %s13 = scalar_select 0, %s12, %s10
  $region1: #{_forward_impl.1} parent=0
    #allocation2 [shape = 'u8[1048576]{0}', space=vmem, size = 0x100000, scoped, tag = 'input window, operand 1, single buffered']
    #allocation3 [shape = 's32[2]{0}', space=sflag, size = 0x8, scoped, tag = 'scoped memory for _forward_impl.1']
    #allocation4 [shape = 'u8[1048576]{0}', space=vmem, size = 0x100000, scoped, tag = 'input window, operand 7, single buffered']
    #allocation5 [shape = 's32[1]{0}', space=sflag, size = 0x4, scoped, tag = 'scoped memory for _forward_impl.1']
    %14 = vsyncpa [#allocation3], 0
    %15 = vsyncpa [#allocation5], 0
    loop: start=0, step=1, limit=4
    $region2: #{_forward_impl.1} parent=1 // loop_pre_header
      _
    $region3: #{_forward_impl.1} parent=1 // loop_header
      %s17 = sphi 0, %s21
      %p18 = scmp.ge.s32.totalorder %s17, 4
      %s27 = sphi 0, %s29
      %s30 = sphi 0, %s27
      %s31 = sphi 0, %s30
      %s47 = sphi 0, %s31
      %s51 = sphi 0, %s51
      %s53 = sphi 0, %s51
      %s54 = sphi 0, %s53
      %s68 = sphi 0, %s54
      %s72 = sphi 0, %s72
      %s74 = sphi 0, %s72
      %s75 = sphi 0, %s74
      %s89 = sphi 0, %s75
      %s93 = sphi 0, %s93
      %s95 = sphi 0, %s93
      %s96 = sphi 0, %s95
      %s110 = sphi 0, %s96
      %s114 = sphi 0, %s114
      %s116 = sphi 0, %s114
      %s117 = sphi 0, %s116
      %s131 = sphi 0, %s117
      %s135 = sphi 0, %s135
      %s137 = sphi 0, %s135
      %s138 = sphi 0, %s137
      %s152 = sphi 0, %s138
      %s156 = sphi 0, %s156
      %s158 = sphi 0, %s156
      %s159 = sphi 0, %s158
      %s173 = sphi 0, %s159
      %s177 = sphi 0, %s177
      %s179 = sphi 0, %s177
      %s180 = sphi 0, %s179
      %s194 = sphi 0, %s180
      %s198 = sphi 0, %s198
      %s200 = sphi 0, %s198
      %s201 = sphi 0, %s200
      %s215 = sphi 0, %s201
      %s221 = sphi 0, %s223
      %s224 = sphi 0, %s221
      %s225 = sphi 0, %s224
      %s241 = sphi 0, %s225
    $region4: #{_forward_impl.1} parent=1 // loop_header_branch
      %20 = sbr.rel (%p18) target = $region8
    $region5: #{_forward_impl.1} parent=1 // loop_body
      %s22 = ssub.s32 %s17, 1
      %s23 = ssub.s32 %s17, 2
      %s24 = sadd.s32 %s17, 1
      %s25 = ssub.s32 %s17, %s24
      %p26 = scmp.eq.s32.totalorder %s25, 0
      %s28 = sadd.s32 %s27, 1
      %s29 = scalar_select %p26, %s27, %s28
      %p32 = pneg %p26
      %p33 = scmp.eq.s32.totalorder %s17, 1
      %p34 = por %p32, %p33
      %p35 = scmp.ne.s32.totalorder %s27, %s30
      %p36 = scmp.eq.s32.totalorder %s17, 0
      %p37 = por %p35, %p36
      %p38 = scmp.ne.s32.totalorder %s27, %s30
      %p39 = scmp.eq.s32.totalorder %s22, 1
      %p40 = por %p38, %p39
      %p41 = scmp.ne.s32.totalorder %s30, %s31
      %p42 = scmp.eq.s32.totalorder %s22, 0
      %p43 = por %p41, %p42
      %p44 = scmp.ne.s32.totalorder %s30, %s31
      %p45 = scmp.eq.s32.totalorder %s23, 1
      %p46 = por %p44, %p45
      %p48 = scmp.ne.s32.totalorder %s31, %s47
      %p49 = scmp.eq.s32.totalorder %s23, 0
      %p50 = por %p48, %p49
      %s52 = sadd.s32 %s51, 1
      %p55 = scmp.eq.s32.totalorder %s17, 1
      %p56 = scmp.ne.s32.totalorder %s51, %s53
      %p57 = scmp.eq.s32.totalorder %s17, 0
      %p58 = por %p56, %p57
      %p59 = scmp.ne.s32.totalorder %s51, %s53
      %p60 = scmp.eq.s32.totalorder %s22, 1
      %p61 = por %p59, %p60
      %p62 = scmp.ne.s32.totalorder %s53, %s54
      %p63 = scmp.eq.s32.totalorder %s22, 0
      %p64 = por %p62, %p63
      %p65 = scmp.ne.s32.totalorder %s53, %s54
      %p66 = scmp.eq.s32.totalorder %s23, 1
      %p67 = por %p65, %p66
      %p69 = scmp.ne.s32.totalorder %s54, %s68
      %p70 = scmp.eq.s32.totalorder %s23, 0
      %p71 = por %p69, %p70
      %s73 = sadd.s32 %s72, 1
      %p76 = scmp.eq.s32.totalorder %s17, 1
      %p77 = scmp.ne.s32.totalorder %s72, %s74
      %p78 = scmp.eq.s32.totalorder %s17, 0
      %p79 = por %p77, %p78
      %p80 = scmp.ne.s32.totalorder %s72, %s74
      %p81 = scmp.eq.s32.totalorder %s22, 1
      %p82 = por %p80, %p81
      %p83 = scmp.ne.s32.totalorder %s74, %s75
      %p84 = scmp.eq.s32.totalorder %s22, 0
      %p85 = por %p83, %p84
      %p86 = scmp.ne.s32.totalorder %s74, %s75
      %p87 = scmp.eq.s32.totalorder %s23, 1
      %p88 = por %p86, %p87
      %p90 = scmp.ne.s32.totalorder %s75, %s89
      %p91 = scmp.eq.s32.totalorder %s23, 0
      %p92 = por %p90, %p91
      %s94 = sadd.s32 %s93, 1
      %p97 = scmp.eq.s32.totalorder %s17, 1
      %p98 = scmp.ne.s32.totalorder %s93, %s95
      %p99 = scmp.eq.s32.totalorder %s17, 0
      %p100 = por %p98, %p99
      %p101 = scmp.ne.s32.totalorder %s93, %s95
      %p102 = scmp.eq.s32.totalorder %s22, 1
      %p103 = por %p101, %p102
      %p104 = scmp.ne.s32.totalorder %s95, %s96
      %p105 = scmp.eq.s32.totalorder %s22, 0
      %p106 = por %p104, %p105
      %p107 = scmp.ne.s32.totalorder %s95, %s96
      %p108 = scmp.eq.s32.totalorder %s23, 1
      %p109 = por %p107, %p108
      %p111 = scmp.ne.s32.totalorder %s96, %s110
      %p112 = scmp.eq.s32.totalorder %s23, 0
      %p113 = por %p111, %p112
      %s115 = sadd.s32 %s114, 1
      %p118 = scmp.eq.s32.totalorder %s17, 1
      %p119 = scmp.ne.s32.totalorder %s114, %s116
      %p120 = scmp.eq.s32.totalorder %s17, 0
      %p121 = por %p119, %p120
      %p122 = scmp.ne.s32.totalorder %s114, %s116
      %p123 = scmp.eq.s32.totalorder %s22, 1
      %p124 = por %p122, %p123
      %p125 = scmp.ne.s32.totalorder %s116, %s117
      %p126 = scmp.eq.s32.totalorder %s22, 0
      %p127 = por %p125, %p126
      %p128 = scmp.ne.s32.totalorder %s116, %s117
      %p129 = scmp.eq.s32.totalorder %s23, 1
      %p130 = por %p128, %p129
      %p132 = scmp.ne.s32.totalorder %s117, %s131
      %p133 = scmp.eq.s32.totalorder %s23, 0
      %p134 = por %p132, %p133
      %s136 = sadd.s32 %s135, 1
      %p139 = scmp.eq.s32.totalorder %s17, 1
      %p140 = scmp.ne.s32.totalorder %s135, %s137
      %p141 = scmp.eq.s32.totalorder %s17, 0
      %p142 = por %p140, %p141
      %p143 = scmp.ne.s32.totalorder %s135, %s137
      %p144 = scmp.eq.s32.totalorder %s22, 1
      %p145 = por %p143, %p144
      %p146 = scmp.ne.s32.totalorder %s137, %s138
      %p147 = scmp.eq.s32.totalorder %s22, 0
      %p148 = por %p146, %p147
      %p149 = scmp.ne.s32.totalorder %s137, %s138
      %p150 = scmp.eq.s32.totalorder %s23, 1
      %p151 = por %p149, %p150
      %p153 = scmp.ne.s32.totalorder %s138, %s152
      %p154 = scmp.eq.s32.totalorder %s23, 0
      %p155 = por %p153, %p154
      %s157 = sadd.s32 %s156, 1
      %p160 = scmp.eq.s32.totalorder %s17, 1
      %p161 = scmp.ne.s32.totalorder %s156, %s158
      %p162 = scmp.eq.s32.totalorder %s17, 0
      %p163 = por %p161, %p162
      %p164 = scmp.ne.s32.totalorder %s156, %s158
      %p165 = scmp.eq.s32.totalorder %s22, 1
      %p166 = por %p164, %p165
      %p167 = scmp.ne.s32.totalorder %s158, %s159
      %p168 = scmp.eq.s32.totalorder %s22, 0
      %p169 = por %p167, %p168
      %p170 = scmp.ne.s32.totalorder %s158, %s159
      %p171 = scmp.eq.s32.totalorder %s23, 1
      %p172 = por %p170, %p171
      %p174 = scmp.ne.s32.totalorder %s159, %s173
      %p175 = scmp.eq.s32.totalorder %s23, 0
      %p176 = por %p174, %p175
      %s178 = sadd.s32 %s177, 1
      %p181 = scmp.eq.s32.totalorder %s17, 1
      %p182 = scmp.ne.s32.totalorder %s177, %s179
      %p183 = scmp.eq.s32.totalorder %s17, 0
      %p184 = por %p182, %p183
      %p185 = scmp.ne.s32.totalorder %s177, %s179
      %p186 = scmp.eq.s32.totalorder %s22, 1
      %p187 = por %p185, %p186
      %p188 = scmp.ne.s32.totalorder %s179, %s180
      %p189 = scmp.eq.s32.totalorder %s22, 0
      %p190 = por %p188, %p189
      %p191 = scmp.ne.s32.totalorder %s179, %s180
      %p192 = scmp.eq.s32.totalorder %s23, 1
      %p193 = por %p191, %p192
      %p195 = scmp.ne.s32.totalorder %s180, %s194
      %p196 = scmp.eq.s32.totalorder %s23, 0
      %p197 = por %p195, %p196
      %s199 = sadd.s32 %s198, 1
      %p202 = scmp.eq.s32.totalorder %s17, 1
      %p203 = scmp.ne.s32.totalorder %s198, %s200
      %p204 = scmp.eq.s32.totalorder %s17, 0
      %p205 = por %p203, %p204
      %p206 = scmp.ne.s32.totalorder %s198, %s200
      %p207 = scmp.eq.s32.totalorder %s22, 1
      %p208 = por %p206, %p207
      %p209 = scmp.ne.s32.totalorder %s200, %s201
      %p210 = scmp.eq.s32.totalorder %s22, 0
      %p211 = por %p209, %p210
      %p212 = scmp.ne.s32.totalorder %s200, %s201
      %p213 = scmp.eq.s32.totalorder %s23, 1
      %p214 = por %p212, %p213
      %p216 = scmp.ne.s32.totalorder %s201, %s215
      %p217 = scmp.eq.s32.totalorder %s23, 0
      %p218 = por %p216, %p217
      %s219 = ssub.s32 %s17, %s24
      %p220 = scmp.eq.s32.totalorder %s219, 0
      %s222 = sadd.s32 %s221, 1
      %s223 = scalar_select %p220, %s221, %s222
      %p226 = pneg %p220
      %p227 = scmp.eq.s32.totalorder %s17, 1
      %p228 = por %p226, %p227
      %p229 = scmp.ne.s32.totalorder %s221, %s224
      %p230 = scmp.eq.s32.totalorder %s17, 0
      %p231 = por %p229, %p230
      %p232 = scmp.ne.s32.totalorder %s221, %s224
      %p233 = scmp.eq.s32.totalorder %s22, 1
      %p234 = por %p232, %p233
      %p235 = scmp.ne.s32.totalorder %s224, %s225
      %p236 = scmp.eq.s32.totalorder %s22, 0
      %p237 = por %p235, %p236
      %p238 = scmp.ne.s32.totalorder %s224, %s225
      %p239 = scmp.eq.s32.totalorder %s23, 1
      %p240 = por %p238, %p239
      %p242 = scmp.ne.s32.totalorder %s225, %s241
      %p243 = scmp.eq.s32.totalorder %s23, 0
      %p244 = por %p242, %p243
      %p245 = scmp.le.s32.totalorder 1, %s17
      %p246 = scmp.lt.s32.totalorder %s17, 3
      %p247 = pnand %p245, %p246
      %p248 = pneg %p247
      // Predicated region
      $region9: #{_forward_impl.1} parent=5 // pred_check
        _
      $region10: #{_forward_impl.1} parent=5 // pred_check_branch
        %250 = sbr.rel (%p247) target = $region12
      $region11: #{_forward_impl.1} parent=5 // pred_region
        %s251 = ssub.s32 %s17, 1
        // Predicated region
        $region13: #{_forward_impl.1} parent=11 // pred_check
          %p252 = pneg %p64
        $region14: #{_forward_impl.1} parent=11 // pred_check_branch
          %254 = sbr.rel (%p252) target = $region16
        $region15: #{_forward_impl.1} parent=11 // pred_region
          %s256 = ssub.s32 32768, 32768
          %257 = vsyncadd [#allocation3], %s256
          %s258 = sshll.u32 [#allocation2], 4
          %s259 = int_to_ptr.vmem [resolvable:$true] %s258
          %264 = dma.hbm_to_vmem [thread:$0]  %s1, 32768, %s259, [#allocation3], 256, 256, 16
        $region16: #{_forward_impl.1} parent=11 // pred_fallthru
          _
        // Predicated region
        $region17: #{_forward_impl.1} parent=11 // pred_check
          %p265 = pneg %p85
        $region18: #{_forward_impl.1} parent=11 // pred_check_branch
          %267 = sbr.rel (%p265) target = $region20
        $region19: #{_forward_impl.1} parent=11 // pred_region
          _
        $region20: #{_forward_impl.1} parent=11 // pred_fallthru
          _
        // Predicated region
        $region21: #{_forward_impl.1} parent=11 // pred_check
          %p268 = pneg %p106
        $region22: #{_forward_impl.1} parent=11 // pred_check_branch
          %270 = sbr.rel (%p268) target = $region24
        $region23: #{_forward_impl.1} parent=11 // pred_region
          _
        $region24: #{_forward_impl.1} parent=11 // pred_fallthru
          _
        // Predicated region
        $region25: #{_forward_impl.1} parent=11 // pred_check
          %p271 = pneg %p127
        $region26: #{_forward_impl.1} parent=11 // pred_check_branch
          %273 = sbr.rel (%p271) target = $region28
        $region27: #{_forward_impl.1} parent=11 // pred_region
          _
        $region28: #{_forward_impl.1} parent=11 // pred_fallthru
          _
        // Predicated region
        $region29: #{_forward_impl.1} parent=11 // pred_check
          %p274 = pneg %p148
        $region30: #{_forward_impl.1} parent=11 // pred_check_branch
          %276 = sbr.rel (%p274) target = $region32
        $region31: #{_forward_impl.1} parent=11 // pred_region
          _
        $region32: #{_forward_impl.1} parent=11 // pred_fallthru
          _
        // Predicated region
        $region33: #{_forward_impl.1} parent=11 // pred_check
          %p277 = pneg %p169
        $region34: #{_forward_impl.1} parent=11 // pred_check_branch
          %279 = sbr.rel (%p277) target = $region36
        $region35: #{_forward_impl.1} parent=11 // pred_region
          _
        $region36: #{_forward_impl.1} parent=11 // pred_fallthru
          _
        // Predicated region
        $region37: #{_forward_impl.1} parent=11 // pred_check
          %p280 = pneg %p190
        $region38: #{_forward_impl.1} parent=11 // pred_check_branch
          %282 = sbr.rel (%p280) target = $region40
        $region39: #{_forward_impl.1} parent=11 // pred_region
          %s284 = ssub.s32 32768, 32768
          %285 = vsyncadd [#allocation5], %s284
          %s286 = sshll.u32 [#allocation4], 4
          %s287 = int_to_ptr.vmem [resolvable:$true] %s286
          %292 = dma.hbm_to_vmem [thread:$0]  %s7, 32768, %s287, [#allocation5], 512, 512, 32
        $region40: #{_forward_impl.1} parent=11 // pred_fallthru
          _
        // Predicated region
        $region41: #{_forward_impl.1} parent=11 // pred_check
          %p293 = pneg %p211
        $region42: #{_forward_impl.1} parent=11 // pred_check_branch
          %295 = sbr.rel (%p293) target = $region44
        $region43: #{_forward_impl.1} parent=11 // pred_region
          _
        $region44: #{_forward_impl.1} parent=11 // pred_fallthru
          _
      $region12: #{_forward_impl.1} parent=5 // pred_fallthru
        _
      %p296 = scmp.lt.s32.totalorder %s17, 2
      // Predicated region
      $region45: #{_forward_impl.1} parent=5 // pred_check
        %p297 = pneg %p296
      $region46: #{_forward_impl.1} parent=5 // pred_check_branch
        %299 = sbr.rel (%p297) target = $region48
      $region47: #{_forward_impl.1} parent=5 // pred_region
        // Predicated region
        $region49: #{_forward_impl.1} parent=47 // pred_check
          %p300 = pneg %p37
        $region50: #{_forward_impl.1} parent=47 // pred_check_branch
          %302 = sbr.rel (%p300) target = $region52
        $region51: #{_forward_impl.1} parent=47 // pred_region
          %p303 = scmp.lt.s32.totalorder %s17, 1
          %s304 = scalar_select %p303, %s17, 1
          %s305 = smul.addr %s304, 8
          %s306 = scalar_lea.vmem %s0, %s305
        $region52: #{_forward_impl.1} parent=47 // pred_fallthru
          _
      $region48: #{_forward_impl.1} parent=5 // pred_fallthru
        _
      %p307 = scmp.le.s32.totalorder 1, %s17
      %p308 = scmp.lt.s32.totalorder %s17, 3
      %p309 = pnand %p307, %p308
      %p310 = pneg %p309
      // Predicated region
      $region53: #{_forward_impl.1} parent=5 // pred_check
        _
      $region54: #{_forward_impl.1} parent=5 // pred_check_branch
        %312 = sbr.rel (%p309) target = $region56
      $region55: #{_forward_impl.1} parent=5 // pred_region
        %s313 = ssub.s32 %s17, 1
        // Predicated region
        $region57: #{_forward_impl.1} parent=55 // pred_check
          %p314 = pneg %p64
        $region58: #{_forward_impl.1} parent=55 // pred_check_branch
          %316 = sbr.rel (%p314) target = $region60
        $region59: #{_forward_impl.1} parent=55 // pred_region
          %317 = dma.done [#allocation3], 32768
        $region60: #{_forward_impl.1} parent=55 // pred_fallthru
          _
        // Predicated region
        $region61: #{_forward_impl.1} parent=55 // pred_check
          %p318 = pneg %p190
        $region62: #{_forward_impl.1} parent=55 // pred_check_branch
          %320 = sbr.rel (%p318) target = $region64
        $region63: #{_forward_impl.1} parent=55 // pred_region
          %321 = dma.done [#allocation5], 32768
        $region64: #{_forward_impl.1} parent=55 // pred_fallthru
          _
        %p322 = scmp.lt.s32.totalorder %s22, 1
        %s323 = scalar_select %p322, %s22, 1
        %s324 = smul.addr %s323, 8
        %s325 = scalar_lea.vmem %s0, %s324
        %p326 = pneg %p43
        %p327 = pneg %p40
        %p328 = pneg %p64
        %p329 = pneg %p61
        %p330 = pneg %p85
        %p331 = pneg %p82
        %p332 = pneg %p106
        %p333 = pneg %p103
        %p334 = pneg %p127
        %p335 = pneg %p124
        %p336 = pneg %p148
        %p337 = pneg %p145
        %p338 = pneg %p169
        %p339 = pneg %p166
        %p340 = pneg %p190
        %p341 = pneg %p187
        %p342 = pneg %p211
        %p343 = pneg %p208
        %p344 = pneg %p237
        %p345 = pneg %p234
        %p346 = scmp.lt.s32.totalorder %s22, 1
        %s347 = scalar_select %p346, %s22, 1
        %s348 = smul.addr %s347, 8
        %s349 = scalar_lea.vmem %s9, %s348
        %p350 = scmp.lt.s32.totalorder %s22, 1
        %s351 = scalar_select %p350, %s22, 1
        %s352 = smul.addr %s351, 8
        %s353 = scalar_lea.vmem %s0, %s352
        %p354 = scmp.lt.s32.totalorder %s22, 1
        %s355 = scalar_select %p354, %s22, 1
        %s356 = smul.addr %s355, 8
        %s357 = scalar_lea.vmem %s9, %s356
        %v359 = vld [vmem:[%s353] sm:$0xff]
        %v360 = vld [vmem:[#allocation2] sm:$0xff]
        %v361 = vld [vmem:[#allocation2 + $0x8] sm:$0xff]
        %v362 = vld [vmem:[#allocation2 + $0x10] sm:$0xff]
        %v363 = vld [vmem:[#allocation2 + $0x18] sm:$0xff]
        %v364 = vld [vmem:[#allocation2 + $0x20] sm:$0xff]
        %v365 = vld [vmem:[#allocation2 + $0x28] sm:$0xff]
        %v366 = vld [vmem:[#allocation2 + $0x30] sm:$0xff]
        %v367 = vld [vmem:[#allocation2 + $0x38] sm:$0xff]
        %v368 = vld [vmem:[#allocation2 + $0x40] sm:$0xff]
        %v369 = vld [vmem:[#allocation2 + $0x48] sm:$0xff]
        %v370 = vld [vmem:[#allocation2 + $0x50] sm:$0xff]
        %v371 = vld [vmem:[#allocation2 + $0x58] sm:$0xff]
        %v372 = vld [vmem:[#allocation2 + $0x60] sm:$0xff]
        %v373 = vld [vmem:[#allocation2 + $0x68] sm:$0xff]
        %v374 = vld [vmem:[#allocation2 + $0x70] sm:$0xff]
        %v375 = vld [vmem:[#allocation2 + $0x78] sm:$0xff]
        %v376 = vld [vmem:[#allocation2 + $0x80] sm:$0xff]
        %v377 = vld [vmem:[#allocation2 + $0x88] sm:$0xff]
        %v378 = vld [vmem:[#allocation2 + $0x90] sm:$0xff]
        %v379 = vld [vmem:[#allocation2 + $0x98] sm:$0xff]
        %v380 = vld [vmem:[#allocation2 + $0xa0] sm:$0xff]
        %v381 = vld [vmem:[#allocation2 + $0xa8] sm:$0xff]
        %v382 = vld [vmem:[#allocation2 + $0xb0] sm:$0xff]
        %v383 = vld [vmem:[#allocation2 + $0xb8] sm:$0xff]
        %v384 = vld [vmem:[#allocation2 + $0xc0] sm:$0xff]
        %v385 = vld [vmem:[#allocation2 + $0xc8] sm:$0xff]
        %v386 = vld [vmem:[#allocation2 + $0xd0] sm:$0xff]
        %v387 = vld [vmem:[#allocation2 + $0xd8] sm:$0xff]
        %v388 = vld [vmem:[#allocation2 + $0xe0] sm:$0xff]
        %v389 = vld [vmem:[#allocation2 + $0xe8] sm:$0xff]
        %v390 = vld [vmem:[#allocation2 + $0xf0] sm:$0xff]
        %v391 = vld [vmem:[#allocation2 + $0xf8] sm:$0xff]
        %v392 = vld [vmem:[#allocation2 + $0x100] sm:$0xff]
        %v393 = vld [vmem:[#allocation2 + $0x108] sm:$0xff]
        %v394 = vld [vmem:[#allocation2 + $0x110] sm:$0xff]
        %v395 = vld [vmem:[#allocation2 + $0x118] sm:$0xff]
        %v396 = vld [vmem:[#allocation2 + $0x120] sm:$0xff]
        %v397 = vld [vmem:[#allocation2 + $0x128] sm:$0xff]
        %v398 = vld [vmem:[#allocation2 + $0x130] sm:$0xff]
        %v399 = vld [vmem:[#allocation2 + $0x138] sm:$0xff]
        %v400 = vld [vmem:[#allocation2 + $0x140] sm:$0xff]
        %v401 = vld [vmem:[#allocation2 + $0x148] sm:$0xff]
        %v402 = vld [vmem:[#allocation2 + $0x150] sm:$0xff]
        %v403 = vld [vmem:[#allocation2 + $0x158] sm:$0xff]
        %v404 = vld [vmem:[#allocation2 + $0x160] sm:$0xff]
        %v405 = vld [vmem:[#allocation2 + $0x168] sm:$0xff]
        %v406 = vld [vmem:[#allocation2 + $0x170] sm:$0xff]
        %v407 = vld [vmem:[#allocation2 + $0x178] sm:$0xff]
        %v408 = vld [vmem:[#allocation2 + $0x180] sm:$0xff]
        %v409 = vld [vmem:[#allocation2 + $0x188] sm:$0xff]
        %v410 = vld [vmem:[#allocation2 + $0x190] sm:$0xff]
        %v411 = vld [vmem:[#allocation2 + $0x198] sm:$0xff]
        %v412 = vld [vmem:[#allocation2 + $0x1a0] sm:$0xff]
        %v413 = vld [vmem:[#allocation2 + $0x1a8] sm:$0xff]
        %v414 = vld [vmem:[#allocation2 + $0x1b0] sm:$0xff]
        %v415 = vld [vmem:[#allocation2 + $0x1b8] sm:$0xff]
        %v416 = vld [vmem:[#allocation2 + $0x1c0] sm:$0xff]
        %v417 = vld [vmem:[#allocation2 + $0x1c8] sm:$0xff]
        %v418 = vld [vmem:[#allocation2 + $0x1d0] sm:$0xff]
        %v419 = vld [vmem:[#allocation2 + $0x1d8] sm:$0xff]
        %v420 = vld [vmem:[#allocation2 + $0x1e0] sm:$0xff]
        %v421 = vld [vmem:[#allocation2 + $0x1e8] sm:$0xff]
        %v422 = vld [vmem:[#allocation2 + $0x1f0] sm:$0xff]
        %v423 = vld [vmem:[#allocation2 + $0x1f8] sm:$0xff]
        %v424 = vld [vmem:[#allocation2 + $0x200] sm:$0xff]
        %v425 = vld [vmem:[#allocation2 + $0x208] sm:$0xff]
        %v426 = vld [vmem:[#allocation2 + $0x210] sm:$0xff]
        %v427 = vld [vmem:[#allocation2 + $0x218] sm:$0xff]
        %v428 = vld [vmem:[#allocation2 + $0x220] sm:$0xff]
        %v429 = vld [vmem:[#allocation2 + $0x228] sm:$0xff]
        %v430 = vld [vmem:[#allocation2 + $0x230] sm:$0xff]
        %v431 = vld [vmem:[#allocation2 + $0x238] sm:$0xff]
        %v432 = vld [vmem:[#allocation2 + $0x240] sm:$0xff]
        %v433 = vld [vmem:[#allocation2 + $0x248] sm:$0xff]
        %v434 = vld [vmem:[#allocation2 + $0x250] sm:$0xff]
        %v435 = vld [vmem:[#allocation2 + $0x258] sm:$0xff]
        %v436 = vld [vmem:[#allocation2 + $0x260] sm:$0xff]
        %v437 = vld [vmem:[#allocation2 + $0x268] sm:$0xff]
        %v438 = vld [vmem:[#allocation2 + $0x270] sm:$0xff]
        %v439 = vld [vmem:[#allocation2 + $0x278] sm:$0xff]
        %v440 = vld [vmem:[#allocation2 + $0x280] sm:$0xff]
        %v441 = vld [vmem:[#allocation2 + $0x288] sm:$0xff]
        %v442 = vld [vmem:[#allocation2 + $0x290] sm:$0xff]
        %v443 = vld [vmem:[#allocation2 + $0x298] sm:$0xff]
        %v444 = vld [vmem:[#allocation2 + $0x2a0] sm:$0xff]
        %v445 = vld [vmem:[#allocation2 + $0x2a8] sm:$0xff]
        %v446 = vld [vmem:[#allocation2 + $0x2b0] sm:$0xff]
        %v447 = vld [vmem:[#allocation2 + $0x2b8] sm:$0xff]
        %v448 = vld [vmem:[#allocation2 + $0x2c0] sm:$0xff]
        %v449 = vld [vmem:[#allocation2 + $0x2c8] sm:$0xff]
        %v450 = vld [vmem:[#allocation2 + $0x2d0] sm:$0xff]
        %v451 = vld [vmem:[#allocation2 + $0x2d8] sm:$0xff]
        %v452 = vld [vmem:[#allocation2 + $0x2e0] sm:$0xff]
        %v453 = vld [vmem:[#allocation2 + $0x2e8] sm:$0xff]
        %v454 = vld [vmem:[#allocation2 + $0x2f0] sm:$0xff]
        %v455 = vld [vmem:[#allocation2 + $0x2f8] sm:$0xff]
        %v456 = vld [vmem:[#allocation2 + $0x300] sm:$0xff]
        %v457 = vld [vmem:[#allocation2 + $0x308] sm:$0xff]
        %v458 = vld [vmem:[#allocation2 + $0x310] sm:$0xff]
        %v459 = vld [vmem:[#allocation2 + $0x318] sm:$0xff]
        %v460 = vld [vmem:[#allocation2 + $0x320] sm:$0xff]
        %v461 = vld [vmem:[#allocation2 + $0x328] sm:$0xff]
        %v462 = vld [vmem:[#allocation2 + $0x330] sm:$0xff]
        %v463 = vld [vmem:[#allocation2 + $0x338] sm:$0xff]
        %v464 = vld [vmem:[#allocation2 + $0x340] sm:$0xff]
        %v465 = vld [vmem:[#allocation2 + $0x348] sm:$0xff]
        %v466 = vld [vmem:[#allocation2 + $0x350] sm:$0xff]
        %v467 = vld [vmem:[#allocation2 + $0x358] sm:$0xff]
        %v468 = vld [vmem:[#allocation2 + $0x360] sm:$0xff]
        %v469 = vld [vmem:[#allocation2 + $0x368] sm:$0xff]
        %v470 = vld [vmem:[#allocation2 + $0x370] sm:$0xff]
        %v471 = vld [vmem:[#allocation2 + $0x378] sm:$0xff]
        %v472 = vld [vmem:[#allocation2 + $0x380] sm:$0xff]
        %v473 = vld [vmem:[#allocation2 + $0x388] sm:$0xff]
        %v474 = vld [vmem:[#allocation2 + $0x390] sm:$0xff]
        %v475 = vld [vmem:[#allocation2 + $0x398] sm:$0xff]
        %v476 = vld [vmem:[#allocation2 + $0x3a0] sm:$0xff]
        %v477 = vld [vmem:[#allocation2 + $0x3a8] sm:$0xff]
        %v478 = vld [vmem:[#allocation2 + $0x3b0] sm:$0xff]
        %v479 = vld [vmem:[#allocation2 + $0x3b8] sm:$0xff]
        %v480 = vld [vmem:[#allocation2 + $0x3c0] sm:$0xff]
        %v481 = vld [vmem:[#allocation2 + $0x3c8] sm:$0xff]
        %v482 = vld [vmem:[#allocation2 + $0x3d0] sm:$0xff]
        %v483 = vld [vmem:[#allocation2 + $0x3d8] sm:$0xff]
        %v484 = vld [vmem:[#allocation2 + $0x3e0] sm:$0xff]
        %v485 = vld [vmem:[#allocation2 + $0x3e8] sm:$0xff]
        %v486 = vld [vmem:[#allocation2 + $0x3f0] sm:$0xff]
        %v487 = vld [vmem:[#allocation2 + $0x3f8] sm:$0xff]
        %v488 = vld [vmem:[#allocation2 + $0x400] sm:$0xff]
        %v489 = vld [vmem:[#allocation2 + $0x408] sm:$0xff]
        %v490 = vld [vmem:[#allocation2 + $0x410] sm:$0xff]
        %v491 = vld [vmem:[#allocation2 + $0x418] sm:$0xff]
        %v492 = vld [vmem:[#allocation2 + $0x420] sm:$0xff]
        %v493 = vld [vmem:[#allocation2 + $0x428] sm:$0xff]
        %v494 = vld [vmem:[#allocation2 + $0x430] sm:$0xff]
        %v495 = vld [vmem:[#allocation2 + $0x438] sm:$0xff]
        %v496 = vld [vmem:[#allocation2 + $0x440] sm:$0xff]
        %v497 = vld [vmem:[#allocation2 + $0x448] sm:$0xff]
        %v498 = vld [vmem:[#allocation2 + $0x450] sm:$0xff]
        %v499 = vld [vmem:[#allocation2 + $0x458] sm:$0xff]
        %v500 = vld [vmem:[#allocation2 + $0x460] sm:$0xff]
        %v501 = vld [vmem:[#allocation2 + $0x468] sm:$0xff]
        %v502 = vld [vmem:[#allocation2 + $0x470] sm:$0xff]
        %v503 = vld [vmem:[#allocation2 + $0x478] sm:$0xff]
        %v504 = vld [vmem:[#allocation2 + $0x480] sm:$0xff]
        %v505 = vld [vmem:[#allocation2 + $0x488] sm:$0xff]
        %v506 = vld [vmem:[#allocation2 + $0x490] sm:$0xff]
        %v507 = vld [vmem:[#allocation2 + $0x498] sm:$0xff]
        %v508 = vld [vmem:[#allocation2 + $0x4a0] sm:$0xff]
        %v509 = vld [vmem:[#allocation2 + $0x4a8] sm:$0xff]
        %v510 = vld [vmem:[#allocation2 + $0x4b0] sm:$0xff]
        %v511 = vld [vmem:[#allocation2 + $0x4b8] sm:$0xff]
        %v512 = vld [vmem:[#allocation2 + $0x4c0] sm:$0xff]
        %v513 = vld [vmem:[#allocation2 + $0x4c8] sm:$0xff]
        %v514 = vld [vmem:[#allocation2 + $0x4d0] sm:$0xff]
        %v515 = vld [vmem:[#allocation2 + $0x4d8] sm:$0xff]
        %v516 = vld [vmem:[#allocation2 + $0x4e0] sm:$0xff]
        %v517 = vld [vmem:[#allocation2 + $0x4e8] sm:$0xff]
        %v518 = vld [vmem:[#allocation2 + $0x4f0] sm:$0xff]
        %v519 = vld [vmem:[#allocation2 + $0x4f8] sm:$0xff]
        %v520 = vld [vmem:[#allocation2 + $0x500] sm:$0xff]
        %v521 = vld [vmem:[#allocation2 + $0x508] sm:$0xff]
        %v522 = vld [vmem:[#allocation2 + $0x510] sm:$0xff]
        %v523 = vld [vmem:[#allocation2 + $0x518] sm:$0xff]
        %v524 = vld [vmem:[#allocation2 + $0x520] sm:$0xff]
        %v525 = vld [vmem:[#allocation2 + $0x528] sm:$0xff]
        %v526 = vld [vmem:[#allocation2 + $0x530] sm:$0xff]
        %v527 = vld [vmem:[#allocation2 + $0x538] sm:$0xff]
        %v528 = vld [vmem:[#allocation2 + $0x540] sm:$0xff]
        %v529 = vld [vmem:[#allocation2 + $0x548] sm:$0xff]
        %v530 = vld [vmem:[#allocation2 + $0x550] sm:$0xff]
        %v531 = vld [vmem:[#allocation2 + $0x558] sm:$0xff]
        %v532 = vld [vmem:[#allocation2 + $0x560] sm:$0xff]
        %v533 = vld [vmem:[#allocation2 + $0x568] sm:$0xff]
        %v534 = vld [vmem:[#allocation2 + $0x570] sm:$0xff]
        %v535 = vld [vmem:[#allocation2 + $0x578] sm:$0xff]
        %v536 = vld [vmem:[#allocation2 + $0x580] sm:$0xff]
        %v537 = vld [vmem:[#allocation2 + $0x588] sm:$0xff]
        %v538 = vld [vmem:[#allocation2 + $0x590] sm:$0xff]
        %v539 = vld [vmem:[#allocation2 + $0x598] sm:$0xff]
        %v540 = vld [vmem:[#allocation2 + $0x5a0] sm:$0xff]
        %v541 = vld [vmem:[#allocation2 + $0x5a8] sm:$0xff]
        %v542 = vld [vmem:[#allocation2 + $0x5b0] sm:$0xff]
        %v543 = vld [vmem:[#allocation2 + $0x5b8] sm:$0xff]
        %v544 = vld [vmem:[#allocation2 + $0x5c0] sm:$0xff]
        %v545 = vld [vmem:[#allocation2 + $0x5c8] sm:$0xff]
        %v546 = vld [vmem:[#allocation2 + $0x5d0] sm:$0xff]
        %v547 = vld [vmem:[#allocation2 + $0x5d8] sm:$0xff]
        %v548 = vld [vmem:[#allocation2 + $0x5e0] sm:$0xff]
        %v549 = vld [vmem:[#allocation2 + $0x5e8] sm:$0xff]
        %v550 = vld [vmem:[#allocation2 + $0x5f0] sm:$0xff]
        %v551 = vld [vmem:[#allocation2 + $0x5f8] sm:$0xff]
        %v552 = vld [vmem:[#allocation2 + $0x600] sm:$0xff]
        %v553 = vld [vmem:[#allocation2 + $0x608] sm:$0xff]
        %v554 = vld [vmem:[#allocation2 + $0x610] sm:$0xff]
        %v555 = vld [vmem:[#allocation2 + $0x618] sm:$0xff]
        %v556 = vld [vmem:[#allocation2 + $0x620] sm:$0xff]
        %v557 = vld [vmem:[#allocation2 + $0x628] sm:$0xff]
        %v558 = vld [vmem:[#allocation2 + $0x630] sm:$0xff]
        %v559 = vld [vmem:[#allocation2 + $0x638] sm:$0xff]
        %v560 = vld [vmem:[#allocation2 + $0x640] sm:$0xff]
        %v561 = vld [vmem:[#allocation2 + $0x648] sm:$0xff]
        %v562 = vld [vmem:[#allocation2 + $0x650] sm:$0xff]
        %v563 = vld [vmem:[#allocation2 + $0x658] sm:$0xff]
        %v564 = vld [vmem:[#allocation2 + $0x660] sm:$0xff]
        %v565 = vld [vmem:[#allocation2 + $0x668] sm:$0xff]
        %v566 = vld [vmem:[#allocation2 + $0x670] sm:$0xff]
        %v567 = vld [vmem:[#allocation2 + $0x678] sm:$0xff]
        %v568 = vld [vmem:[#allocation2 + $0x680] sm:$0xff]
        %v569 = vld [vmem:[#allocation2 + $0x688] sm:$0xff]
        %v570 = vld [vmem:[#allocation2 + $0x690] sm:$0xff]
        %v571 = vld [vmem:[#allocation2 + $0x698] sm:$0xff]
        %v572 = vld [vmem:[#allocation2 + $0x6a0] sm:$0xff]
        %v573 = vld [vmem:[#allocation2 + $0x6a8] sm:$0xff]
        %v574 = vld [vmem:[#allocation2 + $0x6b0] sm:$0xff]
        %v575 = vld [vmem:[#allocation2 + $0x6b8] sm:$0xff]
        %v576 = vld [vmem:[#allocation2 + $0x6c0] sm:$0xff]
        %v577 = vld [vmem:[#allocation2 + $0x6c8] sm:$0xff]
        %v578 = vld [vmem:[#allocation2 + $0x6d0] sm:$0xff]
        %v579 = vld [vmem:[#allocation2 + $0x6d8] sm:$0xff]
        %v580 = vld [vmem:[#allocation2 + $0x6e0] sm:$0xff]
        %v581 = vld [vmem:[#allocation2 + $0x6e8] sm:$0xff]
        %v582 = vld [vmem:[#allocation2 + $0x6f0] sm:$0xff]
        %v583 = vld [vmem:[#allocation2 + $0x6f8] sm:$0xff]
        %v584 = vld [vmem:[#allocation2 + $0x700] sm:$0xff]
        %v585 = vld [vmem:[#allocation2 + $0x708] sm:$0xff]
        %v586 = vld [vmem:[#allocation2 + $0x710] sm:$0xff]
        %v587 = vld [vmem:[#allocation2 + $0x718] sm:$0xff]
        %v588 = vld [vmem:[#allocation2 + $0x720] sm:$0xff]
        %v589 = vld [vmem:[#allocation2 + $0x728] sm:$0xff]
        %v590 = vld [vmem:[#allocation2 + $0x730] sm:$0xff]
        %v591 = vld [vmem:[#allocation2 + $0x738] sm:$0xff]
        %v592 = vld [vmem:[#allocation2 + $0x740] sm:$0xff]
        %v593 = vld [vmem:[#allocation2 + $0x748] sm:$0xff]
        %v594 = vld [vmem:[#allocation2 + $0x750] sm:$0xff]
        %v595 = vld [vmem:[#allocation2 + $0x758] sm:$0xff]
        %v596 = vld [vmem:[#allocation2 + $0x760] sm:$0xff]
        %v597 = vld [vmem:[#allocation2 + $0x768] sm:$0xff]
        %v598 = vld [vmem:[#allocation2 + $0x770] sm:$0xff]
        %v599 = vld [vmem:[#allocation2 + $0x778] sm:$0xff]
        %v600 = vld [vmem:[#allocation2 + $0x780] sm:$0xff]
        %v601 = vld [vmem:[#allocation2 + $0x788] sm:$0xff]
        %v602 = vld [vmem:[#allocation2 + $0x790] sm:$0xff]
        %v603 = vld [vmem:[#allocation2 + $0x798] sm:$0xff]
        %v604 = vld [vmem:[#allocation2 + $0x7a0] sm:$0xff]
        %v605 = vld [vmem:[#allocation2 + $0x7a8] sm:$0xff]
        %v606 = vld [vmem:[#allocation2 + $0x7b0] sm:$0xff]
        %v607 = vld [vmem:[#allocation2 + $0x7b8] sm:$0xff]
        %v608 = vld [vmem:[#allocation2 + $0x7c0] sm:$0xff]
        %v609 = vld [vmem:[#allocation2 + $0x7c8] sm:$0xff]
        %v610 = vld [vmem:[#allocation2 + $0x7d0] sm:$0xff]
        %v611 = vld [vmem:[#allocation2 + $0x7d8] sm:$0xff]
        %v612 = vld [vmem:[#allocation2 + $0x7e0] sm:$0xff]
        %v613 = vld [vmem:[#allocation2 + $0x7e8] sm:$0xff]
        %v614 = vld [vmem:[#allocation2 + $0x7f0] sm:$0xff]
        %v615 = vld [vmem:[#allocation2 + $0x7f8] sm:$0xff]
        %v616 = vld [vmem:[%s2] sm:$0xf]
        %v618 = vcombine.high %v359, %v359
        %v620 = vunpack.c.l.s4 1966171168
        %v621 = vunpack.c.0.s8 %v620
        %v622 = vlaneseq
        %v623 = vshrl.u32 %v622, 7
        %v624 = vsub.s32 %v621, %v623
        %v625 = vrot.slane %v359, %v624
        %v627 = vunpack.c.l.s4 1966171168
        %v628 = vunpack.c.0.s8 %v627
        %v629 = vlaneseq
        %v630 = vshrl.u32 %v629, 7
        %v631 = vsub.s32 %v628, %v630
        %v632 = vrot.slane %v618, %v631
        %v633 = vcombine.high %v625, %v625
        %v634 = vcombine.high %v632, %v632
        %v636 = vunpack.c.l.s4 1966171168
        %v637 = vunpack.c.0.s8 %v636
        %v638 = vlaneseq
        %v639 = vshrl.u32 %v638, 7
        %v640 = vsub.s32 %v637, %v639
        %v641 = vrot.slane %v625, %v640
        %v643 = vunpack.c.l.s4 1966171168
        %v644 = vunpack.c.0.s8 %v643
        %v645 = vlaneseq
        %v646 = vshrl.u32 %v645, 7
        %v647 = vsub.s32 %v644, %v646
        %v648 = vrot.slane %v632, %v647
        %v650 = vunpack.c.l.s4 1966171168
        %v651 = vunpack.c.0.s8 %v650
        %v652 = vlaneseq
        %v653 = vshrl.u32 %v652, 7
        %v654 = vsub.s32 %v651, %v653
        %v655 = vrot.slane %v633, %v654
        %v657 = vunpack.c.l.s4 1966171168
        %v658 = vunpack.c.0.s8 %v657
        %v659 = vlaneseq
        %v660 = vshrl.u32 %v659, 7
        %v661 = vsub.s32 %v658, %v660
        %v662 = vrot.slane %v634, %v661
        %v663 = vcombine.high %v641, %v641
        %v664 = vcombine.high %v648, %v648
        %v665 = vcombine.high %v655, %v655
        %v666 = vcombine.high %v662, %v662
        %v931 = vunpack.c.l.b16 %v360
        %v932 = vunpack.c.h.b16 %v360
        %v933 = vunpack.c.l.b16 %v361
        %v934 = vunpack.c.h.b16 %v361
        %v935 = vunpack.c.l.b16 %v362
        %v936 = vunpack.c.h.b16 %v362
        %v937 = vunpack.c.l.b16 %v363
        %v938 = vunpack.c.h.b16 %v363
        %v939 = vunpack.c.l.b16 %v364
        %v940 = vunpack.c.h.b16 %v364
        %v941 = vunpack.c.l.b16 %v365
        %v942 = vunpack.c.h.b16 %v365
        %v943 = vunpack.c.l.b16 %v366
        %v944 = vunpack.c.h.b16 %v366
        %v945 = vunpack.c.l.b16 %v367
        %v946 = vunpack.c.h.b16 %v367
        %v947 = vunpack.c.l.b16 %v368
        %v948 = vunpack.c.h.b16 %v368
        %v949 = vunpack.c.l.b16 %v369
        %v950 = vunpack.c.h.b16 %v369
        %v951 = vunpack.c.l.b16 %v370
        %v952 = vunpack.c.h.b16 %v370
        %v953 = vunpack.c.l.b16 %v371
        %v954 = vunpack.c.h.b16 %v371
        %v955 = vunpack.c.l.b16 %v372
        %v956 = vunpack.c.h.b16 %v372
        %v957 = vunpack.c.l.b16 %v373
        %v958 = vunpack.c.h.b16 %v373
        %v959 = vunpack.c.l.b16 %v374
        %v960 = vunpack.c.h.b16 %v374
        %v961 = vunpack.c.l.b16 %v375
        %v962 = vunpack.c.h.b16 %v375
        %v963 = vunpack.c.l.b16 %v376
        %v964 = vunpack.c.h.b16 %v376
        %v965 = vunpack.c.l.b16 %v377
        %v966 = vunpack.c.h.b16 %v377
        %v967 = vunpack.c.l.b16 %v378
        %v968 = vunpack.c.h.b16 %v378
        %v969 = vunpack.c.l.b16 %v379
        %v970 = vunpack.c.h.b16 %v379
        %v971 = vunpack.c.l.b16 %v380
        %v972 = vunpack.c.h.b16 %v380
        %v973 = vunpack.c.l.b16 %v381
        %v974 = vunpack.c.h.b16 %v381
        %v975 = vunpack.c.l.b16 %v382
        %v976 = vunpack.c.h.b16 %v382
        %v977 = vunpack.c.l.b16 %v383
        %v978 = vunpack.c.h.b16 %v383
        %v979 = vunpack.c.l.b16 %v384
        %v980 = vunpack.c.h.b16 %v384
        %v981 = vunpack.c.l.b16 %v385
        %v982 = vunpack.c.h.b16 %v385
        %v983 = vunpack.c.l.b16 %v386
        %v984 = vunpack.c.h.b16 %v386
        %v985 = vunpack.c.l.b16 %v387
        %v986 = vunpack.c.h.b16 %v387
        %v987 = vunpack.c.l.b16 %v388
        %v988 = vunpack.c.h.b16 %v388
        %v989 = vunpack.c.l.b16 %v389
        %v990 = vunpack.c.h.b16 %v389
        %v991 = vunpack.c.l.b16 %v390
        %v992 = vunpack.c.h.b16 %v390
        %v993 = vunpack.c.l.b16 %v391
        %v994 = vunpack.c.h.b16 %v391
        %v995 = vunpack.c.l.b16 %v392
        %v996 = vunpack.c.h.b16 %v392
        %v997 = vunpack.c.l.b16 %v393
        %v998 = vunpack.c.h.b16 %v393
        %v999 = vunpack.c.l.b16 %v394
        %v1000 = vunpack.c.h.b16 %v394
        %v1001 = vunpack.c.l.b16 %v395
        %v1002 = vunpack.c.h.b16 %v395
        %v1003 = vunpack.c.l.b16 %v396
        %v1004 = vunpack.c.h.b16 %v396
        %v1005 = vunpack.c.l.b16 %v397
        %v1006 = vunpack.c.h.b16 %v397
        %v1007 = vunpack.c.l.b16 %v398
        %v1008 = vunpack.c.h.b16 %v398
        %v1009 = vunpack.c.l.b16 %v399
        %v1010 = vunpack.c.h.b16 %v399
        %v1011 = vunpack.c.l.b16 %v400
        %v1012 = vunpack.c.h.b16 %v400
        %v1013 = vunpack.c.l.b16 %v401
        %v1014 = vunpack.c.h.b16 %v401
        %v1015 = vunpack.c.l.b16 %v402
        %v1016 = vunpack.c.h.b16 %v402
        %v1017 = vunpack.c.l.b16 %v403
        %v1018 = vunpack.c.h.b16 %v403
        %v1019 = vunpack.c.l.b16 %v404
        %v1020 = vunpack.c.h.b16 %v404
        %v1021 = vunpack.c.l.b16 %v405
        %v1022 = vunpack.c.h.b16 %v405
        %v1023 = vunpack.c.l.b16 %v406
        %v1024 = vunpack.c.h.b16 %v406
        %v1025 = vunpack.c.l.b16 %v407
        %v1026 = vunpack.c.h.b16 %v407
        %v1027 = vunpack.c.l.b16 %v408
        %v1028 = vunpack.c.h.b16 %v408
        %v1029 = vunpack.c.l.b16 %v409
        %v1030 = vunpack.c.h.b16 %v409
        %v1031 = vunpack.c.l.b16 %v410
        %v1032 = vunpack.c.h.b16 %v410
        %v1033 = vunpack.c.l.b16 %v411
        %v1034 = vunpack.c.h.b16 %v411
        %v1035 = vunpack.c.l.b16 %v412
        %v1036 = vunpack.c.h.b16 %v412
        %v1037 = vunpack.c.l.b16 %v413
        %v1038 = vunpack.c.h.b16 %v413
        %v1039 = vunpack.c.l.b16 %v414
        %v1040 = vunpack.c.h.b16 %v414
        %v1041 = vunpack.c.l.b16 %v415
        %v1042 = vunpack.c.h.b16 %v415
        %v1043 = vunpack.c.l.b16 %v416
        %v1044 = vunpack.c.h.b16 %v416
        %v1045 = vunpack.c.l.b16 %v417
        %v1046 = vunpack.c.h.b16 %v417
        %v1047 = vunpack.c.l.b16 %v418
        %v1048 = vunpack.c.h.b16 %v418
        %v1049 = vunpack.c.l.b16 %v419
        %v1050 = vunpack.c.h.b16 %v419
        %v1051 = vunpack.c.l.b16 %v420
        %v1052 = vunpack.c.h.b16 %v420
        %v1053 = vunpack.c.l.b16 %v421
        %v1054 = vunpack.c.h.b16 %v421
        %v1055 = vunpack.c.l.b16 %v422
        %v1056 = vunpack.c.h.b16 %v422
        %v1057 = vunpack.c.l.b16 %v423
        %v1058 = vunpack.c.h.b16 %v423
        %v1059 = vunpack.c.l.b16 %v424
        %v1060 = vunpack.c.h.b16 %v424
        %v1061 = vunpack.c.l.b16 %v425
        %v1062 = vunpack.c.h.b16 %v425
        %v1063 = vunpack.c.l.b16 %v426
        %v1064 = vunpack.c.h.b16 %v426
        %v1065 = vunpack.c.l.b16 %v427
        %v1066 = vunpack.c.h.b16 %v427
        %v1067 = vunpack.c.l.b16 %v428
        %v1068 = vunpack.c.h.b16 %v428
        %v1069 = vunpack.c.l.b16 %v429
        %v1070 = vunpack.c.h.b16 %v429
        %v1071 = vunpack.c.l.b16 %v430
        %v1072 = vunpack.c.h.b16 %v430
        %v1073 = vunpack.c.l.b16 %v431
        %v1074 = vunpack.c.h.b16 %v431
        %v1075 = vunpack.c.l.b16 %v432
        %v1076 = vunpack.c.h.b16 %v432
        %v1077 = vunpack.c.l.b16 %v433
        %v1078 = vunpack.c.h.b16 %v433
        %v1079 = vunpack.c.l.b16 %v434
        %v1080 = vunpack.c.h.b16 %v434
        %v1081 = vunpack.c.l.b16 %v435
        %v1082 = vunpack.c.h.b16 %v435
        %v1083 = vunpack.c.l.b16 %v436
        %v1084 = vunpack.c.h.b16 %v436
        %v1085 = vunpack.c.l.b16 %v437
        %v1086 = vunpack.c.h.b16 %v437
        %v1087 = vunpack.c.l.b16 %v438
        %v1088 = vunpack.c.h.b16 %v438
        %v1089 = vunpack.c.l.b16 %v439
        %v1090 = vunpack.c.h.b16 %v439
        %v1091 = vunpack.c.l.b16 %v440
        %v1092 = vunpack.c.h.b16 %v440
        %v1093 = vunpack.c.l.b16 %v441
        %v1094 = vunpack.c.h.b16 %v441
        %v1095 = vunpack.c.l.b16 %v442
        %v1096 = vunpack.c.h.b16 %v442
        %v1097 = vunpack.c.l.b16 %v443
        %v1098 = vunpack.c.h.b16 %v443
        %v1099 = vunpack.c.l.b16 %v444
        %v1100 = vunpack.c.h.b16 %v444
        %v1101 = vunpack.c.l.b16 %v445
        %v1102 = vunpack.c.h.b16 %v445
        %v1103 = vunpack.c.l.b16 %v446
        %v1104 = vunpack.c.h.b16 %v446
        %v1105 = vunpack.c.l.b16 %v447
        %v1106 = vunpack.c.h.b16 %v447
        %v1107 = vunpack.c.l.b16 %v448
        %v1108 = vunpack.c.h.b16 %v448
        %v1109 = vunpack.c.l.b16 %v449
        %v1110 = vunpack.c.h.b16 %v449
        %v1111 = vunpack.c.l.b16 %v450
        %v1112 = vunpack.c.h.b16 %v450
        %v1113 = vunpack.c.l.b16 %v451
        %v1114 = vunpack.c.h.b16 %v451
        %v1115 = vunpack.c.l.b16 %v452
        %v1116 = vunpack.c.h.b16 %v452
        %v1117 = vunpack.c.l.b16 %v453
        %v1118 = vunpack.c.h.b16 %v453
        %v1119 = vunpack.c.l.b16 %v454
        %v1120 = vunpack.c.h.b16 %v454
        %v1121 = vunpack.c.l.b16 %v455
        %v1122 = vunpack.c.h.b16 %v455
        %v1123 = vunpack.c.l.b16 %v456
        %v1124 = vunpack.c.h.b16 %v456
        %v1125 = vunpack.c.l.b16 %v457
        %v1126 = vunpack.c.h.b16 %v457
        %v1127 = vunpack.c.l.b16 %v458
        %v1128 = vunpack.c.h.b16 %v458
        %v1129 = vunpack.c.l.b16 %v459
        %v1130 = vunpack.c.h.b16 %v459
        %v1131 = vunpack.c.l.b16 %v460
        %v1132 = vunpack.c.h.b16 %v460
        %v1133 = vunpack.c.l.b16 %v461
        %v1134 = vunpack.c.h.b16 %v461
        %v1135 = vunpack.c.l.b16 %v462
        %v1136 = vunpack.c.h.b16 %v462
        %v1137 = vunpack.c.l.b16 %v463
        %v1138 = vunpack.c.h.b16 %v463
        %v1139 = vunpack.c.l.b16 %v464
        %v1140 = vunpack.c.h.b16 %v464
        %v1141 = vunpack.c.l.b16 %v465
        %v1142 = vunpack.c.h.b16 %v465
        %v1143 = vunpack.c.l.b16 %v466
        %v1144 = vunpack.c.h.b16 %v466
        %v1145 = vunpack.c.l.b16 %v467
        %v1146 = vunpack.c.h.b16 %v467
        %v1147 = vunpack.c.l.b16 %v468
        %v1148 = vunpack.c.h.b16 %v468
        %v1149 = vunpack.c.l.b16 %v469
        %v1150 = vunpack.c.h.b16 %v469
        %v1151 = vunpack.c.l.b16 %v470
        %v1152 = vunpack.c.h.b16 %v470
        %v1153 = vunpack.c.l.b16 %v471
        %v1154 = vunpack.c.h.b16 %v471
        %v1155 = vunpack.c.l.b16 %v472
        %v1156 = vunpack.c.h.b16 %v472
        %v1157 = vunpack.c.l.b16 %v473
        %v1158 = vunpack.c.h.b16 %v473
        %v1159 = vunpack.c.l.b16 %v474
        %v1160 = vunpack.c.h.b16 %v474
        %v1161 = vunpack.c.l.b16 %v475
        %v1162 = vunpack.c.h.b16 %v475
        %v1163 = vunpack.c.l.b16 %v476
        %v1164 = vunpack.c.h.b16 %v476
        %v1165 = vunpack.c.l.b16 %v477
        %v1166 = vunpack.c.h.b16 %v477
        %v1167 = vunpack.c.l.b16 %v478
        %v1168 = vunpack.c.h.b16 %v478
        %v1169 = vunpack.c.l.b16 %v479
        %v1170 = vunpack.c.h.b16 %v479
        %v1171 = vunpack.c.l.b16 %v480
        %v1172 = vunpack.c.h.b16 %v480
        %v1173 = vunpack.c.l.b16 %v481
        %v1174 = vunpack.c.h.b16 %v481
        %v1175 = vunpack.c.l.b16 %v482
        %v1176 = vunpack.c.h.b16 %v482
        %v1177 = vunpack.c.l.b16 %v483
        %v1178 = vunpack.c.h.b16 %v483
        %v1179 = vunpack.c.l.b16 %v484
        %v1180 = vunpack.c.h.b16 %v484
        %v1181 = vunpack.c.l.b16 %v485
        %v1182 = vunpack.c.h.b16 %v485
        %v1183 = vunpack.c.l.b16 %v486
        %v1184 = vunpack.c.h.b16 %v486
        %v1185 = vunpack.c.l.b16 %v487
        %v1186 = vunpack.c.h.b16 %v487
        %v1187 = vunpack.c.l.b16 %v488
        %v1188 = vunpack.c.h.b16 %v488
        %v1189 = vunpack.c.l.b16 %v489
        %v1190 = vunpack.c.h.b16 %v489
        %v1191 = vunpack.c.l.b16 %v490
        %v1192 = vunpack.c.h.b16 %v490
        %v1193 = vunpack.c.l.b16 %v491
        %v1194 = vunpack.c.h.b16 %v491
        %v1195 = vunpack.c.l.b16 %v492
        %v1196 = vunpack.c.h.b16 %v492
        %v1197 = vunpack.c.l.b16 %v493
        %v1198 = vunpack.c.h.b16 %v493
        %v1199 = vunpack.c.l.b16 %v494
        %v1200 = vunpack.c.h.b16 %v494
        %v1201 = vunpack.c.l.b16 %v495
        %v1202 = vunpack.c.h.b16 %v495
        %v1203 = vunpack.c.l.b16 %v496
        %v1204 = vunpack.c.h.b16 %v496
        %v1205 = vunpack.c.l.b16 %v497
        %v1206 = vunpack.c.h.b16 %v497
        %v1207 = vunpack.c.l.b16 %v498
        %v1208 = vunpack.c.h.b16 %v498
        %v1209 = vunpack.c.l.b16 %v499
        %v1210 = vunpack.c.h.b16 %v499
        %v1211 = vunpack.c.l.b16 %v500
        %v1212 = vunpack.c.h.b16 %v500
        %v1213 = vunpack.c.l.b16 %v501
        %v1214 = vunpack.c.h.b16 %v501
        %v1215 = vunpack.c.l.b16 %v502
        %v1216 = vunpack.c.h.b16 %v502
        %v1217 = vunpack.c.l.b16 %v503
        %v1218 = vunpack.c.h.b16 %v503
        %v1219 = vunpack.c.l.b16 %v504
        %v1220 = vunpack.c.h.b16 %v504
        %v1221 = vunpack.c.l.b16 %v505
        %v1222 = vunpack.c.h.b16 %v505
        %v1223 = vunpack.c.l.b16 %v506
        %v1224 = vunpack.c.h.b16 %v506
        %v1225 = vunpack.c.l.b16 %v507
        %v1226 = vunpack.c.h.b16 %v507
        %v1227 = vunpack.c.l.b16 %v508
        %v1228 = vunpack.c.h.b16 %v508
        %v1229 = vunpack.c.l.b16 %v509
        %v1230 = vunpack.c.h.b16 %v509
        %v1231 = vunpack.c.l.b16 %v510
        %v1232 = vunpack.c.h.b16 %v510
        %v1233 = vunpack.c.l.b16 %v511
        %v1234 = vunpack.c.h.b16 %v511
        %v1235 = vunpack.c.l.b16 %v512
        %v1236 = vunpack.c.h.b16 %v512
        %v1237 = vunpack.c.l.b16 %v513
        %v1238 = vunpack.c.h.b16 %v513
        %v1239 = vunpack.c.l.b16 %v514
        %v1240 = vunpack.c.h.b16 %v514
        %v1241 = vunpack.c.l.b16 %v515
        %v1242 = vunpack.c.h.b16 %v515
        %v1243 = vunpack.c.l.b16 %v516
        %v1244 = vunpack.c.h.b16 %v516
        %v1245 = vunpack.c.l.b16 %v517
        %v1246 = vunpack.c.h.b16 %v517
        %v1247 = vunpack.c.l.b16 %v518
        %v1248 = vunpack.c.h.b16 %v518
        %v1249 = vunpack.c.l.b16 %v519
        %v1250 = vunpack.c.h.b16 %v519
        %v1251 = vunpack.c.l.b16 %v520
        %v1252 = vunpack.c.h.b16 %v520
        %v1253 = vunpack.c.l.b16 %v521
        %v1254 = vunpack.c.h.b16 %v521
        %v1255 = vunpack.c.l.b16 %v522
        %v1256 = vunpack.c.h.b16 %v522
        %v1257 = vunpack.c.l.b16 %v523
        %v1258 = vunpack.c.h.b16 %v523
        %v1259 = vunpack.c.l.b16 %v524
        %v1260 = vunpack.c.h.b16 %v524
        %v1261 = vunpack.c.l.b16 %v525
        %v1262 = vunpack.c.h.b16 %v525
        %v1263 = vunpack.c.l.b16 %v526
        %v1264 = vunpack.c.h.b16 %v526
        %v1265 = vunpack.c.l.b16 %v527
        %v1266 = vunpack.c.h.b16 %v527
        %v1267 = vunpack.c.l.b16 %v528
        %v1268 = vunpack.c.h.b16 %v528
        %v1269 = vunpack.c.l.b16 %v529
        %v1270 = vunpack.c.h.b16 %v529
        %v1271 = vunpack.c.l.b16 %v530
        %v1272 = vunpack.c.h.b16 %v530
        %v1273 = vunpack.c.l.b16 %v531
        %v1274 = vunpack.c.h.b16 %v531
        %v1275 = vunpack.c.l.b16 %v532
        %v1276 = vunpack.c.h.b16 %v532
        %v1277 = vunpack.c.l.b16 %v533
        %v1278 = vunpack.c.h.b16 %v533
        %v1279 = vunpack.c.l.b16 %v534
        %v1280 = vunpack.c.h.b16 %v534
        %v1281 = vunpack.c.l.b16 %v535
        %v1282 = vunpack.c.h.b16 %v535
        %v1283 = vunpack.c.l.b16 %v536
        %v1284 = vunpack.c.h.b16 %v536
        %v1285 = vunpack.c.l.b16 %v537
        %v1286 = vunpack.c.h.b16 %v537
        %v1287 = vunpack.c.l.b16 %v538
        %v1288 = vunpack.c.h.b16 %v538
        %v1289 = vunpack.c.l.b16 %v539
        %v1290 = vunpack.c.h.b16 %v539
        %v1291 = vunpack.c.l.b16 %v540
        %v1292 = vunpack.c.h.b16 %v540
        %v1293 = vunpack.c.l.b16 %v541
        %v1294 = vunpack.c.h.b16 %v541
        %v1295 = vunpack.c.l.b16 %v542
        %v1296 = vunpack.c.h.b16 %v542
        %v1297 = vunpack.c.l.b16 %v543
        %v1298 = vunpack.c.h.b16 %v543
        %v1299 = vunpack.c.l.b16 %v544
        %v1300 = vunpack.c.h.b16 %v544
        %v1301 = vunpack.c.l.b16 %v545
        %v1302 = vunpack.c.h.b16 %v545
        %v1303 = vunpack.c.l.b16 %v546
        %v1304 = vunpack.c.h.b16 %v546
        %v1305 = vunpack.c.l.b16 %v547
        %v1306 = vunpack.c.h.b16 %v547
        %v1307 = vunpack.c.l.b16 %v548
        %v1308 = vunpack.c.h.b16 %v548
        %v1309 = vunpack.c.l.b16 %v549
        %v1310 = vunpack.c.h.b16 %v549
        %v1311 = vunpack.c.l.b16 %v550
        %v1312 = vunpack.c.h.b16 %v550
        %v1313 = vunpack.c.l.b16 %v551
        %v1314 = vunpack.c.h.b16 %v551
        %v1315 = vunpack.c.l.b16 %v552
        %v1316 = vunpack.c.h.b16 %v552
        %v1317 = vunpack.c.l.b16 %v553
        %v1318 = vunpack.c.h.b16 %v553
        %v1319 = vunpack.c.l.b16 %v554
        %v1320 = vunpack.c.h.b16 %v554
        %v1321 = vunpack.c.l.b16 %v555
        %v1322 = vunpack.c.h.b16 %v555
        %v1323 = vunpack.c.l.b16 %v556
        %v1324 = vunpack.c.h.b16 %v556
        %v1325 = vunpack.c.l.b16 %v557
        %v1326 = vunpack.c.h.b16 %v557
        %v1327 = vunpack.c.l.b16 %v558
        %v1328 = vunpack.c.h.b16 %v558
        %v1329 = vunpack.c.l.b16 %v559
        %v1330 = vunpack.c.h.b16 %v559
        %v1331 = vunpack.c.l.b16 %v560
        %v1332 = vunpack.c.h.b16 %v560
        %v1333 = vunpack.c.l.b16 %v561
        %v1334 = vunpack.c.h.b16 %v561
        %v1335 = vunpack.c.l.b16 %v562
        %v1336 = vunpack.c.h.b16 %v562
        %v1337 = vunpack.c.l.b16 %v563
        %v1338 = vunpack.c.h.b16 %v563
        %v1339 = vunpack.c.l.b16 %v564
        %v1340 = vunpack.c.h.b16 %v564
        %v1341 = vunpack.c.l.b16 %v565
        %v1342 = vunpack.c.h.b16 %v565
        %v1343 = vunpack.c.l.b16 %v566
        %v1344 = vunpack.c.h.b16 %v566
        %v1345 = vunpack.c.l.b16 %v567
        %v1346 = vunpack.c.h.b16 %v567
        %v1347 = vunpack.c.l.b16 %v568
        %v1348 = vunpack.c.h.b16 %v568
        %v1349 = vunpack.c.l.b16 %v569
        %v1350 = vunpack.c.h.b16 %v569
        %v1351 = vunpack.c.l.b16 %v570
        %v1352 = vunpack.c.h.b16 %v570
        %v1353 = vunpack.c.l.b16 %v571
        %v1354 = vunpack.c.h.b16 %v571
        %v1355 = vunpack.c.l.b16 %v572
        %v1356 = vunpack.c.h.b16 %v572
        %v1357 = vunpack.c.l.b16 %v573
        %v1358 = vunpack.c.h.b16 %v573
        %v1359 = vunpack.c.l.b16 %v574
        %v1360 = vunpack.c.h.b16 %v574
        %v1361 = vunpack.c.l.b16 %v575
        %v1362 = vunpack.c.h.b16 %v575
        %v1363 = vunpack.c.l.b16 %v576
        %v1364 = vunpack.c.h.b16 %v576
        %v1365 = vunpack.c.l.b16 %v577
        %v1366 = vunpack.c.h.b16 %v577
        %v1367 = vunpack.c.l.b16 %v578
        %v1368 = vunpack.c.h.b16 %v578
        %v1369 = vunpack.c.l.b16 %v579
        %v1370 = vunpack.c.h.b16 %v579
        %v1371 = vunpack.c.l.b16 %v580
        %v1372 = vunpack.c.h.b16 %v580
        %v1373 = vunpack.c.l.b16 %v581
        %v1374 = vunpack.c.h.b16 %v581
        %v1375 = vunpack.c.l.b16 %v582
        %v1376 = vunpack.c.h.b16 %v582
        %v1377 = vunpack.c.l.b16 %v583
        %v1378 = vunpack.c.h.b16 %v583
        %v1379 = vunpack.c.l.b16 %v584
        %v1380 = vunpack.c.h.b16 %v584
        %v1381 = vunpack.c.l.b16 %v585
        %v1382 = vunpack.c.h.b16 %v585
        %v1383 = vunpack.c.l.b16 %v586
        %v1384 = vunpack.c.h.b16 %v586
        %v1385 = vunpack.c.l.b16 %v587
        %v1386 = vunpack.c.h.b16 %v587
        %v1387 = vunpack.c.l.b16 %v588
        %v1388 = vunpack.c.h.b16 %v588
        %v1389 = vunpack.c.l.b16 %v589
        %v1390 = vunpack.c.h.b16 %v589
        %v1391 = vunpack.c.l.b16 %v590
        %v1392 = vunpack.c.h.b16 %v590
        %v1393 = vunpack.c.l.b16 %v591
        %v1394 = vunpack.c.h.b16 %v591
        %v1395 = vunpack.c.l.b16 %v592
        %v1396 = vunpack.c.h.b16 %v592
        %v1397 = vunpack.c.l.b16 %v593
        %v1398 = vunpack.c.h.b16 %v593
        %v1399 = vunpack.c.l.b16 %v594
        %v1400 = vunpack.c.h.b16 %v594
        %v1401 = vunpack.c.l.b16 %v595
        %v1402 = vunpack.c.h.b16 %v595
        %v1403 = vunpack.c.l.b16 %v596
        %v1404 = vunpack.c.h.b16 %v596
        %v1405 = vunpack.c.l.b16 %v597
        %v1406 = vunpack.c.h.b16 %v597
        %v1407 = vunpack.c.l.b16 %v598
        %v1408 = vunpack.c.h.b16 %v598
        %v1409 = vunpack.c.l.b16 %v599
        %v1410 = vunpack.c.h.b16 %v599
        %v1411 = vunpack.c.l.b16 %v600
        %v1412 = vunpack.c.h.b16 %v600
        %v1413 = vunpack.c.l.b16 %v601
        %v1414 = vunpack.c.h.b16 %v601
        %v1415 = vunpack.c.l.b16 %v602
        %v1416 = vunpack.c.h.b16 %v602
        %v1417 = vunpack.c.l.b16 %v603
        %v1418 = vunpack.c.h.b16 %v603
        %v1419 = vunpack.c.l.b16 %v604
        %v1420 = vunpack.c.h.b16 %v604
        %v1421 = vunpack.c.l.b16 %v605
        %v1422 = vunpack.c.h.b16 %v605
        %v1423 = vunpack.c.l.b16 %v606
        %v1424 = vunpack.c.h.b16 %v606
        %v1425 = vunpack.c.l.b16 %v607
        %v1426 = vunpack.c.h.b16 %v607
        %v1427 = vunpack.c.l.b16 %v608
        %v1428 = vunpack.c.h.b16 %v608
        %v1429 = vunpack.c.l.b16 %v609
        %v1430 = vunpack.c.h.b16 %v609
        %v1431 = vunpack.c.l.b16 %v610
        %v1432 = vunpack.c.h.b16 %v610
        %v1433 = vunpack.c.l.b16 %v611
        %v1434 = vunpack.c.h.b16 %v611
        %v1435 = vunpack.c.l.b16 %v612
        %v1436 = vunpack.c.h.b16 %v612
        %v1437 = vunpack.c.l.b16 %v613
        %v1438 = vunpack.c.h.b16 %v613
        %v1439 = vunpack.c.l.b16 %v614
        %v1440 = vunpack.c.h.b16 %v614
        %v1441 = vunpack.c.l.b16 %v615
        %v1442 = vunpack.c.h.b16 %v615
        %v1443 = vpack.c.b16 %v935, %v931
        %v1444 = vpack.c.b16 %v936, %v932
        %v1445 = vpack.c.b16 %v937, %v933
        %v1446 = vpack.c.b16 %v938, %v934
        %v1447 = vpack.c.b16 %v943, %v939
        %v1448 = vpack.c.b16 %v944, %v940
        %v1449 = vpack.c.b16 %v945, %v941
        %v1450 = vpack.c.b16 %v946, %v942
        %v1451 = vpack.c.b16 %v951, %v947
        %v1452 = vpack.c.b16 %v952, %v948
        %v1453 = vpack.c.b16 %v953, %v949
        %v1454 = vpack.c.b16 %v954, %v950
        %v1455 = vpack.c.b16 %v959, %v955
        %v1456 = vpack.c.b16 %v960, %v956
        %v1457 = vpack.c.b16 %v961, %v957
        %v1458 = vpack.c.b16 %v962, %v958
        %v1459 = vpack.c.b16 %v967, %v963
        %v1460 = vpack.c.b16 %v968, %v964
        %v1461 = vpack.c.b16 %v969, %v965
        %v1462 = vpack.c.b16 %v970, %v966
        %v1463 = vpack.c.b16 %v975, %v971
        %v1464 = vpack.c.b16 %v976, %v972
        %v1465 = vpack.c.b16 %v977, %v973
        %v1466 = vpack.c.b16 %v978, %v974
        %v1467 = vpack.c.b16 %v983, %v979
        %v1468 = vpack.c.b16 %v984, %v980
        %v1469 = vpack.c.b16 %v985, %v981
        %v1470 = vpack.c.b16 %v986, %v982
        %v1471 = vpack.c.b16 %v991, %v987
        %v1472 = vpack.c.b16 %v992, %v988
        %v1473 = vpack.c.b16 %v993, %v989
        %v1474 = vpack.c.b16 %v994, %v990
        %v1475 = vpack.c.b16 %v999, %v995
        %v1476 = vpack.c.b16 %v1000, %v996
        %v1477 = vpack.c.b16 %v1001, %v997
        %v1478 = vpack.c.b16 %v1002, %v998
        %v1479 = vpack.c.b16 %v1007, %v1003
        %v1480 = vpack.c.b16 %v1008, %v1004
        %v1481 = vpack.c.b16 %v1009, %v1005
        %v1482 = vpack.c.b16 %v1010, %v1006
        %v1483 = vpack.c.b16 %v1015, %v1011
        %v1484 = vpack.c.b16 %v1016, %v1012
        %v1485 = vpack.c.b16 %v1017, %v1013
        %v1486 = vpack.c.b16 %v1018, %v1014
        %v1487 = vpack.c.b16 %v1023, %v1019
        %v1488 = vpack.c.b16 %v1024, %v1020
        %v1489 = vpack.c.b16 %v1025, %v1021
        %v1490 = vpack.c.b16 %v1026, %v1022
        %v1491 = vpack.c.b16 %v1031, %v1027
        %v1492 = vpack.c.b16 %v1032, %v1028
        %v1493 = vpack.c.b16 %v1033, %v1029
        %v1494 = vpack.c.b16 %v1034, %v1030
        %v1495 = vpack.c.b16 %v1039, %v1035
        %v1496 = vpack.c.b16 %v1040, %v1036
        %v1497 = vpack.c.b16 %v1041, %v1037
        %v1498 = vpack.c.b16 %v1042, %v1038
        %v1499 = vpack.c.b16 %v1047, %v1043
        %v1500 = vpack.c.b16 %v1048, %v1044
        %v1501 = vpack.c.b16 %v1049, %v1045
        %v1502 = vpack.c.b16 %v1050, %v1046
        %v1503 = vpack.c.b16 %v1055, %v1051
        %v1504 = vpack.c.b16 %v1056, %v1052
        %v1505 = vpack.c.b16 %v1057, %v1053
        %v1506 = vpack.c.b16 %v1058, %v1054
        %v1507 = vpack.c.b16 %v1063, %v1059
        %v1508 = vpack.c.b16 %v1064, %v1060
        %v1509 = vpack.c.b16 %v1065, %v1061
        %v1510 = vpack.c.b16 %v1066, %v1062
        %v1511 = vpack.c.b16 %v1071, %v1067
        %v1512 = vpack.c.b16 %v1072, %v1068
        %v1513 = vpack.c.b16 %v1073, %v1069
        %v1514 = vpack.c.b16 %v1074, %v1070
        %v1515 = vpack.c.b16 %v1079, %v1075
        %v1516 = vpack.c.b16 %v1080, %v1076
        %v1517 = vpack.c.b16 %v1081, %v1077
        %v1518 = vpack.c.b16 %v1082, %v1078
        %v1519 = vpack.c.b16 %v1087, %v1083
        %v1520 = vpack.c.b16 %v1088, %v1084
        %v1521 = vpack.c.b16 %v1089, %v1085
        %v1522 = vpack.c.b16 %v1090, %v1086
        %v1523 = vpack.c.b16 %v1095, %v1091
        %v1524 = vpack.c.b16 %v1096, %v1092
        %v1525 = vpack.c.b16 %v1097, %v1093
        %v1526 = vpack.c.b16 %v1098, %v1094
        %v1527 = vpack.c.b16 %v1103, %v1099
        %v1528 = vpack.c.b16 %v1104, %v1100
        %v1529 = vpack.c.b16 %v1105, %v1101
        %v1530 = vpack.c.b16 %v1106, %v1102
        %v1531 = vpack.c.b16 %v1111, %v1107
        %v1532 = vpack.c.b16 %v1112, %v1108
        %v1533 = vpack.c.b16 %v1113, %v1109
        %v1534 = vpack.c.b16 %v1114, %v1110
        %v1535 = vpack.c.b16 %v1119, %v1115
        %v1536 = vpack.c.b16 %v1120, %v1116
        %v1537 = vpack.c.b16 %v1121, %v1117
        %v1538 = vpack.c.b16 %v1122, %v1118
        %v1539 = vpack.c.b16 %v1127, %v1123
        %v1540 = vpack.c.b16 %v1128, %v1124
        %v1541 = vpack.c.b16 %v1129, %v1125
        %v1542 = vpack.c.b16 %v1130, %v1126
        %v1543 = vpack.c.b16 %v1135, %v1131
        %v1544 = vpack.c.b16 %v1136, %v1132
        %v1545 = vpack.c.b16 %v1137, %v1133
        %v1546 = vpack.c.b16 %v1138, %v1134
        %v1547 = vpack.c.b16 %v1143, %v1139
        %v1548 = vpack.c.b16 %v1144, %v1140
        %v1549 = vpack.c.b16 %v1145, %v1141
        %v1550 = vpack.c.b16 %v1146, %v1142
        %v1551 = vpack.c.b16 %v1151, %v1147
        %v1552 = vpack.c.b16 %v1152, %v1148
        %v1553 = vpack.c.b16 %v1153, %v1149
        %v1554 = vpack.c.b16 %v1154, %v1150
        %v1555 = vpack.c.b16 %v1159, %v1155
        %v1556 = vpack.c.b16 %v1160, %v1156
        %v1557 = vpack.c.b16 %v1161, %v1157
        %v1558 = vpack.c.b16 %v1162, %v1158
        %v1559 = vpack.c.b16 %v1167, %v1163
        %v1560 = vpack.c.b16 %v1168, %v1164
        %v1561 = vpack.c.b16 %v1169, %v1165
        %v1562 = vpack.c.b16 %v1170, %v1166
        %v1563 = vpack.c.b16 %v1175, %v1171
        %v1564 = vpack.c.b16 %v1176, %v1172
        %v1565 = vpack.c.b16 %v1177, %v1173
        %v1566 = vpack.c.b16 %v1178, %v1174
        %v1567 = vpack.c.b16 %v1183, %v1179
        %v1568 = vpack.c.b16 %v1184, %v1180
        %v1569 = vpack.c.b16 %v1185, %v1181
        %v1570 = vpack.c.b16 %v1186, %v1182
        %v1571 = vpack.c.b16 %v1191, %v1187
        %v1572 = vpack.c.b16 %v1192, %v1188
        %v1573 = vpack.c.b16 %v1193, %v1189
        %v1574 = vpack.c.b16 %v1194, %v1190
        %v1575 = vpack.c.b16 %v1199, %v1195
        %v1576 = vpack.c.b16 %v1200, %v1196
        %v1577 = vpack.c.b16 %v1201, %v1197
        %v1578 = vpack.c.b16 %v1202, %v1198
        %v1579 = vpack.c.b16 %v1207, %v1203
        %v1580 = vpack.c.b16 %v1208, %v1204
        %v1581 = vpack.c.b16 %v1209, %v1205
        %v1582 = vpack.c.b16 %v1210, %v1206
        %v1583 = vpack.c.b16 %v1215, %v1211
        %v1584 = vpack.c.b16 %v1216, %v1212
        %v1585 = vpack.c.b16 %v1217, %v1213
        %v1586 = vpack.c.b16 %v1218, %v1214
        %v1587 = vpack.c.b16 %v1223, %v1219
        %v1588 = vpack.c.b16 %v1224, %v1220
        %v1589 = vpack.c.b16 %v1225, %v1221
        %v1590 = vpack.c.b16 %v1226, %v1222
        %v1591 = vpack.c.b16 %v1231, %v1227
        %v1592 = vpack.c.b16 %v1232, %v1228
        %v1593 = vpack.c.b16 %v1233, %v1229
        %v1594 = vpack.c.b16 %v1234, %v1230
        %v1595 = vpack.c.b16 %v1239, %v1235
        %v1596 = vpack.c.b16 %v1240, %v1236
        %v1597 = vpack.c.b16 %v1241, %v1237
        %v1598 = vpack.c.b16 %v1242, %v1238
        %v1599 = vpack.c.b16 %v1247, %v1243
        %v1600 = vpack.c.b16 %v1248, %v1244
        %v1601 = vpack.c.b16 %v1249, %v1245
        %v1602 = vpack.c.b16 %v1250, %v1246
        %v1603 = vpack.c.b16 %v1255, %v1251
        %v1604 = vpack.c.b16 %v1256, %v1252
        %v1605 = vpack.c.b16 %v1257, %v1253
        %v1606 = vpack.c.b16 %v1258, %v1254
        %v1607 = vpack.c.b16 %v1263, %v1259
        %v1608 = vpack.c.b16 %v1264, %v1260
        %v1609 = vpack.c.b16 %v1265, %v1261
        %v1610 = vpack.c.b16 %v1266, %v1262
        %v1611 = vpack.c.b16 %v1271, %v1267
        %v1612 = vpack.c.b16 %v1272, %v1268
        %v1613 = vpack.c.b16 %v1273, %v1269
        %v1614 = vpack.c.b16 %v1274, %v1270
        %v1615 = vpack.c.b16 %v1279, %v1275
        %v1616 = vpack.c.b16 %v1280, %v1276
        %v1617 = vpack.c.b16 %v1281, %v1277
        %v1618 = vpack.c.b16 %v1282, %v1278
        %v1619 = vpack.c.b16 %v1287, %v1283
        %v1620 = vpack.c.b16 %v1288, %v1284
        %v1621 = vpack.c.b16 %v1289, %v1285
        %v1622 = vpack.c.b16 %v1290, %v1286
        %v1623 = vpack.c.b16 %v1295, %v1291
        %v1624 = vpack.c.b16 %v1296, %v1292
        %v1625 = vpack.c.b16 %v1297, %v1293
        %v1626 = vpack.c.b16 %v1298, %v1294
        %v1627 = vpack.c.b16 %v1303, %v1299
        %v1628 = vpack.c.b16 %v1304, %v1300
        %v1629 = vpack.c.b16 %v1305, %v1301
        %v1630 = vpack.c.b16 %v1306, %v1302
        %v1631 = vpack.c.b16 %v1311, %v1307
        %v1632 = vpack.c.b16 %v1312, %v1308
        %v1633 = vpack.c.b16 %v1313, %v1309
        %v1634 = vpack.c.b16 %v1314, %v1310
        %v1635 = vpack.c.b16 %v1319, %v1315
        %v1636 = vpack.c.b16 %v1320, %v1316
        %v1637 = vpack.c.b16 %v1321, %v1317
        %v1638 = vpack.c.b16 %v1322, %v1318
        %v1639 = vpack.c.b16 %v1327, %v1323
        %v1640 = vpack.c.b16 %v1328, %v1324
        %v1641 = vpack.c.b16 %v1329, %v1325
        %v1642 = vpack.c.b16 %v1330, %v1326
        %v1643 = vpack.c.b16 %v1335, %v1331
        %v1644 = vpack.c.b16 %v1336, %v1332
        %v1645 = vpack.c.b16 %v1337, %v1333
        %v1646 = vpack.c.b16 %v1338, %v1334
        %v1647 = vpack.c.b16 %v1343, %v1339
        %v1648 = vpack.c.b16 %v1344, %v1340
        %v1649 = vpack.c.b16 %v1345, %v1341
        %v1650 = vpack.c.b16 %v1346, %v1342
        %v1651 = vpack.c.b16 %v1351, %v1347
        %v1652 = vpack.c.b16 %v1352, %v1348
        %v1653 = vpack.c.b16 %v1353, %v1349
        %v1654 = vpack.c.b16 %v1354, %v1350
        %v1655 = vpack.c.b16 %v1359, %v1355
        %v1656 = vpack.c.b16 %v1360, %v1356
        %v1657 = vpack.c.b16 %v1361, %v1357
        %v1658 = vpack.c.b16 %v1362, %v1358
        %v1659 = vpack.c.b16 %v1367, %v1363
        %v1660 = vpack.c.b16 %v1368, %v1364
        %v1661 = vpack.c.b16 %v1369, %v1365
        %v1662 = vpack.c.b16 %v1370, %v1366
        %v1663 = vpack.c.b16 %v1375, %v1371
        %v1664 = vpack.c.b16 %v1376, %v1372
        %v1665 = vpack.c.b16 %v1377, %v1373
        %v1666 = vpack.c.b16 %v1378, %v1374
        %v1667 = vpack.c.b16 %v1383, %v1379
        %v1668 = vpack.c.b16 %v1384, %v1380
        %v1669 = vpack.c.b16 %v1385, %v1381
        %v1670 = vpack.c.b16 %v1386, %v1382
        %v1671 = vpack.c.b16 %v1391, %v1387
        %v1672 = vpack.c.b16 %v1392, %v1388
        %v1673 = vpack.c.b16 %v1393, %v1389
        %v1674 = vpack.c.b16 %v1394, %v1390
        %v1675 = vpack.c.b16 %v1399, %v1395
        %v1676 = vpack.c.b16 %v1400, %v1396
        %v1677 = vpack.c.b16 %v1401, %v1397
        %v1678 = vpack.c.b16 %v1402, %v1398
        %v1679 = vpack.c.b16 %v1407, %v1403
        %v1680 = vpack.c.b16 %v1408, %v1404
        %v1681 = vpack.c.b16 %v1409, %v1405
        %v1682 = vpack.c.b16 %v1410, %v1406
        %v1683 = vpack.c.b16 %v1415, %v1411
        %v1684 = vpack.c.b16 %v1416, %v1412
        %v1685 = vpack.c.b16 %v1417, %v1413
        %v1686 = vpack.c.b16 %v1418, %v1414
        %v1687 = vpack.c.b16 %v1423, %v1419
        %v1688 = vpack.c.b16 %v1424, %v1420
        %v1689 = vpack.c.b16 %v1425, %v1421
        %v1690 = vpack.c.b16 %v1426, %v1422
        %v1691 = vpack.c.b16 %v1431, %v1427
        %v1692 = vpack.c.b16 %v1432, %v1428
        %v1693 = vpack.c.b16 %v1433, %v1429
        %v1694 = vpack.c.b16 %v1434, %v1430
        %v1695 = vpack.c.b16 %v1439, %v1435
        %v1696 = vpack.c.b16 %v1440, %v1436
        %v1697 = vpack.c.b16 %v1441, %v1437
        %v1698 = vpack.c.b16 %v1442, %v1438
        %v1956 = vlaneseq
        %v1957 = vshrl.u32 %v1956, 7
        %v1958 = vsub.s32 0, %v1957
        %v1959 = vrot.slane %v616, %v1958
        %v1960 = vlaneseq
        %v1961 = vshrl.u32 %v1960, 7
        %v1962 = vsub.s32 1, %v1961
        %v1963 = vrot.slane %v616, %v1962
        %v1964 = vlaneseq
        %v1965 = vshrl.u32 %v1964, 7
        %v1966 = vsub.s32 2, %v1965
        %v1967 = vrot.slane %v616, %v1966
        %v1968 = vlaneseq
        %v1969 = vshrl.u32 %v1968, 7
        %v1970 = vsub.s32 3, %v1969
        %v1971 = vrot.slane %v616, %v1970
        %1976 = vmatprep.subr.bf16.mxu0 %v1444
        %1977 = vmatpush1.bf16.msra.mxu0 %v1443
        %1978 = vmatprep.subr.bf16.mxu0 %v1448
        %1979 = vmatpush1.bf16.msra.mxu0 %v1447
        %1980 = vmatprep.subr.bf16.mxu0 %v1452
        %1981 = vmatpush1.bf16.msra.mxu0 %v1451
        %1982 = vmatprep.subr.bf16.mxu0 %v1456
        %1983 = vmatpush1.bf16.msra.mxu0 %v1455
        %1984 = vmatprep.subr.bf16.mxu0 %v1460
        %1985 = vmatpush1.bf16.msra.mxu0 %v1459
        %1986 = vmatprep.subr.bf16.mxu0 %v1464
        %1987 = vmatpush1.bf16.msra.mxu0 %v1463
        %1988 = vmatprep.subr.bf16.mxu0 %v1468
        %1989 = vmatpush1.bf16.msra.mxu0 %v1467
        %1990 = vmatprep.subr.bf16.mxu0 %v1472
        %1991 = vmatpush1.bf16.msra.mxu0 %v1471
        %1992 = vmatprep.subr.bf16.mxu0 %v1476
        %1993 = vmatpush1.bf16.msra.mxu0 %v1475
        %1994 = vmatprep.subr.bf16.mxu0 %v1480
        %1995 = vmatpush1.bf16.msra.mxu0 %v1479
        %1996 = vmatprep.subr.bf16.mxu0 %v1484
        %1997 = vmatpush1.bf16.msra.mxu0 %v1483
        %1998 = vmatprep.subr.bf16.mxu0 %v1488
        %1999 = vmatpush1.bf16.msra.mxu0 %v1487
        %2000 = vmatprep.subr.bf16.mxu0 %v1492
        %2001 = vmatpush1.bf16.msra.mxu0 %v1491
        %2002 = vmatprep.subr.bf16.mxu0 %v1496
        %2003 = vmatpush1.bf16.msra.mxu0 %v1495
        %2004 = vmatprep.subr.bf16.mxu0 %v1500
        %2005 = vmatpush1.bf16.msra.mxu0 %v1499
        %2006 = vmatprep.subr.bf16.mxu0 %v1504
        %2007 = vmatpush1.bf16.msra.mxu0 %v1503
        %2008 = vmatprep.mubr.bf16.mxu0 %v655
        %2009 = vmatmul.mubr.bf16.gmra.mrb[0].mxu0 %v641
        %v2010 = vpop.f32.mrb[0].mxu0
        %v2011 = vadd.f32 %v1959, %v2010
        %v2012 = vpop.f32.mrb[0].mxu0
        %v2013 = vadd.f32 %v1963, %v2012
        %v2014 = vpop.f32.mrb[0].mxu0
        %v2015 = vpop.f32.mrb[0].mxu0
        %2016 = vdwg.mxu0
        %2017 = vmatprep.subr.bf16.mxu0 %v1508
        %2018 = vmatpush1.bf16.msra.mxu0 %v1507
        %2019 = vmatprep.subr.bf16.mxu0 %v1512
        %2020 = vmatpush1.bf16.msra.mxu0 %v1511
        %2021 = vmatprep.subr.bf16.mxu0 %v1516
        %2022 = vmatpush1.bf16.msra.mxu0 %v1515
        %2023 = vmatprep.subr.bf16.mxu0 %v1520
        %2024 = vmatpush1.bf16.msra.mxu0 %v1519
        %2025 = vmatprep.subr.bf16.mxu0 %v1524
        %2026 = vmatpush1.bf16.msra.mxu0 %v1523
        %2027 = vmatprep.subr.bf16.mxu0 %v1528
        %2028 = vmatpush1.bf16.msra.mxu0 %v1527
        %2029 = vmatprep.subr.bf16.mxu0 %v1532
        %2030 = vmatpush1.bf16.msra.mxu0 %v1531
        %2031 = vmatprep.subr.bf16.mxu0 %v1536
        %2032 = vmatpush1.bf16.msra.mxu0 %v1535
        %2033 = vmatprep.subr.bf16.mxu0 %v1540
        %2034 = vmatpush1.bf16.msra.mxu0 %v1539
        %2035 = vmatprep.subr.bf16.mxu0 %v1544
        %2036 = vmatpush1.bf16.msra.mxu0 %v1543
        %2037 = vmatprep.subr.bf16.mxu0 %v1548
        %2038 = vmatpush1.bf16.msra.mxu0 %v1547
        %2039 = vmatprep.subr.bf16.mxu0 %v1552
        %2040 = vmatpush1.bf16.msra.mxu0 %v1551
        %2041 = vmatprep.subr.bf16.mxu0 %v1556
        %2042 = vmatpush1.bf16.msra.mxu0 %v1555
        %2043 = vmatprep.subr.bf16.mxu0 %v1560
        %2044 = vmatpush1.bf16.msra.mxu0 %v1559
        %2045 = vmatprep.subr.bf16.mxu0 %v1564
        %2046 = vmatpush1.bf16.msra.mxu0 %v1563
        %2047 = vmatprep.subr.bf16.mxu0 %v1568
        %2048 = vmatpush1.bf16.msra.mxu0 %v1567
        %2049 = vmatprep.mubr.bf16.mxu0 %v665
        %2050 = vmatmul.mubr.bf16.gmra.mrb[0].mxu0 %v663
        %v2051 = vpop.f32.mrb[0].mxu0
        %v2052 = vadd.f32 %v2011, %v2051
        %v2053 = vpop.f32.mrb[0].mxu0
        %v2054 = vadd.f32 %v2013, %v2053
        %v2055 = vpop.f32.mrb[0].mxu0
        %v2056 = vpop.f32.mrb[0].mxu0
        %2057 = vdwg.mxu0
        %2058 = vmatprep.subr.bf16.mxu0 %v1572
        %2059 = vmatpush1.bf16.msra.mxu0 %v1571
        %2060 = vmatprep.subr.bf16.mxu0 %v1576
        %2061 = vmatpush1.bf16.msra.mxu0 %v1575
        %2062 = vmatprep.subr.bf16.mxu0 %v1580
        %2063 = vmatpush1.bf16.msra.mxu0 %v1579
        %2064 = vmatprep.subr.bf16.mxu0 %v1584
        %2065 = vmatpush1.bf16.msra.mxu0 %v1583
        %2066 = vmatprep.subr.bf16.mxu0 %v1588
        %2067 = vmatpush1.bf16.msra.mxu0 %v1587
        %2068 = vmatprep.subr.bf16.mxu0 %v1592
        %2069 = vmatpush1.bf16.msra.mxu0 %v1591
        %2070 = vmatprep.subr.bf16.mxu0 %v1596
        %2071 = vmatpush1.bf16.msra.mxu0 %v1595
        %2072 = vmatprep.subr.bf16.mxu0 %v1600
        %2073 = vmatpush1.bf16.msra.mxu0 %v1599
        %2074 = vmatprep.subr.bf16.mxu0 %v1604
        %2075 = vmatpush1.bf16.msra.mxu0 %v1603
        %2076 = vmatprep.subr.bf16.mxu0 %v1608
        %2077 = vmatpush1.bf16.msra.mxu0 %v1607
        %2078 = vmatprep.subr.bf16.mxu0 %v1612
        %2079 = vmatpush1.bf16.msra.mxu0 %v1611
        %2080 = vmatprep.subr.bf16.mxu0 %v1616
        %2081 = vmatpush1.bf16.msra.mxu0 %v1615
        %2082 = vmatprep.subr.bf16.mxu0 %v1620
        %2083 = vmatpush1.bf16.msra.mxu0 %v1619
        %2084 = vmatprep.subr.bf16.mxu0 %v1624
        %2085 = vmatpush1.bf16.msra.mxu0 %v1623
        %2086 = vmatprep.subr.bf16.mxu0 %v1628
        %2087 = vmatpush1.bf16.msra.mxu0 %v1627
        %2088 = vmatprep.subr.bf16.mxu0 %v1632
        %2089 = vmatpush1.bf16.msra.mxu0 %v1631
        %2090 = vmatprep.mubr.bf16.mxu0 %v662
        %2091 = vmatmul.mubr.bf16.gmra.mrb[0].mxu0 %v648
        %v2092 = vpop.f32.mrb[0].mxu0
        %v2093 = vadd.f32 %v2052, %v2092
        %v2094 = vpop.f32.mrb[0].mxu0
        %v2095 = vadd.f32 %v2054, %v2094
        %v2096 = vpop.f32.mrb[0].mxu0
        %v2097 = vpop.f32.mrb[0].mxu0
        %2098 = vdwg.mxu0
        %2099 = vmatprep.subr.bf16.mxu0 %v1636
        %2100 = vmatpush1.bf16.msra.mxu0 %v1635
        %2101 = vmatprep.subr.bf16.mxu0 %v1640
        %2102 = vmatpush1.bf16.msra.mxu0 %v1639
        %2103 = vmatprep.subr.bf16.mxu0 %v1644
        %2104 = vmatpush1.bf16.msra.mxu0 %v1643
        %2105 = vmatprep.subr.bf16.mxu0 %v1648
        %2106 = vmatpush1.bf16.msra.mxu0 %v1647
        %2107 = vmatprep.subr.bf16.mxu0 %v1652
        %2108 = vmatpush1.bf16.msra.mxu0 %v1651
        %2109 = vmatprep.subr.bf16.mxu0 %v1656
        %2110 = vmatpush1.bf16.msra.mxu0 %v1655
        %2111 = vmatprep.subr.bf16.mxu0 %v1660
        %2112 = vmatpush1.bf16.msra.mxu0 %v1659
        %2113 = vmatprep.subr.bf16.mxu0 %v1664
        %2114 = vmatpush1.bf16.msra.mxu0 %v1663
        %2115 = vmatprep.subr.bf16.mxu0 %v1668
        %2116 = vmatpush1.bf16.msra.mxu0 %v1667
        %2117 = vmatprep.subr.bf16.mxu0 %v1672
        %2118 = vmatpush1.bf16.msra.mxu0 %v1671
        %2119 = vmatprep.subr.bf16.mxu0 %v1676
        %2120 = vmatpush1.bf16.msra.mxu0 %v1675
        %2121 = vmatprep.subr.bf16.mxu0 %v1680
        %2122 = vmatpush1.bf16.msra.mxu0 %v1679
        %2123 = vmatprep.subr.bf16.mxu0 %v1684
        %2124 = vmatpush1.bf16.msra.mxu0 %v1683
        %2125 = vmatprep.subr.bf16.mxu0 %v1688
        %2126 = vmatpush1.bf16.msra.mxu0 %v1687
        %2127 = vmatprep.subr.bf16.mxu0 %v1692
        %2128 = vmatpush1.bf16.msra.mxu0 %v1691
        %2129 = vmatprep.subr.bf16.mxu0 %v1696
        %2130 = vmatpush1.bf16.msra.mxu0 %v1695
        %2131 = vmatprep.mubr.bf16.mxu0 %v666
        %2132 = vmatmul.mubr.bf16.gmra.mrb[0].mxu0 %v664
        %v2133 = vpop.f32.mrb[0].mxu0
        %v2134 = vadd.f32 %v2093, %v2133
        %v2135 = vpop.f32.mrb[0].mxu0
        %v2136 = vadd.f32 %v2095, %v2135
        %v2137 = vpop.f32.mrb[0].mxu0
        %v2138 = vpop.f32.mrb[0].mxu0
        %2139 = vdwg.mxu0
        %2140 = vmatprep.subr.bf16.mxu0 %v1446
        %2141 = vmatpush1.bf16.msra.mxu0 %v1445
        %2142 = vmatprep.subr.bf16.mxu0 %v1450
        %2143 = vmatpush1.bf16.msra.mxu0 %v1449
        %2144 = vmatprep.subr.bf16.mxu0 %v1454
        %2145 = vmatpush1.bf16.msra.mxu0 %v1453
        %2146 = vmatprep.subr.bf16.mxu0 %v1458
        %2147 = vmatpush1.bf16.msra.mxu0 %v1457
        %2148 = vmatprep.subr.bf16.mxu0 %v1462
        %2149 = vmatpush1.bf16.msra.mxu0 %v1461
        %2150 = vmatprep.subr.bf16.mxu0 %v1466
        %2151 = vmatpush1.bf16.msra.mxu0 %v1465
        %2152 = vmatprep.subr.bf16.mxu0 %v1470
        %2153 = vmatpush1.bf16.msra.mxu0 %v1469
        %2154 = vmatprep.subr.bf16.mxu0 %v1474
        %2155 = vmatpush1.bf16.msra.mxu0 %v1473
        %2156 = vmatprep.subr.bf16.mxu0 %v1478
        %2157 = vmatpush1.bf16.msra.mxu0 %v1477
        %2158 = vmatprep.subr.bf16.mxu0 %v1482
        %2159 = vmatpush1.bf16.msra.mxu0 %v1481
        %2160 = vmatprep.subr.bf16.mxu0 %v1486
        %2161 = vmatpush1.bf16.msra.mxu0 %v1485
        %2162 = vmatprep.subr.bf16.mxu0 %v1490
        %2163 = vmatpush1.bf16.msra.mxu0 %v1489
        %2164 = vmatprep.subr.bf16.mxu0 %v1494
        %2165 = vmatpush1.bf16.msra.mxu0 %v1493
        %2166 = vmatprep.subr.bf16.mxu0 %v1498
        %2167 = vmatpush1.bf16.msra.mxu0 %v1497
        %2168 = vmatprep.subr.bf16.mxu0 %v1502
        %2169 = vmatpush1.bf16.msra.mxu0 %v1501
        %2170 = vmatprep.subr.bf16.mxu0 %v1506
        %2171 = vmatpush1.bf16.msra.mxu0 %v1505
        %2172 = vmatprep.mubr.bf16.mxu0 %v655
        %2173 = vmatmul.mubr.bf16.gmra.mrb[0].mxu0 %v641
        %v2174 = vpop.f32.mrb[0].mxu0
        %v2175 = vadd.f32 %v1967, %v2174
        %v2176 = vpop.f32.mrb[0].mxu0
        %v2177 = vadd.f32 %v1971, %v2176
        %v2178 = vpop.f32.mrb[0].mxu0
        %v2179 = vpop.f32.mrb[0].mxu0
        %2180 = vdwg.mxu0
        %2181 = vmatprep.subr.bf16.mxu0 %v1510
        %2182 = vmatpush1.bf16.msra.mxu0 %v1509
        %2183 = vmatprep.subr.bf16.mxu0 %v1514
        %2184 = vmatpush1.bf16.msra.mxu0 %v1513
        %2185 = vmatprep.subr.bf16.mxu0 %v1518
        %2186 = vmatpush1.bf16.msra.mxu0 %v1517
        %2187 = vmatprep.subr.bf16.mxu0 %v1522
        %2188 = vmatpush1.bf16.msra.mxu0 %v1521
        %2189 = vmatprep.subr.bf16.mxu0 %v1526
        %2190 = vmatpush1.bf16.msra.mxu0 %v1525
        %2191 = vmatprep.subr.bf16.mxu0 %v1530
        %2192 = vmatpush1.bf16.msra.mxu0 %v1529
        %2193 = vmatprep.subr.bf16.mxu0 %v1534
        %2194 = vmatpush1.bf16.msra.mxu0 %v1533
        %2195 = vmatprep.subr.bf16.mxu0 %v1538
        %2196 = vmatpush1.bf16.msra.mxu0 %v1537
        %2197 = vmatprep.subr.bf16.mxu0 %v1542
        %2198 = vmatpush1.bf16.msra.mxu0 %v1541
        %2199 = vmatprep.subr.bf16.mxu0 %v1546
        %2200 = vmatpush1.bf16.msra.mxu0 %v1545
        %2201 = vmatprep.subr.bf16.mxu0 %v1550
        %2202 = vmatpush1.bf16.msra.mxu0 %v1549
        %2203 = vmatprep.subr.bf16.mxu0 %v1554
        %2204 = vmatpush1.bf16.msra.mxu0 %v1553
        %2205 = vmatprep.subr.bf16.mxu0 %v1558
        %2206 = vmatpush1.bf16.msra.mxu0 %v1557
        %2207 = vmatprep.subr.bf16.mxu0 %v1562
        %2208 = vmatpush1.bf16.msra.mxu0 %v1561
        %2209 = vmatprep.subr.bf16.mxu0 %v1566
        %2210 = vmatpush1.bf16.msra.mxu0 %v1565
        %2211 = vmatprep.subr.bf16.mxu0 %v1570
        %2212 = vmatpush1.bf16.msra.mxu0 %v1569
        %2213 = vmatprep.mubr.bf16.mxu0 %v665
        %2214 = vmatmul.mubr.bf16.gmra.mrb[0].mxu0 %v663
        %v2215 = vpop.f32.mrb[0].mxu0
        %v2216 = vadd.f32 %v2175, %v2215
        %v2217 = vpop.f32.mrb[0].mxu0
        %v2218 = vadd.f32 %v2177, %v2217
        %v2219 = vpop.f32.mrb[0].mxu0
        %v2220 = vpop.f32.mrb[0].mxu0
        %2221 = vdwg.mxu0
        %2222 = vmatprep.subr.bf16.mxu0 %v1574
        %2223 = vmatpush1.bf16.msra.mxu0 %v1573
        %2224 = vmatprep.subr.bf16.mxu0 %v1578
        %2225 = vmatpush1.bf16.msra.mxu0 %v1577
        %2226 = vmatprep.subr.bf16.mxu0 %v1582
        %2227 = vmatpush1.bf16.msra.mxu0 %v1581
        %2228 = vmatprep.subr.bf16.mxu0 %v1586
        %2229 = vmatpush1.bf16.msra.mxu0 %v1585
        %2230 = vmatprep.subr.bf16.mxu0 %v1590
        %2231 = vmatpush1.bf16.msra.mxu0 %v1589
        %2232 = vmatprep.subr.bf16.mxu0 %v1594
        %2233 = vmatpush1.bf16.msra.mxu0 %v1593
        %2234 = vmatprep.subr.bf16.mxu0 %v1598
        %2235 = vmatpush1.bf16.msra.mxu0 %v1597
        %2236 = vmatprep.subr.bf16.mxu0 %v1602
        %2237 = vmatpush1.bf16.msra.mxu0 %v1601
        %2238 = vmatprep.subr.bf16.mxu0 %v1606
        %2239 = vmatpush1.bf16.msra.mxu0 %v1605
        %2240 = vmatprep.subr.bf16.mxu0 %v1610
        %2241 = vmatpush1.bf16.msra.mxu0 %v1609
        %2242 = vmatprep.subr.bf16.mxu0 %v1614
        %2243 = vmatpush1.bf16.msra.mxu0 %v1613
        %2244 = vmatprep.subr.bf16.mxu0 %v1618
        %2245 = vmatpush1.bf16.msra.mxu0 %v1617
        %2246 = vmatprep.subr.bf16.mxu0 %v1622
        %2247 = vmatpush1.bf16.msra.mxu0 %v1621
        %2248 = vmatprep.subr.bf16.mxu0 %v1626
        %2249 = vmatpush1.bf16.msra.mxu0 %v1625
        %2250 = vmatprep.subr.bf16.mxu0 %v1630
        %2251 = vmatpush1.bf16.msra.mxu0 %v1629
        %2252 = vmatprep.subr.bf16.mxu0 %v1634
        %2253 = vmatpush1.bf16.msra.mxu0 %v1633
        %2254 = vmatprep.mubr.bf16.mxu0 %v662
        %2255 = vmatmul.mubr.bf16.gmra.mrb[0].mxu0 %v648
        %v2256 = vpop.f32.mrb[0].mxu0
        %v2257 = vadd.f32 %v2216, %v2256
        %v2258 = vpop.f32.mrb[0].mxu0
        %v2259 = vadd.f32 %v2218, %v2258
        %v2260 = vpop.f32.mrb[0].mxu0
        %v2261 = vpop.f32.mrb[0].mxu0
        %2262 = vdwg.mxu0
        %2263 = vmatprep.subr.bf16.mxu0 %v1638
        %2264 = vmatpush1.bf16.msra.mxu0 %v1637
        %2265 = vmatprep.subr.bf16.mxu0 %v1642
        %2266 = vmatpush1.bf16.msra.mxu0 %v1641
        %2267 = vmatprep.subr.bf16.mxu0 %v1646
        %2268 = vmatpush1.bf16.msra.mxu0 %v1645
        %2269 = vmatprep.subr.bf16.mxu0 %v1650
        %2270 = vmatpush1.bf16.msra.mxu0 %v1649
        %2271 = vmatprep.subr.bf16.mxu0 %v1654
        %2272 = vmatpush1.bf16.msra.mxu0 %v1653
        %2273 = vmatprep.subr.bf16.mxu0 %v1658
        %2274 = vmatpush1.bf16.msra.mxu0 %v1657
        %2275 = vmatprep.subr.bf16.mxu0 %v1662
        %2276 = vmatpush1.bf16.msra.mxu0 %v1661
        %2277 = vmatprep.subr.bf16.mxu0 %v1666
        %2278 = vmatpush1.bf16.msra.mxu0 %v1665
        %2279 = vmatprep.subr.bf16.mxu0 %v1670
        %2280 = vmatpush1.bf16.msra.mxu0 %v1669
        %2281 = vmatprep.subr.bf16.mxu0 %v1674
        %2282 = vmatpush1.bf16.msra.mxu0 %v1673
        %2283 = vmatprep.subr.bf16.mxu0 %v1678
        %2284 = vmatpush1.bf16.msra.mxu0 %v1677
        %2285 = vmatprep.subr.bf16.mxu0 %v1682
        %2286 = vmatpush1.bf16.msra.mxu0 %v1681
        %2287 = vmatprep.subr.bf16.mxu0 %v1686
        %2288 = vmatpush1.bf16.msra.mxu0 %v1685
        %2289 = vmatprep.subr.bf16.mxu0 %v1690
        %2290 = vmatpush1.bf16.msra.mxu0 %v1689
        %2291 = vmatprep.subr.bf16.mxu0 %v1694
        %2292 = vmatpush1.bf16.msra.mxu0 %v1693
        %2293 = vmatprep.subr.bf16.mxu0 %v1698
        %2294 = vmatpush1.bf16.msra.mxu0 %v1697
        %2295 = vmatprep.mubr.bf16.mxu0 %v666
        %2296 = vmatmul.mubr.bf16.gmra.mrb[0].mxu0 %v664
        %v2297 = vpop.f32.mrb[0].mxu0
        %v2298 = vadd.f32 %v2257, %v2297
        %v2299 = vpop.f32.mrb[0].mxu0
        %v2300 = vadd.f32 %v2259, %v2299
        %v2301 = vpop.f32.mrb[0].mxu0
        %v2302 = vpop.f32.mrb[0].mxu0
        %2303 = vdwg.mxu0
        %v2304 = vmax.f32 %v2134, 0.0
        %v2305 = vmax.f32 %v2136, 0.0
        %v2306 = vmax.f32 %v2298, 0.0
        %v2307 = vmax.f32 %v2300, 0.0
        %v2308 = vpack.c.bf16 %v2304, %v2304
        %v2309 = vpack.c.bf16 %v2305, %v2305
        %v2310 = vpack.c.bf16 %v2306, %v2306
        %v2311 = vpack.c.bf16 %v2307, %v2307
        %v2312 = vld [vmem:[%s3] sm:$0xf]
        %v2313 = vld [vmem:[%s3 + $0x4] sm:$0xf]
        %v2314 = vld [vmem:[%s3 + $0x8] sm:$0xf]
        %v2315 = vld [vmem:[%s3 + $0xc] sm:$0xf]
        %v2316 = vld [vmem:[%s3 + $0x10] sm:$0xf]
        %v2317 = vld [vmem:[%s3 + $0x14] sm:$0xf]
        %v2318 = vld [vmem:[%s3 + $0x18] sm:$0xf]
        %v2319 = vld [vmem:[%s3 + $0x1c] sm:$0xf]
        %v2320 = vld [vmem:[%s3 + $0x20] sm:$0xf]
        %v2321 = vld [vmem:[%s3 + $0x24] sm:$0xf]
        %v2322 = vld [vmem:[%s3 + $0x28] sm:$0xf]
        %v2323 = vld [vmem:[%s3 + $0x2c] sm:$0xf]
        %v2324 = vld [vmem:[%s3 + $0x30] sm:$0xf]
        %v2325 = vld [vmem:[%s3 + $0x34] sm:$0xf]
        %v2326 = vld [vmem:[%s3 + $0x38] sm:$0xf]
        %v2327 = vld [vmem:[%s3 + $0x3c] sm:$0xf]
        %v2328 = vld [vmem:[%s3 + $0x40] sm:$0xf]
        %v2329 = vld [vmem:[%s3 + $0x44] sm:$0xf]
        %v2330 = vld [vmem:[%s3 + $0x48] sm:$0xf]
        %v2331 = vld [vmem:[%s3 + $0x4c] sm:$0xf]
        %v2332 = vld [vmem:[%s3 + $0x50] sm:$0xf]
        %v2333 = vld [vmem:[%s3 + $0x54] sm:$0xf]
        %v2334 = vld [vmem:[%s3 + $0x58] sm:$0xf]
        %v2335 = vld [vmem:[%s3 + $0x5c] sm:$0xf]
        %v2336 = vld [vmem:[%s3 + $0x60] sm:$0xf]
        %v2337 = vld [vmem:[%s3 + $0x64] sm:$0xf]
        %v2338 = vld [vmem:[%s3 + $0x68] sm:$0xf]
        %v2339 = vld [vmem:[%s3 + $0x6c] sm:$0xf]
        %v2340 = vld [vmem:[%s3 + $0x70] sm:$0xf]
        %v2341 = vld [vmem:[%s3 + $0x74] sm:$0xf]
        %v2342 = vld [vmem:[%s3 + $0x78] sm:$0xf]
        %v2343 = vld [vmem:[%s3 + $0x7c] sm:$0xf]
        %v2344 = vld [vmem:[%s3 + $0x80] sm:$0xf]
        %v2345 = vld [vmem:[%s3 + $0x84] sm:$0xf]
        %v2346 = vld [vmem:[%s3 + $0x88] sm:$0xf]
        %v2347 = vld [vmem:[%s3 + $0x8c] sm:$0xf]
        %v2348 = vld [vmem:[%s3 + $0x90] sm:$0xf]
        %v2349 = vld [vmem:[%s3 + $0x94] sm:$0xf]
        %v2350 = vld [vmem:[%s3 + $0x98] sm:$0xf]
        %v2351 = vld [vmem:[%s3 + $0x9c] sm:$0xf]
        %v2352 = vld [vmem:[%s3 + $0xa0] sm:$0xf]
        %v2353 = vld [vmem:[%s3 + $0xa4] sm:$0xf]
        %v2354 = vld [vmem:[%s3 + $0xa8] sm:$0xf]
        %v2355 = vld [vmem:[%s3 + $0xac] sm:$0xf]
        %v2356 = vld [vmem:[%s3 + $0xb0] sm:$0xf]
        %v2357 = vld [vmem:[%s3 + $0xb4] sm:$0xf]
        %v2358 = vld [vmem:[%s3 + $0xb8] sm:$0xf]
        %v2359 = vld [vmem:[%s3 + $0xbc] sm:$0xf]
        %v2360 = vld [vmem:[%s3 + $0xc0] sm:$0xf]
        %v2361 = vld [vmem:[%s3 + $0xc4] sm:$0xf]
        %v2362 = vld [vmem:[%s3 + $0xc8] sm:$0xf]
        %v2363 = vld [vmem:[%s3 + $0xcc] sm:$0xf]
        %v2364 = vld [vmem:[%s3 + $0xd0] sm:$0xf]
        %v2365 = vld [vmem:[%s3 + $0xd4] sm:$0xf]
        %v2366 = vld [vmem:[%s3 + $0xd8] sm:$0xf]
        %v2367 = vld [vmem:[%s3 + $0xdc] sm:$0xf]
        %v2368 = vld [vmem:[%s3 + $0xe0] sm:$0xf]
        %v2369 = vld [vmem:[%s3 + $0xe4] sm:$0xf]
        %v2370 = vld [vmem:[%s3 + $0xe8] sm:$0xf]
        %v2371 = vld [vmem:[%s3 + $0xec] sm:$0xf]
        %v2372 = vld [vmem:[%s3 + $0xf0] sm:$0xf]
        %v2373 = vld [vmem:[%s3 + $0xf4] sm:$0xf]
        %v2374 = vld [vmem:[%s3 + $0xf8] sm:$0xf]
        %v2375 = vld [vmem:[%s3 + $0xfc] sm:$0xf]
        %v2376 = vld [vmem:[%s4] sm:$0x1]
        %v2441 = vunpack.c.l.b16 %v2312
        %v2442 = vunpack.c.l.b16 %v2313
        %v2443 = vunpack.c.l.b16 %v2314
        %v2444 = vunpack.c.l.b16 %v2315
        %v2445 = vunpack.c.l.b16 %v2316
        %v2446 = vunpack.c.l.b16 %v2317
        %v2447 = vunpack.c.l.b16 %v2318
        %v2448 = vunpack.c.l.b16 %v2319
        %v2449 = vunpack.c.l.b16 %v2320
        %v2450 = vunpack.c.l.b16 %v2321
        %v2451 = vunpack.c.l.b16 %v2322
        %v2452 = vunpack.c.l.b16 %v2323
        %v2453 = vunpack.c.l.b16 %v2324
        %v2454 = vunpack.c.l.b16 %v2325
        %v2455 = vunpack.c.l.b16 %v2326
        %v2456 = vunpack.c.l.b16 %v2327
        %v2457 = vunpack.c.l.b16 %v2328
        %v2458 = vunpack.c.l.b16 %v2329
        %v2459 = vunpack.c.l.b16 %v2330
        %v2460 = vunpack.c.l.b16 %v2331
        %v2461 = vunpack.c.l.b16 %v2332
        %v2462 = vunpack.c.l.b16 %v2333
        %v2463 = vunpack.c.l.b16 %v2334
        %v2464 = vunpack.c.l.b16 %v2335
        %v2465 = vunpack.c.l.b16 %v2336
        %v2466 = vunpack.c.l.b16 %v2337
        %v2467 = vunpack.c.l.b16 %v2338
        %v2468 = vunpack.c.l.b16 %v2339
        %v2469 = vunpack.c.l.b16 %v2340
        %v2470 = vunpack.c.l.b16 %v2341
        %v2471 = vunpack.c.l.b16 %v2342
        %v2472 = vunpack.c.l.b16 %v2343
        %v2473 = vunpack.c.l.b16 %v2344
        %v2474 = vunpack.c.l.b16 %v2345
        %v2475 = vunpack.c.l.b16 %v2346
        %v2476 = vunpack.c.l.b16 %v2347
        %v2477 = vunpack.c.l.b16 %v2348
        %v2478 = vunpack.c.l.b16 %v2349
        %v2479 = vunpack.c.l.b16 %v2350
        %v2480 = vunpack.c.l.b16 %v2351
        %v2481 = vunpack.c.l.b16 %v2352
        %v2482 = vunpack.c.l.b16 %v2353
        %v2483 = vunpack.c.l.b16 %v2354
        %v2484 = vunpack.c.l.b16 %v2355
        %v2485 = vunpack.c.l.b16 %v2356
        %v2486 = vunpack.c.l.b16 %v2357
        %v2487 = vunpack.c.l.b16 %v2358
        %v2488 = vunpack.c.l.b16 %v2359
        %v2489 = vunpack.c.l.b16 %v2360
        %v2490 = vunpack.c.l.b16 %v2361
        %v2491 = vunpack.c.l.b16 %v2362
        %v2492 = vunpack.c.l.b16 %v2363
        %v2493 = vunpack.c.l.b16 %v2364
        %v2494 = vunpack.c.l.b16 %v2365
        %v2495 = vunpack.c.l.b16 %v2366
        %v2496 = vunpack.c.l.b16 %v2367
        %v2497 = vunpack.c.l.b16 %v2368
        %v2498 = vunpack.c.l.b16 %v2369
        %v2499 = vunpack.c.l.b16 %v2370
        %v2500 = vunpack.c.l.b16 %v2371
        %v2501 = vunpack.c.l.b16 %v2372
        %v2502 = vunpack.c.l.b16 %v2373
        %v2503 = vunpack.c.l.b16 %v2374
        %v2504 = vunpack.c.l.b16 %v2375
        %v2505 = vpack.c.b16 %v2442, %v2441
        %v2506 = vpack.c.b16 %v2444, %v2443
        %v2507 = vpack.c.b16 %v2446, %v2445
        %v2508 = vpack.c.b16 %v2448, %v2447
        %v2509 = vpack.c.b16 %v2450, %v2449
        %v2510 = vpack.c.b16 %v2452, %v2451
        %v2511 = vpack.c.b16 %v2454, %v2453
        %v2512 = vpack.c.b16 %v2456, %v2455
        %v2513 = vpack.c.b16 %v2458, %v2457
        %v2514 = vpack.c.b16 %v2460, %v2459
        %v2515 = vpack.c.b16 %v2462, %v2461
        %v2516 = vpack.c.b16 %v2464, %v2463
        %v2517 = vpack.c.b16 %v2466, %v2465
        %v2518 = vpack.c.b16 %v2468, %v2467
        %v2519 = vpack.c.b16 %v2470, %v2469
        %v2520 = vpack.c.b16 %v2472, %v2471
        %v2521 = vpack.c.b16 %v2474, %v2473
        %v2522 = vpack.c.b16 %v2476, %v2475
        %v2523 = vpack.c.b16 %v2478, %v2477
        %v2524 = vpack.c.b16 %v2480, %v2479
        %v2525 = vpack.c.b16 %v2482, %v2481
        %v2526 = vpack.c.b16 %v2484, %v2483
        %v2527 = vpack.c.b16 %v2486, %v2485
        %v2528 = vpack.c.b16 %v2488, %v2487
        %v2529 = vpack.c.b16 %v2490, %v2489
        %v2530 = vpack.c.b16 %v2492, %v2491
        %v2531 = vpack.c.b16 %v2494, %v2493
        %v2532 = vpack.c.b16 %v2496, %v2495
        %v2533 = vpack.c.b16 %v2498, %v2497
        %v2534 = vpack.c.b16 %v2500, %v2499
        %v2535 = vpack.c.b16 %v2502, %v2501
        %v2536 = vpack.c.b16 %v2504, %v2503
        %2569 = vmatprep.subr.bf16.mxu0 0
        %2570 = vmatpush1.bf16.msra.mxu0 %v2505
        %2571 = vmatprep.subr.bf16.mxu0 0
        %2572 = vmatpush1.bf16.msra.mxu0 %v2506
        %2573 = vmatprep.subr.bf16.mxu0 0
        %2574 = vmatpush1.bf16.msra.mxu0 %v2507
        %2575 = vmatprep.subr.bf16.mxu0 0
        %2576 = vmatpush1.bf16.msra.mxu0 %v2508
        %2577 = vmatprep.subr.bf16.mxu0 0
        %2578 = vmatpush1.bf16.msra.mxu0 %v2509
        %2579 = vmatprep.subr.bf16.mxu0 0
        %2580 = vmatpush1.bf16.msra.mxu0 %v2510
        %2581 = vmatprep.subr.bf16.mxu0 0
        %2582 = vmatpush1.bf16.msra.mxu0 %v2511
        %2583 = vmatprep.subr.bf16.mxu0 0
        %2584 = vmatpush1.bf16.msra.mxu0 %v2512
        %2585 = vmatprep.subr.bf16.mxu0 0
        %2586 = vmatpush1.bf16.msra.mxu0 %v2513
        %2587 = vmatprep.subr.bf16.mxu0 0
        %2588 = vmatpush1.bf16.msra.mxu0 %v2514
        %2589 = vmatprep.subr.bf16.mxu0 0
        %2590 = vmatpush1.bf16.msra.mxu0 %v2515
        %2591 = vmatprep.subr.bf16.mxu0 0
        %2592 = vmatpush1.bf16.msra.mxu0 %v2516
        %2593 = vmatprep.subr.bf16.mxu0 0
        %2594 = vmatpush1.bf16.msra.mxu0 %v2517
        %2595 = vmatprep.subr.bf16.mxu0 0
        %2596 = vmatpush1.bf16.msra.mxu0 %v2518
        %2597 = vmatprep.subr.bf16.mxu0 0
        %2598 = vmatpush1.bf16.msra.mxu0 %v2519
        %2599 = vmatprep.subr.bf16.mxu0 0
        %2600 = vmatpush1.bf16.msra.mxu0 %v2520
        %2601 = vmatprep.mubr.bf16.mxu0 %v2309
        %2602 = vmatmul.mubr.bf16.gmra.mrb[0].mxu0 %v2308
        %v2603 = vpop.f32.mrb[0].mxu0
        %v2604 = vadd.f32 %v2376, %v2603
        %v2605 = vpop.f32.mrb[0].mxu0
        %v2606 = vpop.f32.mrb[0].mxu0
        %v2607 = vpop.f32.mrb[0].mxu0
        %2608 = vdwg.mxu0
        %2609 = vmatprep.subr.bf16.mxu0 0
        %2610 = vmatpush1.bf16.msra.mxu0 %v2521
        %2611 = vmatprep.subr.bf16.mxu0 0
        %2612 = vmatpush1.bf16.msra.mxu0 %v2522
        %2613 = vmatprep.subr.bf16.mxu0 0
        %2614 = vmatpush1.bf16.msra.mxu0 %v2523
        %2615 = vmatprep.subr.bf16.mxu0 0
        %2616 = vmatpush1.bf16.msra.mxu0 %v2524
        %2617 = vmatprep.subr.bf16.mxu0 0
        %2618 = vmatpush1.bf16.msra.mxu0 %v2525
        %2619 = vmatprep.subr.bf16.mxu0 0
        %2620 = vmatpush1.bf16.msra.mxu0 %v2526
        %2621 = vmatprep.subr.bf16.mxu0 0
        %2622 = vmatpush1.bf16.msra.mxu0 %v2527
        %2623 = vmatprep.subr.bf16.mxu0 0
        %2624 = vmatpush1.bf16.msra.mxu0 %v2528
        %2625 = vmatprep.subr.bf16.mxu0 0
        %2626 = vmatpush1.bf16.msra.mxu0 %v2529
        %2627 = vmatprep.subr.bf16.mxu0 0
        %2628 = vmatpush1.bf16.msra.mxu0 %v2530
        %2629 = vmatprep.subr.bf16.mxu0 0
        %2630 = vmatpush1.bf16.msra.mxu0 %v2531
        %2631 = vmatprep.subr.bf16.mxu0 0
        %2632 = vmatpush1.bf16.msra.mxu0 %v2532
        %2633 = vmatprep.subr.bf16.mxu0 0
        %2634 = vmatpush1.bf16.msra.mxu0 %v2533
        %2635 = vmatprep.subr.bf16.mxu0 0
        %2636 = vmatpush1.bf16.msra.mxu0 %v2534
        %2637 = vmatprep.subr.bf16.mxu0 0
        %2638 = vmatpush1.bf16.msra.mxu0 %v2535
        %2639 = vmatprep.subr.bf16.mxu0 0
        %2640 = vmatpush1.bf16.msra.mxu0 %v2536
        %2641 = vmatprep.mubr.bf16.mxu0 %v2311
        %2642 = vmatmul.mubr.bf16.gmra.mrb[0].mxu0 %v2310
        %v2643 = vpop.f32.mrb[0].mxu0
        %v2644 = vadd.f32 %v2604, %v2643
        %v2645 = vpop.f32.mrb[0].mxu0
        %v2646 = vpop.f32.mrb[0].mxu0
        %v2647 = vpop.f32.mrb[0].mxu0
        %2648 = vdwg.mxu0
        %v2649 = vmax.f32 %v2644, 0.0
        %v2650 = vpack.c.bf16 %v2649, %v2649
        %v2651 = vld [vmem:[%s5] sm:$0xff]
        %v2652 = vld [vmem:[%s5 + $0x8] sm:$0xff]
        %v2653 = vld [vmem:[%s5 + $0x10] sm:$0xff]
        %v2654 = vld [vmem:[%s5 + $0x18] sm:$0xff]
        %v2655 = vld [vmem:[%s5 + $0x20] sm:$0xff]
        %v2656 = vld [vmem:[%s5 + $0x28] sm:$0xff]
        %v2657 = vld [vmem:[%s5 + $0x30] sm:$0xff]
        %v2658 = vld [vmem:[%s5 + $0x38] sm:$0xff]
        %v2659 = vld [vmem:[%s5 + $0x40] sm:$0xff]
        %v2660 = vld [vmem:[%s5 + $0x48] sm:$0xff]
        %v2661 = vld [vmem:[%s5 + $0x50] sm:$0xff]
        %v2662 = vld [vmem:[%s5 + $0x58] sm:$0xff]
        %v2663 = vld [vmem:[%s5 + $0x60] sm:$0xff]
        %v2664 = vld [vmem:[%s5 + $0x68] sm:$0xff]
        %v2665 = vld [vmem:[%s5 + $0x70] sm:$0xff]
        %v2666 = vld [vmem:[%s5 + $0x78] sm:$0xff]
        %v2667 = vld [vmem:[%s5 + $0x80] sm:$0xff]
        %v2668 = vld [vmem:[%s5 + $0x88] sm:$0xff]
        %v2669 = vld [vmem:[%s5 + $0x90] sm:$0xff]
        %v2670 = vld [vmem:[%s5 + $0x98] sm:$0xff]
        %v2671 = vld [vmem:[%s5 + $0xa0] sm:$0xff]
        %v2672 = vld [vmem:[%s5 + $0xa8] sm:$0xff]
        %v2673 = vld [vmem:[%s5 + $0xb0] sm:$0xff]
        %v2674 = vld [vmem:[%s5 + $0xb8] sm:$0xff]
        %v2675 = vld [vmem:[%s5 + $0xc0] sm:$0xff]
        %v2676 = vld [vmem:[%s5 + $0xc8] sm:$0xff]
        %v2677 = vld [vmem:[%s5 + $0xd0] sm:$0xff]
        %v2678 = vld [vmem:[%s5 + $0xd8] sm:$0xff]
        %v2679 = vld [vmem:[%s5 + $0xe0] sm:$0xff]
        %v2680 = vld [vmem:[%s5 + $0xe8] sm:$0xff]
        %v2681 = vld [vmem:[%s5 + $0xf0] sm:$0xff]
        %v2682 = vld [vmem:[%s5 + $0xf8] sm:$0xff]
        %v2683 = vld [vmem:[%s6] sm:$0xf]
        %v2716 = vunpack.c.l.b16 %v2651
        %v2717 = vunpack.c.h.b16 %v2651
        %v2718 = vunpack.c.l.b16 %v2652
        %v2719 = vunpack.c.h.b16 %v2652
        %v2720 = vunpack.c.l.b16 %v2653
        %v2721 = vunpack.c.h.b16 %v2653
        %v2722 = vunpack.c.l.b16 %v2654
        %v2723 = vunpack.c.h.b16 %v2654
        %v2724 = vunpack.c.l.b16 %v2655
        %v2725 = vunpack.c.h.b16 %v2655
        %v2726 = vunpack.c.l.b16 %v2656
        %v2727 = vunpack.c.h.b16 %v2656
        %v2728 = vunpack.c.l.b16 %v2657
        %v2729 = vunpack.c.h.b16 %v2657
        %v2730 = vunpack.c.l.b16 %v2658
        %v2731 = vunpack.c.h.b16 %v2658
        %v2732 = vunpack.c.l.b16 %v2659
        %v2733 = vunpack.c.h.b16 %v2659
        %v2734 = vunpack.c.l.b16 %v2660
        %v2735 = vunpack.c.h.b16 %v2660
        %v2736 = vunpack.c.l.b16 %v2661
        %v2737 = vunpack.c.h.b16 %v2661
        %v2738 = vunpack.c.l.b16 %v2662
        %v2739 = vunpack.c.h.b16 %v2662
        %v2740 = vunpack.c.l.b16 %v2663
        %v2741 = vunpack.c.h.b16 %v2663
        %v2742 = vunpack.c.l.b16 %v2664
        %v2743 = vunpack.c.h.b16 %v2664
        %v2744 = vunpack.c.l.b16 %v2665
        %v2745 = vunpack.c.h.b16 %v2665
        %v2746 = vunpack.c.l.b16 %v2666
        %v2747 = vunpack.c.h.b16 %v2666
        %v2748 = vunpack.c.l.b16 %v2667
        %v2749 = vunpack.c.h.b16 %v2667
        %v2750 = vunpack.c.l.b16 %v2668
        %v2751 = vunpack.c.h.b16 %v2668
        %v2752 = vunpack.c.l.b16 %v2669
        %v2753 = vunpack.c.h.b16 %v2669
        %v2754 = vunpack.c.l.b16 %v2670
        %v2755 = vunpack.c.h.b16 %v2670
        %v2756 = vunpack.c.l.b16 %v2671
        %v2757 = vunpack.c.h.b16 %v2671
        %v2758 = vunpack.c.l.b16 %v2672
        %v2759 = vunpack.c.h.b16 %v2672
        %v2760 = vunpack.c.l.b16 %v2673
        %v2761 = vunpack.c.h.b16 %v2673
        %v2762 = vunpack.c.l.b16 %v2674
        %v2763 = vunpack.c.h.b16 %v2674
        %v2764 = vunpack.c.l.b16 %v2675
        %v2765 = vunpack.c.h.b16 %v2675
        %v2766 = vunpack.c.l.b16 %v2676
        %v2767 = vunpack.c.h.b16 %v2676
        %v2768 = vunpack.c.l.b16 %v2677
        %v2769 = vunpack.c.h.b16 %v2677
        %v2770 = vunpack.c.l.b16 %v2678
        %v2771 = vunpack.c.h.b16 %v2678
        %v2772 = vunpack.c.l.b16 %v2679
        %v2773 = vunpack.c.h.b16 %v2679
        %v2774 = vunpack.c.l.b16 %v2680
        %v2775 = vunpack.c.h.b16 %v2680
        %v2776 = vunpack.c.l.b16 %v2681
        %v2777 = vunpack.c.h.b16 %v2681
        %v2778 = vunpack.c.l.b16 %v2682
        %v2779 = vunpack.c.h.b16 %v2682
        %v2780 = vpack.c.b16 %v2720, %v2716
        %v2781 = vpack.c.b16 %v2721, %v2717
        %v2782 = vpack.c.b16 %v2722, %v2718
        %v2783 = vpack.c.b16 %v2723, %v2719
        %v2784 = vpack.c.b16 %v2728, %v2724
        %v2785 = vpack.c.b16 %v2729, %v2725
        %v2786 = vpack.c.b16 %v2730, %v2726
        %v2787 = vpack.c.b16 %v2731, %v2727
        %v2788 = vpack.c.b16 %v2736, %v2732
        %v2789 = vpack.c.b16 %v2737, %v2733
        %v2790 = vpack.c.b16 %v2738, %v2734
        %v2791 = vpack.c.b16 %v2739, %v2735
        %v2792 = vpack.c.b16 %v2744, %v2740
        %v2793 = vpack.c.b16 %v2745, %v2741
        %v2794 = vpack.c.b16 %v2746, %v2742
        %v2795 = vpack.c.b16 %v2747, %v2743
        %v2796 = vpack.c.b16 %v2752, %v2748
        %v2797 = vpack.c.b16 %v2753, %v2749
        %v2798 = vpack.c.b16 %v2754, %v2750
        %v2799 = vpack.c.b16 %v2755, %v2751
        %v2800 = vpack.c.b16 %v2760, %v2756
        %v2801 = vpack.c.b16 %v2761, %v2757
        %v2802 = vpack.c.b16 %v2762, %v2758
        %v2803 = vpack.c.b16 %v2763, %v2759
        %v2804 = vpack.c.b16 %v2768, %v2764
        %v2805 = vpack.c.b16 %v2769, %v2765
        %v2806 = vpack.c.b16 %v2770, %v2766
        %v2807 = vpack.c.b16 %v2771, %v2767
        %v2808 = vpack.c.b16 %v2776, %v2772
        %v2809 = vpack.c.b16 %v2777, %v2773
        %v2810 = vpack.c.b16 %v2778, %v2774
        %v2811 = vpack.c.b16 %v2779, %v2775
        %v2845 = vlaneseq
        %v2846 = vshrl.u32 %v2845, 7
        %v2847 = vsub.s32 0, %v2846
        %v2848 = vrot.slane %v2683, %v2847
        %v2849 = vlaneseq
        %v2850 = vshrl.u32 %v2849, 7
        %v2851 = vsub.s32 1, %v2850
        %v2852 = vrot.slane %v2683, %v2851
        %v2853 = vlaneseq
        %v2854 = vshrl.u32 %v2853, 7
        %v2855 = vsub.s32 2, %v2854
        %v2856 = vrot.slane %v2683, %v2855
        %v2857 = vlaneseq
        %v2858 = vshrl.u32 %v2857, 7
        %v2859 = vsub.s32 3, %v2858
        %v2860 = vrot.slane %v2683, %v2859
        %2865 = vmatprep.subr.bf16.mxu0 %v2781
        %2866 = vmatpush1.bf16.msra.mxu0 %v2780
        %2867 = vmatprep.subr.bf16.mxu0 %v2785
        %2868 = vmatpush1.bf16.msra.mxu0 %v2784
        %2869 = vmatprep.subr.bf16.mxu0 %v2789
        %2870 = vmatpush1.bf16.msra.mxu0 %v2788
        %2871 = vmatprep.subr.bf16.mxu0 %v2793
        %2872 = vmatpush1.bf16.msra.mxu0 %v2792
        %2873 = vmatprep.subr.bf16.mxu0 %v2797
        %2874 = vmatpush1.bf16.msra.mxu0 %v2796
        %2875 = vmatprep.subr.bf16.mxu0 %v2801
        %2876 = vmatpush1.bf16.msra.mxu0 %v2800
        %2877 = vmatprep.subr.bf16.mxu0 %v2805
        %2878 = vmatpush1.bf16.msra.mxu0 %v2804
        %2879 = vmatprep.subr.bf16.mxu0 %v2809
        %2880 = vmatpush1.bf16.msra.mxu0 %v2808
        %2881 = vmatprep.subr.bf16.mxu0 0
        %2882 = vmatpush1.bf16.msra.mxu0 0
        %2883 = vmatprep.subr.bf16.mxu0 0
        %2884 = vmatpush1.bf16.msra.mxu0 0
        %2885 = vmatprep.subr.bf16.mxu0 0
        %2886 = vmatpush1.bf16.msra.mxu0 0
        %2887 = vmatprep.subr.bf16.mxu0 0
        %2888 = vmatpush1.bf16.msra.mxu0 0
        %2889 = vmatprep.subr.bf16.mxu0 0
        %2890 = vmatpush1.bf16.msra.mxu0 0
        %2891 = vmatprep.subr.bf16.mxu0 0
        %2892 = vmatpush1.bf16.msra.mxu0 0
        %2893 = vmatprep.subr.bf16.mxu0 0
        %2894 = vmatpush1.bf16.msra.mxu0 0
        %2895 = vmatprep.subr.bf16.mxu0 0
        %2896 = vmatpush1.bf16.msra.mxu0 0
        %2897 = vmatprep.mubr.bf16.mxu0 0
        %2898 = vmatmul.mubr.bf16.gmra.mrb[0].mxu0 %v2650
        %v2899 = vpop.f32.mrb[0].mxu0
        %v2900 = vadd.f32 %v2848, %v2899
        %v2901 = vpop.f32.mrb[0].mxu0
        %v2902 = vadd.f32 %v2852, %v2901
        %v2903 = vpop.f32.mrb[0].mxu0
        %v2904 = vpop.f32.mrb[0].mxu0
        %2905 = vdwg.mxu0
        %2906 = vmatprep.subr.bf16.mxu0 %v2783
        %2907 = vmatpush1.bf16.msra.mxu0 %v2782
        %2908 = vmatprep.subr.bf16.mxu0 %v2787
        %2909 = vmatpush1.bf16.msra.mxu0 %v2786
        %2910 = vmatprep.subr.bf16.mxu0 %v2791
        %2911 = vmatpush1.bf16.msra.mxu0 %v2790
        %2912 = vmatprep.subr.bf16.mxu0 %v2795
        %2913 = vmatpush1.bf16.msra.mxu0 %v2794
        %2914 = vmatprep.subr.bf16.mxu0 %v2799
        %2915 = vmatpush1.bf16.msra.mxu0 %v2798
        %2916 = vmatprep.subr.bf16.mxu0 %v2803
        %2917 = vmatpush1.bf16.msra.mxu0 %v2802
        %2918 = vmatprep.subr.bf16.mxu0 %v2807
        %2919 = vmatpush1.bf16.msra.mxu0 %v2806
        %2920 = vmatprep.subr.bf16.mxu0 %v2811
        %2921 = vmatpush1.bf16.msra.mxu0 %v2810
        %2922 = vmatprep.subr.bf16.mxu0 0
        %2923 = vmatpush1.bf16.msra.mxu0 0
        %2924 = vmatprep.subr.bf16.mxu0 0
        %2925 = vmatpush1.bf16.msra.mxu0 0
        %2926 = vmatprep.subr.bf16.mxu0 0
        %2927 = vmatpush1.bf16.msra.mxu0 0
        %2928 = vmatprep.subr.bf16.mxu0 0
        %2929 = vmatpush1.bf16.msra.mxu0 0
        %2930 = vmatprep.subr.bf16.mxu0 0
        %2931 = vmatpush1.bf16.msra.mxu0 0
        %2932 = vmatprep.subr.bf16.mxu0 0
        %2933 = vmatpush1.bf16.msra.mxu0 0
        %2934 = vmatprep.subr.bf16.mxu0 0
        %2935 = vmatpush1.bf16.msra.mxu0 0
        %2936 = vmatprep.subr.bf16.mxu0 0
        %2937 = vmatpush1.bf16.msra.mxu0 0
        %2938 = vmatprep.mubr.bf16.mxu0 0
        %2939 = vmatmul.mubr.bf16.gmra.mrb[0].mxu0 %v2650
        %v2940 = vpop.f32.mrb[0].mxu0
        %v2941 = vadd.f32 %v2856, %v2940
        %v2942 = vpop.f32.mrb[0].mxu0
        %v2943 = vadd.f32 %v2860, %v2942
        %v2944 = vpop.f32.mrb[0].mxu0
        %v2945 = vpop.f32.mrb[0].mxu0
        %2946 = vdwg.mxu0
        %v2947 = vmax.f32 %v2900, 0.0
        %v2948 = vmax.f32 %v2902, 0.0
        %v2949 = vmax.f32 %v2941, 0.0
        %v2950 = vmax.f32 %v2943, 0.0
        %v2951 = vpack.c.bf16 %v2947, %v2947
        %v2952 = vpack.c.bf16 %v2948, %v2948
        %v2953 = vpack.c.bf16 %v2949, %v2949
        %v2954 = vpack.c.bf16 %v2950, %v2950
        %v2955 = vld [vmem:[#allocation4] sm:$0xff]
        %v2956 = vld [vmem:[#allocation4 + $0x8] sm:$0xff]
        %v2957 = vld [vmem:[#allocation4 + $0x10] sm:$0xff]
        %v2958 = vld [vmem:[#allocation4 + $0x18] sm:$0xff]
        %v2959 = vld [vmem:[#allocation4 + $0x20] sm:$0xff]
        %v2960 = vld [vmem:[#allocation4 + $0x28] sm:$0xff]
        %v2961 = vld [vmem:[#allocation4 + $0x30] sm:$0xff]
        %v2962 = vld [vmem:[#allocation4 + $0x38] sm:$0xff]
        %v2963 = vld [vmem:[#allocation4 + $0x40] sm:$0xff]
        %v2964 = vld [vmem:[#allocation4 + $0x48] sm:$0xff]
        %v2965 = vld [vmem:[#allocation4 + $0x50] sm:$0xff]
        %v2966 = vld [vmem:[#allocation4 + $0x58] sm:$0xff]
        %v2967 = vld [vmem:[#allocation4 + $0x60] sm:$0xff]
        %v2968 = vld [vmem:[#allocation4 + $0x68] sm:$0xff]
        %v2969 = vld [vmem:[#allocation4 + $0x70] sm:$0xff]
        %v2970 = vld [vmem:[#allocation4 + $0x78] sm:$0xff]
        %v2971 = vld [vmem:[#allocation4 + $0x80] sm:$0xff]
        %v2972 = vld [vmem:[#allocation4 + $0x88] sm:$0xff]
        %v2973 = vld [vmem:[#allocation4 + $0x90] sm:$0xff]
        %v2974 = vld [vmem:[#allocation4 + $0x98] sm:$0xff]
        %v2975 = vld [vmem:[#allocation4 + $0xa0] sm:$0xff]
        %v2976 = vld [vmem:[#allocation4 + $0xa8] sm:$0xff]
        %v2977 = vld [vmem:[#allocation4 + $0xb0] sm:$0xff]
        %v2978 = vld [vmem:[#allocation4 + $0xb8] sm:$0xff]
        %v2979 = vld [vmem:[#allocation4 + $0xc0] sm:$0xff]
        %v2980 = vld [vmem:[#allocation4 + $0xc8] sm:$0xff]
        %v2981 = vld [vmem:[#allocation4 + $0xd0] sm:$0xff]
        %v2982 = vld [vmem:[#allocation4 + $0xd8] sm:$0xff]
        %v2983 = vld [vmem:[#allocation4 + $0xe0] sm:$0xff]
        %v2984 = vld [vmem:[#allocation4 + $0xe8] sm:$0xff]
        %v2985 = vld [vmem:[#allocation4 + $0xf0] sm:$0xff]
        %v2986 = vld [vmem:[#allocation4 + $0xf8] sm:$0xff]
        %v2987 = vld [vmem:[#allocation4 + $0x100] sm:$0xff]
        %v2988 = vld [vmem:[#allocation4 + $0x108] sm:$0xff]
        %v2989 = vld [vmem:[#allocation4 + $0x110] sm:$0xff]
        %v2990 = vld [vmem:[#allocation4 + $0x118] sm:$0xff]
        %v2991 = vld [vmem:[#allocation4 + $0x120] sm:$0xff]
        %v2992 = vld [vmem:[#allocation4 + $0x128] sm:$0xff]
        %v2993 = vld [vmem:[#allocation4 + $0x130] sm:$0xff]
        %v2994 = vld [vmem:[#allocation4 + $0x138] sm:$0xff]
        %v2995 = vld [vmem:[#allocation4 + $0x140] sm:$0xff]
        %v2996 = vld [vmem:[#allocation4 + $0x148] sm:$0xff]
        %v2997 = vld [vmem:[#allocation4 + $0x150] sm:$0xff]
        %v2998 = vld [vmem:[#allocation4 + $0x158] sm:$0xff]
        %v2999 = vld [vmem:[#allocation4 + $0x160] sm:$0xff]
        %v3000 = vld [vmem:[#allocation4 + $0x168] sm:$0xff]
        %v3001 = vld [vmem:[#allocation4 + $0x170] sm:$0xff]
        %v3002 = vld [vmem:[#allocation4 + $0x178] sm:$0xff]
        %v3003 = vld [vmem:[#allocation4 + $0x180] sm:$0xff]
        %v3004 = vld [vmem:[#allocation4 + $0x188] sm:$0xff]
        %v3005 = vld [vmem:[#allocation4 + $0x190] sm:$0xff]
        %v3006 = vld [vmem:[#allocation4 + $0x198] sm:$0xff]
        %v3007 = vld [vmem:[#allocation4 + $0x1a0] sm:$0xff]
        %v3008 = vld [vmem:[#allocation4 + $0x1a8] sm:$0xff]
        %v3009 = vld [vmem:[#allocation4 + $0x1b0] sm:$0xff]
        %v3010 = vld [vmem:[#allocation4 + $0x1b8] sm:$0xff]
        %v3011 = vld [vmem:[#allocation4 + $0x1c0] sm:$0xff]
        %v3012 = vld [vmem:[#allocation4 + $0x1c8] sm:$0xff]
        %v3013 = vld [vmem:[#allocation4 + $0x1d0] sm:$0xff]
        %v3014 = vld [vmem:[#allocation4 + $0x1d8] sm:$0xff]
        %v3015 = vld [vmem:[#allocation4 + $0x1e0] sm:$0xff]
        %v3016 = vld [vmem:[#allocation4 + $0x1e8] sm:$0xff]
        %v3017 = vld [vmem:[#allocation4 + $0x1f0] sm:$0xff]
        %v3018 = vld [vmem:[#allocation4 + $0x1f8] sm:$0xff]
        %v3019 = vld [vmem:[#allocation4 + $0x200] sm:$0xff]
        %v3020 = vld [vmem:[#allocation4 + $0x208] sm:$0xff]
        %v3021 = vld [vmem:[#allocation4 + $0x210] sm:$0xff]
        %v3022 = vld [vmem:[#allocation4 + $0x218] sm:$0xff]
        %v3023 = vld [vmem:[#allocation4 + $0x220] sm:$0xff]
        %v3024 = vld [vmem:[#allocation4 + $0x228] sm:$0xff]
        %v3025 = vld [vmem:[#allocation4 + $0x230] sm:$0xff]
        %v3026 = vld [vmem:[#allocation4 + $0x238] sm:$0xff]
        %v3027 = vld [vmem:[#allocation4 + $0x240] sm:$0xff]
        %v3028 = vld [vmem:[#allocation4 + $0x248] sm:$0xff]
        %v3029 = vld [vmem:[#allocation4 + $0x250] sm:$0xff]
        %v3030 = vld [vmem:[#allocation4 + $0x258] sm:$0xff]
        %v3031 = vld [vmem:[#allocation4 + $0x260] sm:$0xff]
        %v3032 = vld [vmem:[#allocation4 + $0x268] sm:$0xff]
        %v3033 = vld [vmem:[#allocation4 + $0x270] sm:$0xff]
        %v3034 = vld [vmem:[#allocation4 + $0x278] sm:$0xff]
        %v3035 = vld [vmem:[#allocation4 + $0x280] sm:$0xff]
        %v3036 = vld [vmem:[#allocation4 + $0x288] sm:$0xff]
        %v3037 = vld [vmem:[#allocation4 + $0x290] sm:$0xff]
        %v3038 = vld [vmem:[#allocation4 + $0x298] sm:$0xff]
        %v3039 = vld [vmem:[#allocation4 + $0x2a0] sm:$0xff]
        %v3040 = vld [vmem:[#allocation4 + $0x2a8] sm:$0xff]
        %v3041 = vld [vmem:[#allocation4 + $0x2b0] sm:$0xff]
        %v3042 = vld [vmem:[#allocation4 + $0x2b8] sm:$0xff]
        %v3043 = vld [vmem:[#allocation4 + $0x2c0] sm:$0xff]
        %v3044 = vld [vmem:[#allocation4 + $0x2c8] sm:$0xff]
        %v3045 = vld [vmem:[#allocation4 + $0x2d0] sm:$0xff]
        %v3046 = vld [vmem:[#allocation4 + $0x2d8] sm:$0xff]
        %v3047 = vld [vmem:[#allocation4 + $0x2e0] sm:$0xff]
        %v3048 = vld [vmem:[#allocation4 + $0x2e8] sm:$0xff]
        %v3049 = vld [vmem:[#allocation4 + $0x2f0] sm:$0xff]
        %v3050 = vld [vmem:[#allocation4 + $0x2f8] sm:$0xff]
        %v3051 = vld [vmem:[#allocation4 + $0x300] sm:$0xff]
        %v3052 = vld [vmem:[#allocation4 + $0x308] sm:$0xff]
        %v3053 = vld [vmem:[#allocation4 + $0x310] sm:$0xff]
        %v3054 = vld [vmem:[#allocation4 + $0x318] sm:$0xff]
        %v3055 = vld [vmem:[#allocation4 + $0x320] sm:$0xff]
        %v3056 = vld [vmem:[#allocation4 + $0x328] sm:$0xff]
        %v3057 = vld [vmem:[#allocation4 + $0x330] sm:$0xff]
        %v3058 = vld [vmem:[#allocation4 + $0x338] sm:$0xff]
        %v3059 = vld [vmem:[#allocation4 + $0x340] sm:$0xff]
        %v3060 = vld [vmem:[#allocation4 + $0x348] sm:$0xff]
        %v3061 = vld [vmem:[#allocation4 + $0x350] sm:$0xff]
        %v3062 = vld [vmem:[#allocation4 + $0x358] sm:$0xff]
        %v3063 = vld [vmem:[#allocation4 + $0x360] sm:$0xff]
        %v3064 = vld [vmem:[#allocation4 + $0x368] sm:$0xff]
        %v3065 = vld [vmem:[#allocation4 + $0x370] sm:$0xff]
        %v3066 = vld [vmem:[#allocation4 + $0x378] sm:$0xff]
        %v3067 = vld [vmem:[#allocation4 + $0x380] sm:$0xff]
        %v3068 = vld [vmem:[#allocation4 + $0x388] sm:$0xff]
        %v3069 = vld [vmem:[#allocation4 + $0x390] sm:$0xff]
        %v3070 = vld [vmem:[#allocation4 + $0x398] sm:$0xff]
        %v3071 = vld [vmem:[#allocation4 + $0x3a0] sm:$0xff]
        %v3072 = vld [vmem:[#allocation4 + $0x3a8] sm:$0xff]
        %v3073 = vld [vmem:[#allocation4 + $0x3b0] sm:$0xff]
        %v3074 = vld [vmem:[#allocation4 + $0x3b8] sm:$0xff]
        %v3075 = vld [vmem:[#allocation4 + $0x3c0] sm:$0xff]
        %v3076 = vld [vmem:[#allocation4 + $0x3c8] sm:$0xff]
        %v3077 = vld [vmem:[#allocation4 + $0x3d0] sm:$0xff]
        %v3078 = vld [vmem:[#allocation4 + $0x3d8] sm:$0xff]
        %v3079 = vld [vmem:[#allocation4 + $0x3e0] sm:$0xff]
        %v3080 = vld [vmem:[#allocation4 + $0x3e8] sm:$0xff]
        %v3081 = vld [vmem:[#allocation4 + $0x3f0] sm:$0xff]
        %v3082 = vld [vmem:[#allocation4 + $0x3f8] sm:$0xff]
        %v3083 = vld [vmem:[#allocation4 + $0x400] sm:$0xff]
        %v3084 = vld [vmem:[#allocation4 + $0x408] sm:$0xff]
        %v3085 = vld [vmem:[#allocation4 + $0x410] sm:$0xff]
        %v3086 = vld [vmem:[#allocation4 + $0x418] sm:$0xff]
        %v3087 = vld [vmem:[#allocation4 + $0x420] sm:$0xff]
        %v3088 = vld [vmem:[#allocation4 + $0x428] sm:$0xff]
        %v3089 = vld [vmem:[#allocation4 + $0x430] sm:$0xff]
        %v3090 = vld [vmem:[#allocation4 + $0x438] sm:$0xff]
        %v3091 = vld [vmem:[#allocation4 + $0x440] sm:$0xff]
        %v3092 = vld [vmem:[#allocation4 + $0x448] sm:$0xff]
        %v3093 = vld [vmem:[#allocation4 + $0x450] sm:$0xff]
        %v3094 = vld [vmem:[#allocation4 + $0x458] sm:$0xff]
        %v3095 = vld [vmem:[#allocation4 + $0x460] sm:$0xff]
        %v3096 = vld [vmem:[#allocation4 + $0x468] sm:$0xff]
        %v3097 = vld [vmem:[#allocation4 + $0x470] sm:$0xff]
        %v3098 = vld [vmem:[#allocation4 + $0x478] sm:$0xff]
        %v3099 = vld [vmem:[#allocation4 + $0x480] sm:$0xff]
        %v3100 = vld [vmem:[#allocation4 + $0x488] sm:$0xff]
        %v3101 = vld [vmem:[#allocation4 + $0x490] sm:$0xff]
        %v3102 = vld [vmem:[#allocation4 + $0x498] sm:$0xff]
        %v3103 = vld [vmem:[#allocation4 + $0x4a0] sm:$0xff]
        %v3104 = vld [vmem:[#allocation4 + $0x4a8] sm:$0xff]
        %v3105 = vld [vmem:[#allocation4 + $0x4b0] sm:$0xff]
        %v3106 = vld [vmem:[#allocation4 + $0x4b8] sm:$0xff]
        %v3107 = vld [vmem:[#allocation4 + $0x4c0] sm:$0xff]
        %v3108 = vld [vmem:[#allocation4 + $0x4c8] sm:$0xff]
        %v3109 = vld [vmem:[#allocation4 + $0x4d0] sm:$0xff]
        %v3110 = vld [vmem:[#allocation4 + $0x4d8] sm:$0xff]
        %v3111 = vld [vmem:[#allocation4 + $0x4e0] sm:$0xff]
        %v3112 = vld [vmem:[#allocation4 + $0x4e8] sm:$0xff]
        %v3113 = vld [vmem:[#allocation4 + $0x4f0] sm:$0xff]
        %v3114 = vld [vmem:[#allocation4 + $0x4f8] sm:$0xff]
        %v3115 = vld [vmem:[#allocation4 + $0x500] sm:$0xff]
        %v3116 = vld [vmem:[#allocation4 + $0x508] sm:$0xff]
        %v3117 = vld [vmem:[#allocation4 + $0x510] sm:$0xff]
        %v3118 = vld [vmem:[#allocation4 + $0x518] sm:$0xff]
        %v3119 = vld [vmem:[#allocation4 + $0x520] sm:$0xff]
        %v3120 = vld [vmem:[#allocation4 + $0x528] sm:$0xff]
        %v3121 = vld [vmem:[#allocation4 + $0x530] sm:$0xff]
        %v3122 = vld [vmem:[#allocation4 + $0x538] sm:$0xff]
        %v3123 = vld [vmem:[#allocation4 + $0x540] sm:$0xff]
        %v3124 = vld [vmem:[#allocation4 + $0x548] sm:$0xff]
        %v3125 = vld [vmem:[#allocation4 + $0x550] sm:$0xff]
        %v3126 = vld [vmem:[#allocation4 + $0x558] sm:$0xff]
        %v3127 = vld [vmem:[#allocation4 + $0x560] sm:$0xff]
        %v3128 = vld [vmem:[#allocation4 + $0x568] sm:$0xff]
        %v3129 = vld [vmem:[#allocation4 + $0x570] sm:$0xff]
        %v3130 = vld [vmem:[#allocation4 + $0x578] sm:$0xff]
        %v3131 = vld [vmem:[#allocation4 + $0x580] sm:$0xff]
        %v3132 = vld [vmem:[#allocation4 + $0x588] sm:$0xff]
        %v3133 = vld [vmem:[#allocation4 + $0x590] sm:$0xff]
        %v3134 = vld [vmem:[#allocation4 + $0x598] sm:$0xff]
        %v3135 = vld [vmem:[#allocation4 + $0x5a0] sm:$0xff]
        %v3136 = vld [vmem:[#allocation4 + $0x5a8] sm:$0xff]
        %v3137 = vld [vmem:[#allocation4 + $0x5b0] sm:$0xff]
        %v3138 = vld [vmem:[#allocation4 + $0x5b8] sm:$0xff]
        %v3139 = vld [vmem:[#allocation4 + $0x5c0] sm:$0xff]
        %v3140 = vld [vmem:[#allocation4 + $0x5c8] sm:$0xff]
        %v3141 = vld [vmem:[#allocation4 + $0x5d0] sm:$0xff]
        %v3142 = vld [vmem:[#allocation4 + $0x5d8] sm:$0xff]
        %v3143 = vld [vmem:[#allocation4 + $0x5e0] sm:$0xff]
        %v3144 = vld [vmem:[#allocation4 + $0x5e8] sm:$0xff]
        %v3145 = vld [vmem:[#allocation4 + $0x5f0] sm:$0xff]
        %v3146 = vld [vmem:[#allocation4 + $0x5f8] sm:$0xff]
        %v3147 = vld [vmem:[#allocation4 + $0x600] sm:$0xff]
        %v3148 = vld [vmem:[#allocation4 + $0x608] sm:$0xff]
        %v3149 = vld [vmem:[#allocation4 + $0x610] sm:$0xff]
        %v3150 = vld [vmem:[#allocation4 + $0x618] sm:$0xff]
        %v3151 = vld [vmem:[#allocation4 + $0x620] sm:$0xff]
        %v3152 = vld [vmem:[#allocation4 + $0x628] sm:$0xff]
        %v3153 = vld [vmem:[#allocation4 + $0x630] sm:$0xff]
        %v3154 = vld [vmem:[#allocation4 + $0x638] sm:$0xff]
        %v3155 = vld [vmem:[#allocation4 + $0x640] sm:$0xff]
        %v3156 = vld [vmem:[#allocation4 + $0x648] sm:$0xff]
        %v3157 = vld [vmem:[#allocation4 + $0x650] sm:$0xff]
        %v3158 = vld [vmem:[#allocation4 + $0x658] sm:$0xff]
        %v3159 = vld [vmem:[#allocation4 + $0x660] sm:$0xff]
        %v3160 = vld [vmem:[#allocation4 + $0x668] sm:$0xff]
        %v3161 = vld [vmem:[#allocation4 + $0x670] sm:$0xff]
        %v3162 = vld [vmem:[#allocation4 + $0x678] sm:$0xff]
        %v3163 = vld [vmem:[#allocation4 + $0x680] sm:$0xff]
        %v3164 = vld [vmem:[#allocation4 + $0x688] sm:$0xff]
        %v3165 = vld [vmem:[#allocation4 + $0x690] sm:$0xff]
        %v3166 = vld [vmem:[#allocation4 + $0x698] sm:$0xff]
        %v3167 = vld [vmem:[#allocation4 + $0x6a0] sm:$0xff]
        %v3168 = vld [vmem:[#allocation4 + $0x6a8] sm:$0xff]
        %v3169 = vld [vmem:[#allocation4 + $0x6b0] sm:$0xff]
        %v3170 = vld [vmem:[#allocation4 + $0x6b8] sm:$0xff]
        %v3171 = vld [vmem:[#allocation4 + $0x6c0] sm:$0xff]
        %v3172 = vld [vmem:[#allocation4 + $0x6c8] sm:$0xff]
        %v3173 = vld [vmem:[#allocation4 + $0x6d0] sm:$0xff]
        %v3174 = vld [vmem:[#allocation4 + $0x6d8] sm:$0xff]
        %v3175 = vld [vmem:[#allocation4 + $0x6e0] sm:$0xff]
        %v3176 = vld [vmem:[#allocation4 + $0x6e8] sm:$0xff]
        %v3177 = vld [vmem:[#allocation4 + $0x6f0] sm:$0xff]
        %v3178 = vld [vmem:[#allocation4 + $0x6f8] sm:$0xff]
        %v3179 = vld [vmem:[#allocation4 + $0x700] sm:$0xff]
        %v3180 = vld [vmem:[#allocation4 + $0x708] sm:$0xff]
        %v3181 = vld [vmem:[#allocation4 + $0x710] sm:$0xff]
        %v3182 = vld [vmem:[#allocation4 + $0x718] sm:$0xff]
        %v3183 = vld [vmem:[#allocation4 + $0x720] sm:$0xff]
        %v3184 = vld [vmem:[#allocation4 + $0x728] sm:$0xff]
        %v3185 = vld [vmem:[#allocation4 + $0x730] sm:$0xff]
        %v3186 = vld [vmem:[#allocation4 + $0x738] sm:$0xff]
        %v3187 = vld [vmem:[#allocation4 + $0x740] sm:$0xff]
        %v3188 = vld [vmem:[#allocation4 + $0x748] sm:$0xff]
        %v3189 = vld [vmem:[#allocation4 + $0x750] sm:$0xff]
        %v3190 = vld [vmem:[#allocation4 + $0x758] sm:$0xff]
        %v3191 = vld [vmem:[#allocation4 + $0x760] sm:$0xff]
        %v3192 = vld [vmem:[#allocation4 + $0x768] sm:$0xff]
        %v3193 = vld [vmem:[#allocation4 + $0x770] sm:$0xff]
        %v3194 = vld [vmem:[#allocation4 + $0x778] sm:$0xff]
        %v3195 = vld [vmem:[#allocation4 + $0x780] sm:$0xff]
        %v3196 = vld [vmem:[#allocation4 + $0x788] sm:$0xff]
        %v3197 = vld [vmem:[#allocation4 + $0x790] sm:$0xff]
        %v3198 = vld [vmem:[#allocation4 + $0x798] sm:$0xff]
        %v3199 = vld [vmem:[#allocation4 + $0x7a0] sm:$0xff]
        %v3200 = vld [vmem:[#allocation4 + $0x7a8] sm:$0xff]
        %v3201 = vld [vmem:[#allocation4 + $0x7b0] sm:$0xff]
        %v3202 = vld [vmem:[#allocation4 + $0x7b8] sm:$0xff]
        %v3203 = vld [vmem:[#allocation4 + $0x7c0] sm:$0xff]
        %v3204 = vld [vmem:[#allocation4 + $0x7c8] sm:$0xff]
        %v3205 = vld [vmem:[#allocation4 + $0x7d0] sm:$0xff]
        %v3206 = vld [vmem:[#allocation4 + $0x7d8] sm:$0xff]
        %v3207 = vld [vmem:[#allocation4 + $0x7e0] sm:$0xff]
        %v3208 = vld [vmem:[#allocation4 + $0x7e8] sm:$0xff]
        %v3209 = vld [vmem:[#allocation4 + $0x7f0] sm:$0xff]
        %v3210 = vld [vmem:[#allocation4 + $0x7f8] sm:$0xff]
        %v3211 = vld [vmem:[%s8] sm:$0xff]
        %v3468 = vunpack.c.l.b16 %v2955
        %v3469 = vunpack.c.h.b16 %v2955
        %v3470 = vunpack.c.l.b16 %v2956
        %v3471 = vunpack.c.h.b16 %v2956
        %v3472 = vunpack.c.l.b16 %v2957
        %v3473 = vunpack.c.h.b16 %v2957
        %v3474 = vunpack.c.l.b16 %v2958
        %v3475 = vunpack.c.h.b16 %v2958
        %v3476 = vunpack.c.l.b16 %v2959
        %v3477 = vunpack.c.h.b16 %v2959
        %v3478 = vunpack.c.l.b16 %v2960
        %v3479 = vunpack.c.h.b16 %v2960
        %v3480 = vunpack.c.l.b16 %v2961
        %v3481 = vunpack.c.h.b16 %v2961
        %v3482 = vunpack.c.l.b16 %v2962
        %v3483 = vunpack.c.h.b16 %v2962
        %v3484 = vunpack.c.l.b16 %v2963
        %v3485 = vunpack.c.h.b16 %v2963
        %v3486 = vunpack.c.l.b16 %v2964
        %v3487 = vunpack.c.h.b16 %v2964
        %v3488 = vunpack.c.l.b16 %v2965
        %v3489 = vunpack.c.h.b16 %v2965
        %v3490 = vunpack.c.l.b16 %v2966
        %v3491 = vunpack.c.h.b16 %v2966
        %v3492 = vunpack.c.l.b16 %v2967
        %v3493 = vunpack.c.h.b16 %v2967
        %v3494 = vunpack.c.l.b16 %v2968
        %v3495 = vunpack.c.h.b16 %v2968
        %v3496 = vunpack.c.l.b16 %v2969
        %v3497 = vunpack.c.h.b16 %v2969
        %v3498 = vunpack.c.l.b16 %v2970
        %v3499 = vunpack.c.h.b16 %v2970
        %v3500 = vunpack.c.l.b16 %v2971
        %v3501 = vunpack.c.h.b16 %v2971
        %v3502 = vunpack.c.l.b16 %v2972
        %v3503 = vunpack.c.h.b16 %v2972
        %v3504 = vunpack.c.l.b16 %v2973
        %v3505 = vunpack.c.h.b16 %v2973
        %v3506 = vunpack.c.l.b16 %v2974
        %v3507 = vunpack.c.h.b16 %v2974
        %v3508 = vunpack.c.l.b16 %v2975
        %v3509 = vunpack.c.h.b16 %v2975
        %v3510 = vunpack.c.l.b16 %v2976
        %v3511 = vunpack.c.h.b16 %v2976
        %v3512 = vunpack.c.l.b16 %v2977
        %v3513 = vunpack.c.h.b16 %v2977
        %v3514 = vunpack.c.l.b16 %v2978
        %v3515 = vunpack.c.h.b16 %v2978
        %v3516 = vunpack.c.l.b16 %v2979
        %v3517 = vunpack.c.h.b16 %v2979
        %v3518 = vunpack.c.l.b16 %v2980
        %v3519 = vunpack.c.h.b16 %v2980
        %v3520 = vunpack.c.l.b16 %v2981
        %v3521 = vunpack.c.h.b16 %v2981
        %v3522 = vunpack.c.l.b16 %v2982
        %v3523 = vunpack.c.h.b16 %v2982
        %v3524 = vunpack.c.l.b16 %v2983
        %v3525 = vunpack.c.h.b16 %v2983
        %v3526 = vunpack.c.l.b16 %v2984
        %v3527 = vunpack.c.h.b16 %v2984
        %v3528 = vunpack.c.l.b16 %v2985
        %v3529 = vunpack.c.h.b16 %v2985
        %v3530 = vunpack.c.l.b16 %v2986
        %v3531 = vunpack.c.h.b16 %v2986
        %v3532 = vunpack.c.l.b16 %v2987
        %v3533 = vunpack.c.h.b16 %v2987
        %v3534 = vunpack.c.l.b16 %v2988
        %v3535 = vunpack.c.h.b16 %v2988
        %v3536 = vunpack.c.l.b16 %v2989
        %v3537 = vunpack.c.h.b16 %v2989
        %v3538 = vunpack.c.l.b16 %v2990
        %v3539 = vunpack.c.h.b16 %v2990
        %v3540 = vunpack.c.l.b16 %v2991
        %v3541 = vunpack.c.h.b16 %v2991
        %v3542 = vunpack.c.l.b16 %v2992
        %v3543 = vunpack.c.h.b16 %v2992
        %v3544 = vunpack.c.l.b16 %v2993
        %v3545 = vunpack.c.h.b16 %v2993
        %v3546 = vunpack.c.l.b16 %v2994
        %v3547 = vunpack.c.h.b16 %v2994
        %v3548 = vunpack.c.l.b16 %v2995
        %v3549 = vunpack.c.h.b16 %v2995
        %v3550 = vunpack.c.l.b16 %v2996
        %v3551 = vunpack.c.h.b16 %v2996
        %v3552 = vunpack.c.l.b16 %v2997
        %v3553 = vunpack.c.h.b16 %v2997
        %v3554 = vunpack.c.l.b16 %v2998
        %v3555 = vunpack.c.h.b16 %v2998
        %v3556 = vunpack.c.l.b16 %v2999
        %v3557 = vunpack.c.h.b16 %v2999
        %v3558 = vunpack.c.l.b16 %v3000
        %v3559 = vunpack.c.h.b16 %v3000
        %v3560 = vunpack.c.l.b16 %v3001
        %v3561 = vunpack.c.h.b16 %v3001
        %v3562 = vunpack.c.l.b16 %v3002
        %v3563 = vunpack.c.h.b16 %v3002
        %v3564 = vunpack.c.l.b16 %v3003
        %v3565 = vunpack.c.h.b16 %v3003
        %v3566 = vunpack.c.l.b16 %v3004
        %v3567 = vunpack.c.h.b16 %v3004
        %v3568 = vunpack.c.l.b16 %v3005
        %v3569 = vunpack.c.h.b16 %v3005
        %v3570 = vunpack.c.l.b16 %v3006
        %v3571 = vunpack.c.h.b16 %v3006
        %v3572 = vunpack.c.l.b16 %v3007
        %v3573 = vunpack.c.h.b16 %v3007
        %v3574 = vunpack.c.l.b16 %v3008
        %v3575 = vunpack.c.h.b16 %v3008
        %v3576 = vunpack.c.l.b16 %v3009
        %v3577 = vunpack.c.h.b16 %v3009
        %v3578 = vunpack.c.l.b16 %v3010
        %v3579 = vunpack.c.h.b16 %v3010
        %v3580 = vunpack.c.l.b16 %v3011
        %v3581 = vunpack.c.h.b16 %v3011
        %v3582 = vunpack.c.l.b16 %v3012
        %v3583 = vunpack.c.h.b16 %v3012
        %v3584 = vunpack.c.l.b16 %v3013
        %v3585 = vunpack.c.h.b16 %v3013
        %v3586 = vunpack.c.l.b16 %v3014
        %v3587 = vunpack.c.h.b16 %v3014
        %v3588 = vunpack.c.l.b16 %v3015
        %v3589 = vunpack.c.h.b16 %v3015
        %v3590 = vunpack.c.l.b16 %v3016
        %v3591 = vunpack.c.h.b16 %v3016
        %v3592 = vunpack.c.l.b16 %v3017
        %v3593 = vunpack.c.h.b16 %v3017
        %v3594 = vunpack.c.l.b16 %v3018
        %v3595 = vunpack.c.h.b16 %v3018
        %v3596 = vunpack.c.l.b16 %v3019
        %v3597 = vunpack.c.h.b16 %v3019
        %v3598 = vunpack.c.l.b16 %v3020
        %v3599 = vunpack.c.h.b16 %v3020
        %v3600 = vunpack.c.l.b16 %v3021
        %v3601 = vunpack.c.h.b16 %v3021
        %v3602 = vunpack.c.l.b16 %v3022
        %v3603 = vunpack.c.h.b16 %v3022
        %v3604 = vunpack.c.l.b16 %v3023
        %v3605 = vunpack.c.h.b16 %v3023
        %v3606 = vunpack.c.l.b16 %v3024
        %v3607 = vunpack.c.h.b16 %v3024
        %v3608 = vunpack.c.l.b16 %v3025
        %v3609 = vunpack.c.h.b16 %v3025
        %v3610 = vunpack.c.l.b16 %v3026
        %v3611 = vunpack.c.h.b16 %v3026
        %v3612 = vunpack.c.l.b16 %v3027
        %v3613 = vunpack.c.h.b16 %v3027
        %v3614 = vunpack.c.l.b16 %v3028
        %v3615 = vunpack.c.h.b16 %v3028
        %v3616 = vunpack.c.l.b16 %v3029
        %v3617 = vunpack.c.h.b16 %v3029
        %v3618 = vunpack.c.l.b16 %v3030
        %v3619 = vunpack.c.h.b16 %v3030
        %v3620 = vunpack.c.l.b16 %v3031
        %v3621 = vunpack.c.h.b16 %v3031
        %v3622 = vunpack.c.l.b16 %v3032
        %v3623 = vunpack.c.h.b16 %v3032
        %v3624 = vunpack.c.l.b16 %v3033
        %v3625 = vunpack.c.h.b16 %v3033
        %v3626 = vunpack.c.l.b16 %v3034
        %v3627 = vunpack.c.h.b16 %v3034
        %v3628 = vunpack.c.l.b16 %v3035
        %v3629 = vunpack.c.h.b16 %v3035
        %v3630 = vunpack.c.l.b16 %v3036
        %v3631 = vunpack.c.h.b16 %v3036
        %v3632 = vunpack.c.l.b16 %v3037
        %v3633 = vunpack.c.h.b16 %v3037
        %v3634 = vunpack.c.l.b16 %v3038
        %v3635 = vunpack.c.h.b16 %v3038
        %v3636 = vunpack.c.l.b16 %v3039
        %v3637 = vunpack.c.h.b16 %v3039
        %v3638 = vunpack.c.l.b16 %v3040
        %v3639 = vunpack.c.h.b16 %v3040
        %v3640 = vunpack.c.l.b16 %v3041
        %v3641 = vunpack.c.h.b16 %v3041
        %v3642 = vunpack.c.l.b16 %v3042
        %v3643 = vunpack.c.h.b16 %v3042
        %v3644 = vunpack.c.l.b16 %v3043
        %v3645 = vunpack.c.h.b16 %v3043
        %v3646 = vunpack.c.l.b16 %v3044
        %v3647 = vunpack.c.h.b16 %v3044
        %v3648 = vunpack.c.l.b16 %v3045
        %v3649 = vunpack.c.h.b16 %v3045
        %v3650 = vunpack.c.l.b16 %v3046
        %v3651 = vunpack.c.h.b16 %v3046
        %v3652 = vunpack.c.l.b16 %v3047
        %v3653 = vunpack.c.h.b16 %v3047
        %v3654 = vunpack.c.l.b16 %v3048
        %v3655 = vunpack.c.h.b16 %v3048
        %v3656 = vunpack.c.l.b16 %v3049
        %v3657 = vunpack.c.h.b16 %v3049
        %v3658 = vunpack.c.l.b16 %v3050
        %v3659 = vunpack.c.h.b16 %v3050
        %v3660 = vunpack.c.l.b16 %v3051
        %v3661 = vunpack.c.h.b16 %v3051
        %v3662 = vunpack.c.l.b16 %v3052
        %v3663 = vunpack.c.h.b16 %v3052
        %v3664 = vunpack.c.l.b16 %v3053
        %v3665 = vunpack.c.h.b16 %v3053
        %v3666 = vunpack.c.l.b16 %v3054
        %v3667 = vunpack.c.h.b16 %v3054
        %v3668 = vunpack.c.l.b16 %v3055
        %v3669 = vunpack.c.h.b16 %v3055
        %v3670 = vunpack.c.l.b16 %v3056
        %v3671 = vunpack.c.h.b16 %v3056
        %v3672 = vunpack.c.l.b16 %v3057
        %v3673 = vunpack.c.h.b16 %v3057
        %v3674 = vunpack.c.l.b16 %v3058
        %v3675 = vunpack.c.h.b16 %v3058
        %v3676 = vunpack.c.l.b16 %v3059
        %v3677 = vunpack.c.h.b16 %v3059
        %v3678 = vunpack.c.l.b16 %v3060
        %v3679 = vunpack.c.h.b16 %v3060
        %v3680 = vunpack.c.l.b16 %v3061
        %v3681 = vunpack.c.h.b16 %v3061
        %v3682 = vunpack.c.l.b16 %v3062
        %v3683 = vunpack.c.h.b16 %v3062
        %v3684 = vunpack.c.l.b16 %v3063
        %v3685 = vunpack.c.h.b16 %v3063
        %v3686 = vunpack.c.l.b16 %v3064
        %v3687 = vunpack.c.h.b16 %v3064
        %v3688 = vunpack.c.l.b16 %v3065
        %v3689 = vunpack.c.h.b16 %v3065
        %v3690 = vunpack.c.l.b16 %v3066
        %v3691 = vunpack.c.h.b16 %v3066
        %v3692 = vunpack.c.l.b16 %v3067
        %v3693 = vunpack.c.h.b16 %v3067
        %v3694 = vunpack.c.l.b16 %v3068
        %v3695 = vunpack.c.h.b16 %v3068
        %v3696 = vunpack.c.l.b16 %v3069
        %v3697 = vunpack.c.h.b16 %v3069
        %v3698 = vunpack.c.l.b16 %v3070
        %v3699 = vunpack.c.h.b16 %v3070
        %v3700 = vunpack.c.l.b16 %v3071
        %v3701 = vunpack.c.h.b16 %v3071
        %v3702 = vunpack.c.l.b16 %v3072
        %v3703 = vunpack.c.h.b16 %v3072
        %v3704 = vunpack.c.l.b16 %v3073
        %v3705 = vunpack.c.h.b16 %v3073
        %v3706 = vunpack.c.l.b16 %v3074
        %v3707 = vunpack.c.h.b16 %v3074
        %v3708 = vunpack.c.l.b16 %v3075
        %v3709 = vunpack.c.h.b16 %v3075
        %v3710 = vunpack.c.l.b16 %v3076
        %v3711 = vunpack.c.h.b16 %v3076
        %v3712 = vunpack.c.l.b16 %v3077
        %v3713 = vunpack.c.h.b16 %v3077
        %v3714 = vunpack.c.l.b16 %v3078
        %v3715 = vunpack.c.h.b16 %v3078
        %v3716 = vunpack.c.l.b16 %v3079
        %v3717 = vunpack.c.h.b16 %v3079
        %v3718 = vunpack.c.l.b16 %v3080
        %v3719 = vunpack.c.h.b16 %v3080
        %v3720 = vunpack.c.l.b16 %v3081
        %v3721 = vunpack.c.h.b16 %v3081
        %v3722 = vunpack.c.l.b16 %v3082
        %v3723 = vunpack.c.h.b16 %v3082
        %v3724 = vunpack.c.l.b16 %v3083
        %v3725 = vunpack.c.h.b16 %v3083
        %v3726 = vunpack.c.l.b16 %v3084
        %v3727 = vunpack.c.h.b16 %v3084
        %v3728 = vunpack.c.l.b16 %v3085
        %v3729 = vunpack.c.h.b16 %v3085
        %v3730 = vunpack.c.l.b16 %v3086
        %v3731 = vunpack.c.h.b16 %v3086
        %v3732 = vunpack.c.l.b16 %v3087
        %v3733 = vunpack.c.h.b16 %v3087
        %v3734 = vunpack.c.l.b16 %v3088
        %v3735 = vunpack.c.h.b16 %v3088
        %v3736 = vunpack.c.l.b16 %v3089
        %v3737 = vunpack.c.h.b16 %v3089
        %v3738 = vunpack.c.l.b16 %v3090
        %v3739 = vunpack.c.h.b16 %v3090
        %v3740 = vunpack.c.l.b16 %v3091
        %v3741 = vunpack.c.h.b16 %v3091
        %v3742 = vunpack.c.l.b16 %v3092
        %v3743 = vunpack.c.h.b16 %v3092
        %v3744 = vunpack.c.l.b16 %v3093
        %v3745 = vunpack.c.h.b16 %v3093
        %v3746 = vunpack.c.l.b16 %v3094
        %v3747 = vunpack.c.h.b16 %v3094
        %v3748 = vunpack.c.l.b16 %v3095
        %v3749 = vunpack.c.h.b16 %v3095
        %v3750 = vunpack.c.l.b16 %v3096
        %v3751 = vunpack.c.h.b16 %v3096
        %v3752 = vunpack.c.l.b16 %v3097
        %v3753 = vunpack.c.h.b16 %v3097
        %v3754 = vunpack.c.l.b16 %v3098
        %v3755 = vunpack.c.h.b16 %v3098
        %v3756 = vunpack.c.l.b16 %v3099
        %v3757 = vunpack.c.h.b16 %v3099
        %v3758 = vunpack.c.l.b16 %v3100
        %v3759 = vunpack.c.h.b16 %v3100
        %v3760 = vunpack.c.l.b16 %v3101
        %v3761 = vunpack.c.h.b16 %v3101
        %v3762 = vunpack.c.l.b16 %v3102
        %v3763 = vunpack.c.h.b16 %v3102
        %v3764 = vunpack.c.l.b16 %v3103
        %v3765 = vunpack.c.h.b16 %v3103
        %v3766 = vunpack.c.l.b16 %v3104
        %v3767 = vunpack.c.h.b16 %v3104
        %v3768 = vunpack.c.l.b16 %v3105
        %v3769 = vunpack.c.h.b16 %v3105
        %v3770 = vunpack.c.l.b16 %v3106
        %v3771 = vunpack.c.h.b16 %v3106
        %v3772 = vunpack.c.l.b16 %v3107
        %v3773 = vunpack.c.h.b16 %v3107
        %v3774 = vunpack.c.l.b16 %v3108
        %v3775 = vunpack.c.h.b16 %v3108
        %v3776 = vunpack.c.l.b16 %v3109
        %v3777 = vunpack.c.h.b16 %v3109
        %v3778 = vunpack.c.l.b16 %v3110
        %v3779 = vunpack.c.h.b16 %v3110
        %v3780 = vunpack.c.l.b16 %v3111
        %v3781 = vunpack.c.h.b16 %v3111
        %v3782 = vunpack.c.l.b16 %v3112
        %v3783 = vunpack.c.h.b16 %v3112
        %v3784 = vunpack.c.l.b16 %v3113
        %v3785 = vunpack.c.h.b16 %v3113
        %v3786 = vunpack.c.l.b16 %v3114
        %v3787 = vunpack.c.h.b16 %v3114
        %v3788 = vunpack.c.l.b16 %v3115
        %v3789 = vunpack.c.h.b16 %v3115
        %v3790 = vunpack.c.l.b16 %v3116
        %v3791 = vunpack.c.h.b16 %v3116
        %v3792 = vunpack.c.l.b16 %v3117
        %v3793 = vunpack.c.h.b16 %v3117
        %v3794 = vunpack.c.l.b16 %v3118
        %v3795 = vunpack.c.h.b16 %v3118
        %v3796 = vunpack.c.l.b16 %v3119
        %v3797 = vunpack.c.h.b16 %v3119
        %v3798 = vunpack.c.l.b16 %v3120
        %v3799 = vunpack.c.h.b16 %v3120
        %v3800 = vunpack.c.l.b16 %v3121
        %v3801 = vunpack.c.h.b16 %v3121
        %v3802 = vunpack.c.l.b16 %v3122
        %v3803 = vunpack.c.h.b16 %v3122
        %v3804 = vunpack.c.l.b16 %v3123
        %v3805 = vunpack.c.h.b16 %v3123
        %v3806 = vunpack.c.l.b16 %v3124
        %v3807 = vunpack.c.h.b16 %v3124
        %v3808 = vunpack.c.l.b16 %v3125
        %v3809 = vunpack.c.h.b16 %v3125
        %v3810 = vunpack.c.l.b16 %v3126
        %v3811 = vunpack.c.h.b16 %v3126
        %v3812 = vunpack.c.l.b16 %v3127
        %v3813 = vunpack.c.h.b16 %v3127
        %v3814 = vunpack.c.l.b16 %v3128
        %v3815 = vunpack.c.h.b16 %v3128
        %v3816 = vunpack.c.l.b16 %v3129
        %v3817 = vunpack.c.h.b16 %v3129
        %v3818 = vunpack.c.l.b16 %v3130
        %v3819 = vunpack.c.h.b16 %v3130
        %v3820 = vunpack.c.l.b16 %v3131
        %v3821 = vunpack.c.h.b16 %v3131
        %v3822 = vunpack.c.l.b16 %v3132
        %v3823 = vunpack.c.h.b16 %v3132
        %v3824 = vunpack.c.l.b16 %v3133
        %v3825 = vunpack.c.h.b16 %v3133
        %v3826 = vunpack.c.l.b16 %v3134
        %v3827 = vunpack.c.h.b16 %v3134
        %v3828 = vunpack.c.l.b16 %v3135
        %v3829 = vunpack.c.h.b16 %v3135
        %v3830 = vunpack.c.l.b16 %v3136
        %v3831 = vunpack.c.h.b16 %v3136
        %v3832 = vunpack.c.l.b16 %v3137
        %v3833 = vunpack.c.h.b16 %v3137
        %v3834 = vunpack.c.l.b16 %v3138
        %v3835 = vunpack.c.h.b16 %v3138
        %v3836 = vunpack.c.l.b16 %v3139
        %v3837 = vunpack.c.h.b16 %v3139
        %v3838 = vunpack.c.l.b16 %v3140
        %v3839 = vunpack.c.h.b16 %v3140
        %v3840 = vunpack.c.l.b16 %v3141
        %v3841 = vunpack.c.h.b16 %v3141
        %v3842 = vunpack.c.l.b16 %v3142
        %v3843 = vunpack.c.h.b16 %v3142
        %v3844 = vunpack.c.l.b16 %v3143
        %v3845 = vunpack.c.h.b16 %v3143
        %v3846 = vunpack.c.l.b16 %v3144
        %v3847 = vunpack.c.h.b16 %v3144
        %v3848 = vunpack.c.l.b16 %v3145
        %v3849 = vunpack.c.h.b16 %v3145
        %v3850 = vunpack.c.l.b16 %v3146
        %v3851 = vunpack.c.h.b16 %v3146
        %v3852 = vunpack.c.l.b16 %v3147
        %v3853 = vunpack.c.h.b16 %v3147
        %v3854 = vunpack.c.l.b16 %v3148
        %v3855 = vunpack.c.h.b16 %v3148
        %v3856 = vunpack.c.l.b16 %v3149
        %v3857 = vunpack.c.h.b16 %v3149
        %v3858 = vunpack.c.l.b16 %v3150
        %v3859 = vunpack.c.h.b16 %v3150
        %v3860 = vunpack.c.l.b16 %v3151
        %v3861 = vunpack.c.h.b16 %v3151
        %v3862 = vunpack.c.l.b16 %v3152
        %v3863 = vunpack.c.h.b16 %v3152
        %v3864 = vunpack.c.l.b16 %v3153
        %v3865 = vunpack.c.h.b16 %v3153
        %v3866 = vunpack.c.l.b16 %v3154
        %v3867 = vunpack.c.h.b16 %v3154
        %v3868 = vunpack.c.l.b16 %v3155
        %v3869 = vunpack.c.h.b16 %v3155
        %v3870 = vunpack.c.l.b16 %v3156
        %v3871 = vunpack.c.h.b16 %v3156
        %v3872 = vunpack.c.l.b16 %v3157
        %v3873 = vunpack.c.h.b16 %v3157
        %v3874 = vunpack.c.l.b16 %v3158
        %v3875 = vunpack.c.h.b16 %v3158
        %v3876 = vunpack.c.l.b16 %v3159
        %v3877 = vunpack.c.h.b16 %v3159
        %v3878 = vunpack.c.l.b16 %v3160
        %v3879 = vunpack.c.h.b16 %v3160
        %v3880 = vunpack.c.l.b16 %v3161
        %v3881 = vunpack.c.h.b16 %v3161
        %v3882 = vunpack.c.l.b16 %v3162
        %v3883 = vunpack.c.h.b16 %v3162
        %v3884 = vunpack.c.l.b16 %v3163
        %v3885 = vunpack.c.h.b16 %v3163
        %v3886 = vunpack.c.l.b16 %v3164
        %v3887 = vunpack.c.h.b16 %v3164
        %v3888 = vunpack.c.l.b16 %v3165
        %v3889 = vunpack.c.h.b16 %v3165
        %v3890 = vunpack.c.l.b16 %v3166
        %v3891 = vunpack.c.h.b16 %v3166
        %v3892 = vunpack.c.l.b16 %v3167
        %v3893 = vunpack.c.h.b16 %v3167
        %v3894 = vunpack.c.l.b16 %v3168
        %v3895 = vunpack.c.h.b16 %v3168
        %v3896 = vunpack.c.l.b16 %v3169
        %v3897 = vunpack.c.h.b16 %v3169
        %v3898 = vunpack.c.l.b16 %v3170
        %v3899 = vunpack.c.h.b16 %v3170
        %v3900 = vunpack.c.l.b16 %v3171
        %v3901 = vunpack.c.h.b16 %v3171
        %v3902 = vunpack.c.l.b16 %v3172
        %v3903 = vunpack.c.h.b16 %v3172
        %v3904 = vunpack.c.l.b16 %v3173
        %v3905 = vunpack.c.h.b16 %v3173
        %v3906 = vunpack.c.l.b16 %v3174
        %v3907 = vunpack.c.h.b16 %v3174
        %v3908 = vunpack.c.l.b16 %v3175
        %v3909 = vunpack.c.h.b16 %v3175
        %v3910 = vunpack.c.l.b16 %v3176
        %v3911 = vunpack.c.h.b16 %v3176
        %v3912 = vunpack.c.l.b16 %v3177
        %v3913 = vunpack.c.h.b16 %v3177
        %v3914 = vunpack.c.l.b16 %v3178
        %v3915 = vunpack.c.h.b16 %v3178
        %v3916 = vunpack.c.l.b16 %v3179
        %v3917 = vunpack.c.h.b16 %v3179
        %v3918 = vunpack.c.l.b16 %v3180
        %v3919 = vunpack.c.h.b16 %v3180
        %v3920 = vunpack.c.l.b16 %v3181
        %v3921 = vunpack.c.h.b16 %v3181
        %v3922 = vunpack.c.l.b16 %v3182
        %v3923 = vunpack.c.h.b16 %v3182
        %v3924 = vunpack.c.l.b16 %v3183
        %v3925 = vunpack.c.h.b16 %v3183
        %v3926 = vunpack.c.l.b16 %v3184
        %v3927 = vunpack.c.h.b16 %v3184
        %v3928 = vunpack.c.l.b16 %v3185
        %v3929 = vunpack.c.h.b16 %v3185
        %v3930 = vunpack.c.l.b16 %v3186
        %v3931 = vunpack.c.h.b16 %v3186
        %v3932 = vunpack.c.l.b16 %v3187
        %v3933 = vunpack.c.h.b16 %v3187
        %v3934 = vunpack.c.l.b16 %v3188
        %v3935 = vunpack.c.h.b16 %v3188
        %v3936 = vunpack.c.l.b16 %v3189
        %v3937 = vunpack.c.h.b16 %v3189
        %v3938 = vunpack.c.l.b16 %v3190
        %v3939 = vunpack.c.h.b16 %v3190
        %v3940 = vunpack.c.l.b16 %v3191
        %v3941 = vunpack.c.h.b16 %v3191
        %v3942 = vunpack.c.l.b16 %v3192
        %v3943 = vunpack.c.h.b16 %v3192
        %v3944 = vunpack.c.l.b16 %v3193
        %v3945 = vunpack.c.h.b16 %v3193
        %v3946 = vunpack.c.l.b16 %v3194
        %v3947 = vunpack.c.h.b16 %v3194
        %v3948 = vunpack.c.l.b16 %v3195
        %v3949 = vunpack.c.h.b16 %v3195
        %v3950 = vunpack.c.l.b16 %v3196
        %v3951 = vunpack.c.h.b16 %v3196
        %v3952 = vunpack.c.l.b16 %v3197
        %v3953 = vunpack.c.h.b16 %v3197
        %v3954 = vunpack.c.l.b16 %v3198
        %v3955 = vunpack.c.h.b16 %v3198
        %v3956 = vunpack.c.l.b16 %v3199
        %v3957 = vunpack.c.h.b16 %v3199
        %v3958 = vunpack.c.l.b16 %v3200
        %v3959 = vunpack.c.h.b16 %v3200
        %v3960 = vunpack.c.l.b16 %v3201
        %v3961 = vunpack.c.h.b16 %v3201
        %v3962 = vunpack.c.l.b16 %v3202
        %v3963 = vunpack.c.h.b16 %v3202
        %v3964 = vunpack.c.l.b16 %v3203
        %v3965 = vunpack.c.h.b16 %v3203
        %v3966 = vunpack.c.l.b16 %v3204
        %v3967 = vunpack.c.h.b16 %v3204
        %v3968 = vunpack.c.l.b16 %v3205
        %v3969 = vunpack.c.h.b16 %v3205
        %v3970 = vunpack.c.l.b16 %v3206
        %v3971 = vunpack.c.h.b16 %v3206
        %v3972 = vunpack.c.l.b16 %v3207
        %v3973 = vunpack.c.h.b16 %v3207
        %v3974 = vunpack.c.l.b16 %v3208
        %v3975 = vunpack.c.h.b16 %v3208
        %v3976 = vunpack.c.l.b16 %v3209
        %v3977 = vunpack.c.h.b16 %v3209
        %v3978 = vunpack.c.l.b16 %v3210
        %v3979 = vunpack.c.h.b16 %v3210
        %v3980 = vpack.c.b16 %v3476, %v3468
        %v3981 = vpack.c.b16 %v3477, %v3469
        %v3982 = vpack.c.b16 %v3478, %v3470
        %v3983 = vpack.c.b16 %v3479, %v3471
        %v3984 = vpack.c.b16 %v3480, %v3472
        %v3985 = vpack.c.b16 %v3481, %v3473
        %v3986 = vpack.c.b16 %v3482, %v3474
        %v3987 = vpack.c.b16 %v3483, %v3475
        %v3988 = vpack.c.b16 %v3492, %v3484
        %v3989 = vpack.c.b16 %v3493, %v3485
        %v3990 = vpack.c.b16 %v3494, %v3486
        %v3991 = vpack.c.b16 %v3495, %v3487
        %v3992 = vpack.c.b16 %v3496, %v3488
        %v3993 = vpack.c.b16 %v3497, %v3489
        %v3994 = vpack.c.b16 %v3498, %v3490
        %v3995 = vpack.c.b16 %v3499, %v3491
        %v3996 = vpack.c.b16 %v3508, %v3500
        %v3997 = vpack.c.b16 %v3509, %v3501
        %v3998 = vpack.c.b16 %v3510, %v3502
        %v3999 = vpack.c.b16 %v3511, %v3503
        %v4000 = vpack.c.b16 %v3512, %v3504
        %v4001 = vpack.c.b16 %v3513, %v3505
        %v4002 = vpack.c.b16 %v3514, %v3506
        %v4003 = vpack.c.b16 %v3515, %v3507
        %v4004 = vpack.c.b16 %v3524, %v3516
        %v4005 = vpack.c.b16 %v3525, %v3517
        %v4006 = vpack.c.b16 %v3526, %v3518
        %v4007 = vpack.c.b16 %v3527, %v3519
        %v4008 = vpack.c.b16 %v3528, %v3520
        %v4009 = vpack.c.b16 %v3529, %v3521
        %v4010 = vpack.c.b16 %v3530, %v3522
        %v4011 = vpack.c.b16 %v3531, %v3523
        %v4012 = vpack.c.b16 %v3540, %v3532
        %v4013 = vpack.c.b16 %v3541, %v3533
        %v4014 = vpack.c.b16 %v3542, %v3534
        %v4015 = vpack.c.b16 %v3543, %v3535
        %v4016 = vpack.c.b16 %v3544, %v3536
        %v4017 = vpack.c.b16 %v3545, %v3537
        %v4018 = vpack.c.b16 %v3546, %v3538
        %v4019 = vpack.c.b16 %v3547, %v3539
        %v4020 = vpack.c.b16 %v3556, %v3548
        %v4021 = vpack.c.b16 %v3557, %v3549
        %v4022 = vpack.c.b16 %v3558, %v3550
        %v4023 = vpack.c.b16 %v3559, %v3551
        %v4024 = vpack.c.b16 %v3560, %v3552
        %v4025 = vpack.c.b16 %v3561, %v3553
        %v4026 = vpack.c.b16 %v3562, %v3554
        %v4027 = vpack.c.b16 %v3563, %v3555
        %v4028 = vpack.c.b16 %v3572, %v3564
        %v4029 = vpack.c.b16 %v3573, %v3565
        %v4030 = vpack.c.b16 %v3574, %v3566
        %v4031 = vpack.c.b16 %v3575, %v3567
        %v4032 = vpack.c.b16 %v3576, %v3568
        %v4033 = vpack.c.b16 %v3577, %v3569
        %v4034 = vpack.c.b16 %v3578, %v3570
        %v4035 = vpack.c.b16 %v3579, %v3571
        %v4036 = vpack.c.b16 %v3588, %v3580
        %v4037 = vpack.c.b16 %v3589, %v3581
        %v4038 = vpack.c.b16 %v3590, %v3582
        %v4039 = vpack.c.b16 %v3591, %v3583
        %v4040 = vpack.c.b16 %v3592, %v3584
        %v4041 = vpack.c.b16 %v3593, %v3585
        %v4042 = vpack.c.b16 %v3594, %v3586
        %v4043 = vpack.c.b16 %v3595, %v3587
        %v4044 = vpack.c.b16 %v3604, %v3596
        %v4045 = vpack.c.b16 %v3605, %v3597
        %v4046 = vpack.c.b16 %v3606, %v3598
        %v4047 = vpack.c.b16 %v3607, %v3599
        %v4048 = vpack.c.b16 %v3608, %v3600
        %v4049 = vpack.c.b16 %v3609, %v3601
        %v4050 = vpack.c.b16 %v3610, %v3602
        %v4051 = vpack.c.b16 %v3611, %v3603
        %v4052 = vpack.c.b16 %v3620, %v3612
        %v4053 = vpack.c.b16 %v3621, %v3613
        %v4054 = vpack.c.b16 %v3622, %v3614
        %v4055 = vpack.c.b16 %v3623, %v3615
        %v4056 = vpack.c.b16 %v3624, %v3616
        %v4057 = vpack.c.b16 %v3625, %v3617
        %v4058 = vpack.c.b16 %v3626, %v3618
        %v4059 = vpack.c.b16 %v3627, %v3619
        %v4060 = vpack.c.b16 %v3636, %v3628
        %v4061 = vpack.c.b16 %v3637, %v3629
        %v4062 = vpack.c.b16 %v3638, %v3630
        %v4063 = vpack.c.b16 %v3639, %v3631
        %v4064 = vpack.c.b16 %v3640, %v3632
        %v4065 = vpack.c.b16 %v3641, %v3633
        %v4066 = vpack.c.b16 %v3642, %v3634
        %v4067 = vpack.c.b16 %v3643, %v3635
        %v4068 = vpack.c.b16 %v3652, %v3644
        %v4069 = vpack.c.b16 %v3653, %v3645
        %v4070 = vpack.c.b16 %v3654, %v3646
        %v4071 = vpack.c.b16 %v3655, %v3647
        %v4072 = vpack.c.b16 %v3656, %v3648
        %v4073 = vpack.c.b16 %v3657, %v3649
        %v4074 = vpack.c.b16 %v3658, %v3650
        %v4075 = vpack.c.b16 %v3659, %v3651
        %v4076 = vpack.c.b16 %v3668, %v3660
        %v4077 = vpack.c.b16 %v3669, %v3661
        %v4078 = vpack.c.b16 %v3670, %v3662
        %v4079 = vpack.c.b16 %v3671, %v3663
        %v4080 = vpack.c.b16 %v3672, %v3664
        %v4081 = vpack.c.b16 %v3673, %v3665
        %v4082 = vpack.c.b16 %v3674, %v3666
        %v4083 = vpack.c.b16 %v3675, %v3667
        %v4084 = vpack.c.b16 %v3684, %v3676
        %v4085 = vpack.c.b16 %v3685, %v3677
        %v4086 = vpack.c.b16 %v3686, %v3678
        %v4087 = vpack.c.b16 %v3687, %v3679
        %v4088 = vpack.c.b16 %v3688, %v3680
        %v4089 = vpack.c.b16 %v3689, %v3681
        %v4090 = vpack.c.b16 %v3690, %v3682
        %v4091 = vpack.c.b16 %v3691, %v3683
        %v4092 = vpack.c.b16 %v3700, %v3692
        %v4093 = vpack.c.b16 %v3701, %v3693
        %v4094 = vpack.c.b16 %v3702, %v3694
        %v4095 = vpack.c.b16 %v3703, %v3695
        %v4096 = vpack.c.b16 %v3704, %v3696
        %v4097 = vpack.c.b16 %v3705, %v3697
        %v4098 = vpack.c.b16 %v3706, %v3698
        %v4099 = vpack.c.b16 %v3707, %v3699
        %v4100 = vpack.c.b16 %v3716, %v3708
        %v4101 = vpack.c.b16 %v3717, %v3709
        %v4102 = vpack.c.b16 %v3718, %v3710
        %v4103 = vpack.c.b16 %v3719, %v3711
        %v4104 = vpack.c.b16 %v3720, %v3712
        %v4105 = vpack.c.b16 %v3721, %v3713
        %v4106 = vpack.c.b16 %v3722, %v3714
        %v4107 = vpack.c.b16 %v3723, %v3715
        %v4108 = vpack.c.b16 %v3732, %v3724
        %v4109 = vpack.c.b16 %v3733, %v3725
        %v4110 = vpack.c.b16 %v3734, %v3726
        %v4111 = vpack.c.b16 %v3735, %v3727
        %v4112 = vpack.c.b16 %v3736, %v3728
        %v4113 = vpack.c.b16 %v3737, %v3729
        %v4114 = vpack.c.b16 %v3738, %v3730
        %v4115 = vpack.c.b16 %v3739, %v3731
        %v4116 = vpack.c.b16 %v3748, %v3740
        %v4117 = vpack.c.b16 %v3749, %v3741
        %v4118 = vpack.c.b16 %v3750, %v3742
        %v4119 = vpack.c.b16 %v3751, %v3743
        %v4120 = vpack.c.b16 %v3752, %v3744
        %v4121 = vpack.c.b16 %v3753, %v3745
        %v4122 = vpack.c.b16 %v3754, %v3746
        %v4123 = vpack.c.b16 %v3755, %v3747
        %v4124 = vpack.c.b16 %v3764, %v3756
        %v4125 = vpack.c.b16 %v3765, %v3757
        %v4126 = vpack.c.b16 %v3766, %v3758
        %v4127 = vpack.c.b16 %v3767, %v3759
        %v4128 = vpack.c.b16 %v3768, %v3760
        %v4129 = vpack.c.b16 %v3769, %v3761
        %v4130 = vpack.c.b16 %v3770, %v3762
        %v4131 = vpack.c.b16 %v3771, %v3763
        %v4132 = vpack.c.b16 %v3780, %v3772
        %v4133 = vpack.c.b16 %v3781, %v3773
        %v4134 = vpack.c.b16 %v3782, %v3774
        %v4135 = vpack.c.b16 %v3783, %v3775
        %v4136 = vpack.c.b16 %v3784, %v3776
        %v4137 = vpack.c.b16 %v3785, %v3777
        %v4138 = vpack.c.b16 %v3786, %v3778
        %v4139 = vpack.c.b16 %v3787, %v3779
        %v4140 = vpack.c.b16 %v3796, %v3788
        %v4141 = vpack.c.b16 %v3797, %v3789
        %v4142 = vpack.c.b16 %v3798, %v3790
        %v4143 = vpack.c.b16 %v3799, %v3791
        %v4144 = vpack.c.b16 %v3800, %v3792
        %v4145 = vpack.c.b16 %v3801, %v3793
        %v4146 = vpack.c.b16 %v3802, %v3794
        %v4147 = vpack.c.b16 %v3803, %v3795
        %v4148 = vpack.c.b16 %v3812, %v3804
        %v4149 = vpack.c.b16 %v3813, %v3805
        %v4150 = vpack.c.b16 %v3814, %v3806
        %v4151 = vpack.c.b16 %v3815, %v3807
        %v4152 = vpack.c.b16 %v3816, %v3808
        %v4153 = vpack.c.b16 %v3817, %v3809
        %v4154 = vpack.c.b16 %v3818, %v3810
        %v4155 = vpack.c.b16 %v3819, %v3811
        %v4156 = vpack.c.b16 %v3828, %v3820
        %v4157 = vpack.c.b16 %v3829, %v3821
        %v4158 = vpack.c.b16 %v3830, %v3822
        %v4159 = vpack.c.b16 %v3831, %v3823
        %v4160 = vpack.c.b16 %v3832, %v3824
        %v4161 = vpack.c.b16 %v3833, %v3825
        %v4162 = vpack.c.b16 %v3834, %v3826
        %v4163 = vpack.c.b16 %v3835, %v3827
        %v4164 = vpack.c.b16 %v3844, %v3836
        %v4165 = vpack.c.b16 %v3845, %v3837
        %v4166 = vpack.c.b16 %v3846, %v3838
        %v4167 = vpack.c.b16 %v3847, %v3839
        %v4168 = vpack.c.b16 %v3848, %v3840
        %v4169 = vpack.c.b16 %v3849, %v3841
        %v4170 = vpack.c.b16 %v3850, %v3842
        %v4171 = vpack.c.b16 %v3851, %v3843
        %v4172 = vpack.c.b16 %v3860, %v3852
        %v4173 = vpack.c.b16 %v3861, %v3853
        %v4174 = vpack.c.b16 %v3862, %v3854
        %v4175 = vpack.c.b16 %v3863, %v3855
        %v4176 = vpack.c.b16 %v3864, %v3856
        %v4177 = vpack.c.b16 %v3865, %v3857
        %v4178 = vpack.c.b16 %v3866, %v3858
        %v4179 = vpack.c.b16 %v3867, %v3859
        %v4180 = vpack.c.b16 %v3876, %v3868
        %v4181 = vpack.c.b16 %v3877, %v3869
        %v4182 = vpack.c.b16 %v3878, %v3870
        %v4183 = vpack.c.b16 %v3879, %v3871
        %v4184 = vpack.c.b16 %v3880, %v3872
        %v4185 = vpack.c.b16 %v3881, %v3873
        %v4186 = vpack.c.b16 %v3882, %v3874
        %v4187 = vpack.c.b16 %v3883, %v3875
        %v4188 = vpack.c.b16 %v3892, %v3884
        %v4189 = vpack.c.b16 %v3893, %v3885
        %v4190 = vpack.c.b16 %v3894, %v3886
        %v4191 = vpack.c.b16 %v3895, %v3887
        %v4192 = vpack.c.b16 %v3896, %v3888
        %v4193 = vpack.c.b16 %v3897, %v3889
        %v4194 = vpack.c.b16 %v3898, %v3890
        %v4195 = vpack.c.b16 %v3899, %v3891
        %v4196 = vpack.c.b16 %v3908, %v3900
        %v4197 = vpack.c.b16 %v3909, %v3901
        %v4198 = vpack.c.b16 %v3910, %v3902
        %v4199 = vpack.c.b16 %v3911, %v3903
        %v4200 = vpack.c.b16 %v3912, %v3904
        %v4201 = vpack.c.b16 %v3913, %v3905
        %v4202 = vpack.c.b16 %v3914, %v3906
        %v4203 = vpack.c.b16 %v3915, %v3907
        %v4204 = vpack.c.b16 %v3924, %v3916
        %v4205 = vpack.c.b16 %v3925, %v3917
        %v4206 = vpack.c.b16 %v3926, %v3918
        %v4207 = vpack.c.b16 %v3927, %v3919
        %v4208 = vpack.c.b16 %v3928, %v3920
        %v4209 = vpack.c.b16 %v3929, %v3921
        %v4210 = vpack.c.b16 %v3930, %v3922
        %v4211 = vpack.c.b16 %v3931, %v3923
        %v4212 = vpack.c.b16 %v3940, %v3932
        %v4213 = vpack.c.b16 %v3941, %v3933
        %v4214 = vpack.c.b16 %v3942, %v3934
        %v4215 = vpack.c.b16 %v3943, %v3935
        %v4216 = vpack.c.b16 %v3944, %v3936
        %v4217 = vpack.c.b16 %v3945, %v3937
        %v4218 = vpack.c.b16 %v3946, %v3938
        %v4219 = vpack.c.b16 %v3947, %v3939
        %v4220 = vpack.c.b16 %v3956, %v3948
        %v4221 = vpack.c.b16 %v3957, %v3949
        %v4222 = vpack.c.b16 %v3958, %v3950
        %v4223 = vpack.c.b16 %v3959, %v3951
        %v4224 = vpack.c.b16 %v3960, %v3952
        %v4225 = vpack.c.b16 %v3961, %v3953
        %v4226 = vpack.c.b16 %v3962, %v3954
        %v4227 = vpack.c.b16 %v3963, %v3955
        %v4228 = vpack.c.b16 %v3972, %v3964
        %v4229 = vpack.c.b16 %v3973, %v3965
        %v4230 = vpack.c.b16 %v3974, %v3966
        %v4231 = vpack.c.b16 %v3975, %v3967
        %v4232 = vpack.c.b16 %v3976, %v3968
        %v4233 = vpack.c.b16 %v3977, %v3969
        %v4234 = vpack.c.b16 %v3978, %v3970
        %v4235 = vpack.c.b16 %v3979, %v3971
        %v4493 = vlaneseq
        %v4494 = vshrl.u32 %v4493, 7
        %v4495 = vsub.s32 0, %v4494
        %v4496 = vrot.slane %v3211, %v4495
        %v4497 = vlaneseq
        %v4498 = vshrl.u32 %v4497, 7
        %v4499 = vsub.s32 1, %v4498
        %v4500 = vrot.slane %v3211, %v4499
        %v4501 = vlaneseq
        %v4502 = vshrl.u32 %v4501, 7
        %v4503 = vsub.s32 2, %v4502
        %v4504 = vrot.slane %v3211, %v4503
        %v4505 = vlaneseq
        %v4506 = vshrl.u32 %v4505, 7
        %v4507 = vsub.s32 3, %v4506
        %v4508 = vrot.slane %v3211, %v4507
        %v4509 = vlaneseq
        %v4510 = vshrl.u32 %v4509, 7
        %v4511 = vsub.s32 4, %v4510
        %v4512 = vrot.slane %v3211, %v4511
        %v4513 = vlaneseq
        %v4514 = vshrl.u32 %v4513, 7
        %v4515 = vsub.s32 5, %v4514
        %v4516 = vrot.slane %v3211, %v4515
        %v4517 = vlaneseq
        %v4518 = vshrl.u32 %v4517, 7
        %v4519 = vsub.s32 6, %v4518
        %v4520 = vrot.slane %v3211, %v4519
        %v4521 = vlaneseq
        %v4522 = vshrl.u32 %v4521, 7
        %v4523 = vsub.s32 7, %v4522
        %v4524 = vrot.slane %v3211, %v4523
        %4533 = vmatprep.subr.bf16.mxu0 %v3981
        %4534 = vmatpush1.bf16.msra.mxu0 %v3980
        %4535 = vmatprep.subr.bf16.mxu0 %v3989
        %4536 = vmatpush1.bf16.msra.mxu0 %v3988
        %4537 = vmatprep.subr.bf16.mxu0 %v3997
        %4538 = vmatpush1.bf16.msra.mxu0 %v3996
        %4539 = vmatprep.subr.bf16.mxu0 %v4005
        %4540 = vmatpush1.bf16.msra.mxu0 %v4004
        %4541 = vmatprep.subr.bf16.mxu0 %v4013
        %4542 = vmatpush1.bf16.msra.mxu0 %v4012
        %4543 = vmatprep.subr.bf16.mxu0 %v4021
        %4544 = vmatpush1.bf16.msra.mxu0 %v4020
        %4545 = vmatprep.subr.bf16.mxu0 %v4029
        %4546 = vmatpush1.bf16.msra.mxu0 %v4028
        %4547 = vmatprep.subr.bf16.mxu0 %v4037
        %4548 = vmatpush1.bf16.msra.mxu0 %v4036
        %4549 = vmatprep.subr.bf16.mxu0 %v4045
        %4550 = vmatpush1.bf16.msra.mxu0 %v4044
        %4551 = vmatprep.subr.bf16.mxu0 %v4053
        %4552 = vmatpush1.bf16.msra.mxu0 %v4052
        %4553 = vmatprep.subr.bf16.mxu0 %v4061
        %4554 = vmatpush1.bf16.msra.mxu0 %v4060
        %4555 = vmatprep.subr.bf16.mxu0 %v4069
        %4556 = vmatpush1.bf16.msra.mxu0 %v4068
        %4557 = vmatprep.subr.bf16.mxu0 %v4077
        %4558 = vmatpush1.bf16.msra.mxu0 %v4076
        %4559 = vmatprep.subr.bf16.mxu0 %v4085
        %4560 = vmatpush1.bf16.msra.mxu0 %v4084
        %4561 = vmatprep.subr.bf16.mxu0 %v4093
        %4562 = vmatpush1.bf16.msra.mxu0 %v4092
        %4563 = vmatprep.subr.bf16.mxu0 %v4101
        %4564 = vmatpush1.bf16.msra.mxu0 %v4100
        %4565 = vmatprep.mubr.bf16.mxu0 %v2952
        %4566 = vmatmul.mubr.bf16.gmra.mrb[0].mxu0 %v2951
        %v4567 = vpop.f32.mrb[0].mxu0
        %v4568 = vadd.f32 %v4496, %v4567
        %v4569 = vpop.f32.mrb[0].mxu0
        %v4570 = vadd.f32 %v4500, %v4569
        %v4571 = vpop.f32.mrb[0].mxu0
        %v4572 = vpop.f32.mrb[0].mxu0
        %4573 = vdwg.mxu0
        %4574 = vmatprep.subr.bf16.mxu0 %v4109
        %4575 = vmatpush1.bf16.msra.mxu0 %v4108
        %4576 = vmatprep.subr.bf16.mxu0 %v4117
        %4577 = vmatpush1.bf16.msra.mxu0 %v4116
        %4578 = vmatprep.subr.bf16.mxu0 %v4125
        %4579 = vmatpush1.bf16.msra.mxu0 %v4124
        %4580 = vmatprep.subr.bf16.mxu0 %v4133
        %4581 = vmatpush1.bf16.msra.mxu0 %v4132
        %4582 = vmatprep.subr.bf16.mxu0 %v4141
        %4583 = vmatpush1.bf16.msra.mxu0 %v4140
        %4584 = vmatprep.subr.bf16.mxu0 %v4149
        %4585 = vmatpush1.bf16.msra.mxu0 %v4148
        %4586 = vmatprep.subr.bf16.mxu0 %v4157
        %4587 = vmatpush1.bf16.msra.mxu0 %v4156
        %4588 = vmatprep.subr.bf16.mxu0 %v4165
        %4589 = vmatpush1.bf16.msra.mxu0 %v4164
        %4590 = vmatprep.subr.bf16.mxu0 %v4173
        %4591 = vmatpush1.bf16.msra.mxu0 %v4172
        %4592 = vmatprep.subr.bf16.mxu0 %v4181
        %4593 = vmatpush1.bf16.msra.mxu0 %v4180
        %4594 = vmatprep.subr.bf16.mxu0 %v4189
        %4595 = vmatpush1.bf16.msra.mxu0 %v4188
        %4596 = vmatprep.subr.bf16.mxu0 %v4197
        %4597 = vmatpush1.bf16.msra.mxu0 %v4196
        %4598 = vmatprep.subr.bf16.mxu0 %v4205
        %4599 = vmatpush1.bf16.msra.mxu0 %v4204
        %4600 = vmatprep.subr.bf16.mxu0 %v4213
        %4601 = vmatpush1.bf16.msra.mxu0 %v4212
        %4602 = vmatprep.subr.bf16.mxu0 %v4221
        %4603 = vmatpush1.bf16.msra.mxu0 %v4220
        %4604 = vmatprep.subr.bf16.mxu0 %v4229
        %4605 = vmatpush1.bf16.msra.mxu0 %v4228
        %4606 = vmatprep.mubr.bf16.mxu0 %v2954
        %4607 = vmatmul.mubr.bf16.gmra.mrb[0].mxu0 %v2953
        %v4608 = vpop.f32.mrb[0].mxu0
        %v4609 = vadd.f32 %v4568, %v4608
        %v4610 = vpop.f32.mrb[0].mxu0
        %v4611 = vadd.f32 %v4570, %v4610
        %v4612 = vpop.f32.mrb[0].mxu0
        %v4613 = vpop.f32.mrb[0].mxu0
        %4614 = vdwg.mxu0
        %4615 = vmatprep.subr.bf16.mxu0 %v3983
        %4616 = vmatpush1.bf16.msra.mxu0 %v3982
        %4617 = vmatprep.subr.bf16.mxu0 %v3991
        %4618 = vmatpush1.bf16.msra.mxu0 %v3990
        %4619 = vmatprep.subr.bf16.mxu0 %v3999
        %4620 = vmatpush1.bf16.msra.mxu0 %v3998
        %4621 = vmatprep.subr.bf16.mxu0 %v4007
        %4622 = vmatpush1.bf16.msra.mxu0 %v4006
        %4623 = vmatprep.subr.bf16.mxu0 %v4015
        %4624 = vmatpush1.bf16.msra.mxu0 %v4014
        %4625 = vmatprep.subr.bf16.mxu0 %v4023
        %4626 = vmatpush1.bf16.msra.mxu0 %v4022
        %4627 = vmatprep.subr.bf16.mxu0 %v4031
        %4628 = vmatpush1.bf16.msra.mxu0 %v4030
        %4629 = vmatprep.subr.bf16.mxu0 %v4039
        %4630 = vmatpush1.bf16.msra.mxu0 %v4038
        %4631 = vmatprep.subr.bf16.mxu0 %v4047
        %4632 = vmatpush1.bf16.msra.mxu0 %v4046
        %4633 = vmatprep.subr.bf16.mxu0 %v4055
        %4634 = vmatpush1.bf16.msra.mxu0 %v4054
        %4635 = vmatprep.subr.bf16.mxu0 %v4063
        %4636 = vmatpush1.bf16.msra.mxu0 %v4062
        %4637 = vmatprep.subr.bf16.mxu0 %v4071
        %4638 = vmatpush1.bf16.msra.mxu0 %v4070
        %4639 = vmatprep.subr.bf16.mxu0 %v4079
        %4640 = vmatpush1.bf16.msra.mxu0 %v4078
        %4641 = vmatprep.subr.bf16.mxu0 %v4087
        %4642 = vmatpush1.bf16.msra.mxu0 %v4086
        %4643 = vmatprep.subr.bf16.mxu0 %v4095
        %4644 = vmatpush1.bf16.msra.mxu0 %v4094
        %4645 = vmatprep.subr.bf16.mxu0 %v4103
        %4646 = vmatpush1.bf16.msra.mxu0 %v4102
        %4647 = vmatprep.mubr.bf16.mxu0 %v2952
        %4648 = vmatmul.mubr.bf16.gmra.mrb[0].mxu0 %v2951
        %v4649 = vpop.f32.mrb[0].mxu0
        %v4650 = vadd.f32 %v4504, %v4649
        %v4651 = vpop.f32.mrb[0].mxu0
        %v4652 = vadd.f32 %v4508, %v4651
        %v4653 = vpop.f32.mrb[0].mxu0
        %v4654 = vpop.f32.mrb[0].mxu0
        %4655 = vdwg.mxu0
        %4656 = vmatprep.subr.bf16.mxu0 %v4111
        %4657 = vmatpush1.bf16.msra.mxu0 %v4110
        %4658 = vmatprep.subr.bf16.mxu0 %v4119
        %4659 = vmatpush1.bf16.msra.mxu0 %v4118
        %4660 = vmatprep.subr.bf16.mxu0 %v4127
        %4661 = vmatpush1.bf16.msra.mxu0 %v4126
        %4662 = vmatprep.subr.bf16.mxu0 %v4135
        %4663 = vmatpush1.bf16.msra.mxu0 %v4134
        %4664 = vmatprep.subr.bf16.mxu0 %v4143
        %4665 = vmatpush1.bf16.msra.mxu0 %v4142
        %4666 = vmatprep.subr.bf16.mxu0 %v4151
        %4667 = vmatpush1.bf16.msra.mxu0 %v4150
        %4668 = vmatprep.subr.bf16.mxu0 %v4159
        %4669 = vmatpush1.bf16.msra.mxu0 %v4158
        %4670 = vmatprep.subr.bf16.mxu0 %v4167
        %4671 = vmatpush1.bf16.msra.mxu0 %v4166
        %4672 = vmatprep.subr.bf16.mxu0 %v4175
        %4673 = vmatpush1.bf16.msra.mxu0 %v4174
        %4674 = vmatprep.subr.bf16.mxu0 %v4183
        %4675 = vmatpush1.bf16.msra.mxu0 %v4182
        %4676 = vmatprep.subr.bf16.mxu0 %v4191
        %4677 = vmatpush1.bf16.msra.mxu0 %v4190
        %4678 = vmatprep.subr.bf16.mxu0 %v4199
        %4679 = vmatpush1.bf16.msra.mxu0 %v4198
        %4680 = vmatprep.subr.bf16.mxu0 %v4207
        %4681 = vmatpush1.bf16.msra.mxu0 %v4206
        %4682 = vmatprep.subr.bf16.mxu0 %v4215
        %4683 = vmatpush1.bf16.msra.mxu0 %v4214
        %4684 = vmatprep.subr.bf16.mxu0 %v4223
        %4685 = vmatpush1.bf16.msra.mxu0 %v4222
        %4686 = vmatprep.subr.bf16.mxu0 %v4231
        %4687 = vmatpush1.bf16.msra.mxu0 %v4230
        %4688 = vmatprep.mubr.bf16.mxu0 %v2954
        %4689 = vmatmul.mubr.bf16.gmra.mrb[0].mxu0 %v2953
        %v4690 = vpop.f32.mrb[0].mxu0
        %v4691 = vadd.f32 %v4650, %v4690
        %v4692 = vpop.f32.mrb[0].mxu0
        %v4693 = vadd.f32 %v4652, %v4692
        %v4694 = vpop.f32.mrb[0].mxu0
        %v4695 = vpop.f32.mrb[0].mxu0
        %4696 = vdwg.mxu0
        %4697 = vmatprep.subr.bf16.mxu0 %v3985
        %4698 = vmatpush1.bf16.msra.mxu0 %v3984
        %4699 = vmatprep.subr.bf16.mxu0 %v3993
        %4700 = vmatpush1.bf16.msra.mxu0 %v3992
        %4701 = vmatprep.subr.bf16.mxu0 %v4001
        %4702 = vmatpush1.bf16.msra.mxu0 %v4000
        %4703 = vmatprep.subr.bf16.mxu0 %v4009
        %4704 = vmatpush1.bf16.msra.mxu0 %v4008
        %4705 = vmatprep.subr.bf16.mxu0 %v4017
        %4706 = vmatpush1.bf16.msra.mxu0 %v4016
        %4707 = vmatprep.subr.bf16.mxu0 %v4025
        %4708 = vmatpush1.bf16.msra.mxu0 %v4024
        %4709 = vmatprep.subr.bf16.mxu0 %v4033
        %4710 = vmatpush1.bf16.msra.mxu0 %v4032
        %4711 = vmatprep.subr.bf16.mxu0 %v4041
        %4712 = vmatpush1.bf16.msra.mxu0 %v4040
        %4713 = vmatprep.subr.bf16.mxu0 %v4049
        %4714 = vmatpush1.bf16.msra.mxu0 %v4048
        %4715 = vmatprep.subr.bf16.mxu0 %v4057
        %4716 = vmatpush1.bf16.msra.mxu0 %v4056
        %4717 = vmatprep.subr.bf16.mxu0 %v4065
        %4718 = vmatpush1.bf16.msra.mxu0 %v4064
        %4719 = vmatprep.subr.bf16.mxu0 %v4073
        %4720 = vmatpush1.bf16.msra.mxu0 %v4072
        %4721 = vmatprep.subr.bf16.mxu0 %v4081
        %4722 = vmatpush1.bf16.msra.mxu0 %v4080
        %4723 = vmatprep.subr.bf16.mxu0 %v4089
        %4724 = vmatpush1.bf16.msra.mxu0 %v4088
        %4725 = vmatprep.subr.bf16.mxu0 %v4097
        %4726 = vmatpush1.bf16.msra.mxu0 %v4096
        %4727 = vmatprep.subr.bf16.mxu0 %v4105
        %4728 = vmatpush1.bf16.msra.mxu0 %v4104
        %4729 = vmatprep.mubr.bf16.mxu0 %v2952
        %4730 = vmatmul.mubr.bf16.gmra.mrb[0].mxu0 %v2951
        %v4731 = vpop.f32.mrb[0].mxu0
        %v4732 = vadd.f32 %v4512, %v4731
        %v4733 = vpop.f32.mrb[0].mxu0
        %v4734 = vadd.f32 %v4516, %v4733
        %v4735 = vpop.f32.mrb[0].mxu0
        %v4736 = vpop.f32.mrb[0].mxu0
        %4737 = vdwg.mxu0
        %4738 = vmatprep.subr.bf16.mxu0 %v4113
        %4739 = vmatpush1.bf16.msra.mxu0 %v4112
        %4740 = vmatprep.subr.bf16.mxu0 %v4121
        %4741 = vmatpush1.bf16.msra.mxu0 %v4120
        %4742 = vmatprep.subr.bf16.mxu0 %v4129
        %4743 = vmatpush1.bf16.msra.mxu0 %v4128
        %4744 = vmatprep.subr.bf16.mxu0 %v4137
        %4745 = vmatpush1.bf16.msra.mxu0 %v4136
        %4746 = vmatprep.subr.bf16.mxu0 %v4145
        %4747 = vmatpush1.bf16.msra.mxu0 %v4144
        %4748 = vmatprep.subr.bf16.mxu0 %v4153
        %4749 = vmatpush1.bf16.msra.mxu0 %v4152
        %4750 = vmatprep.subr.bf16.mxu0 %v4161
        %4751 = vmatpush1.bf16.msra.mxu0 %v4160
        %4752 = vmatprep.subr.bf16.mxu0 %v4169
        %4753 = vmatpush1.bf16.msra.mxu0 %v4168
        %4754 = vmatprep.subr.bf16.mxu0 %v4177
        %4755 = vmatpush1.bf16.msra.mxu0 %v4176
        %4756 = vmatprep.subr.bf16.mxu0 %v4185
        %4757 = vmatpush1.bf16.msra.mxu0 %v4184
        %4758 = vmatprep.subr.bf16.mxu0 %v4193
        %4759 = vmatpush1.bf16.msra.mxu0 %v4192
        %4760 = vmatprep.subr.bf16.mxu0 %v4201
        %4761 = vmatpush1.bf16.msra.mxu0 %v4200
        %4762 = vmatprep.subr.bf16.mxu0 %v4209
        %4763 = vmatpush1.bf16.msra.mxu0 %v4208
        %4764 = vmatprep.subr.bf16.mxu0 %v4217
        %4765 = vmatpush1.bf16.msra.mxu0 %v4216
        %4766 = vmatprep.subr.bf16.mxu0 %v4225
        %4767 = vmatpush1.bf16.msra.mxu0 %v4224
        %4768 = vmatprep.subr.bf16.mxu0 %v4233
        %4769 = vmatpush1.bf16.msra.mxu0 %v4232
        %4770 = vmatprep.mubr.bf16.mxu0 %v2954
        %4771 = vmatmul.mubr.bf16.gmra.mrb[0].mxu0 %v2953
        %v4772 = vpop.f32.mrb[0].mxu0
        %v4773 = vadd.f32 %v4732, %v4772
        %v4774 = vpop.f32.mrb[0].mxu0
        %v4775 = vadd.f32 %v4734, %v4774
        %v4776 = vpop.f32.mrb[0].mxu0
        %v4777 = vpop.f32.mrb[0].mxu0
        %4778 = vdwg.mxu0
        %4779 = vmatprep.subr.bf16.mxu0 %v3987
        %4780 = vmatpush1.bf16.msra.mxu0 %v3986
        %4781 = vmatprep.subr.bf16.mxu0 %v3995
        %4782 = vmatpush1.bf16.msra.mxu0 %v3994
        %4783 = vmatprep.subr.bf16.mxu0 %v4003
        %4784 = vmatpush1.bf16.msra.mxu0 %v4002
        %4785 = vmatprep.subr.bf16.mxu0 %v4011
        %4786 = vmatpush1.bf16.msra.mxu0 %v4010
        %4787 = vmatprep.subr.bf16.mxu0 %v4019
        %4788 = vmatpush1.bf16.msra.mxu0 %v4018
        %4789 = vmatprep.subr.bf16.mxu0 %v4027
        %4790 = vmatpush1.bf16.msra.mxu0 %v4026
        %4791 = vmatprep.subr.bf16.mxu0 %v4035
        %4792 = vmatpush1.bf16.msra.mxu0 %v4034
        %4793 = vmatprep.subr.bf16.mxu0 %v4043
        %4794 = vmatpush1.bf16.msra.mxu0 %v4042
        %4795 = vmatprep.subr.bf16.mxu0 %v4051
        %4796 = vmatpush1.bf16.msra.mxu0 %v4050
        %4797 = vmatprep.subr.bf16.mxu0 %v4059
        %4798 = vmatpush1.bf16.msra.mxu0 %v4058
        %4799 = vmatprep.subr.bf16.mxu0 %v4067
        %4800 = vmatpush1.bf16.msra.mxu0 %v4066
        %4801 = vmatprep.subr.bf16.mxu0 %v4075
        %4802 = vmatpush1.bf16.msra.mxu0 %v4074
        %4803 = vmatprep.subr.bf16.mxu0 %v4083
        %4804 = vmatpush1.bf16.msra.mxu0 %v4082
        %4805 = vmatprep.subr.bf16.mxu0 %v4091
        %4806 = vmatpush1.bf16.msra.mxu0 %v4090
        %4807 = vmatprep.subr.bf16.mxu0 %v4099
        %4808 = vmatpush1.bf16.msra.mxu0 %v4098
        %4809 = vmatprep.subr.bf16.mxu0 %v4107
        %4810 = vmatpush1.bf16.msra.mxu0 %v4106
        %4811 = vmatprep.mubr.bf16.mxu0 %v2952
        %4812 = vmatmul.mubr.bf16.gmra.mrb[0].mxu0 %v2951
        %v4813 = vpop.f32.mrb[0].mxu0
        %v4814 = vadd.f32 %v4520, %v4813
        %v4815 = vpop.f32.mrb[0].mxu0
        %v4816 = vadd.f32 %v4524, %v4815
        %v4817 = vpop.f32.mrb[0].mxu0
        %v4818 = vpop.f32.mrb[0].mxu0
        %4819 = vdwg.mxu0
        %4820 = vmatprep.subr.bf16.mxu0 %v4115
        %4821 = vmatpush1.bf16.msra.mxu0 %v4114
        %4822 = vmatprep.subr.bf16.mxu0 %v4123
        %4823 = vmatpush1.bf16.msra.mxu0 %v4122
        %4824 = vmatprep.subr.bf16.mxu0 %v4131
        %4825 = vmatpush1.bf16.msra.mxu0 %v4130
        %4826 = vmatprep.subr.bf16.mxu0 %v4139
        %4827 = vmatpush1.bf16.msra.mxu0 %v4138
        %4828 = vmatprep.subr.bf16.mxu0 %v4147
        %4829 = vmatpush1.bf16.msra.mxu0 %v4146
        %4830 = vmatprep.subr.bf16.mxu0 %v4155
        %4831 = vmatpush1.bf16.msra.mxu0 %v4154
        %4832 = vmatprep.subr.bf16.mxu0 %v4163
        %4833 = vmatpush1.bf16.msra.mxu0 %v4162
        %4834 = vmatprep.subr.bf16.mxu0 %v4171
        %4835 = vmatpush1.bf16.msra.mxu0 %v4170
        %4836 = vmatprep.subr.bf16.mxu0 %v4179
        %4837 = vmatpush1.bf16.msra.mxu0 %v4178
        %4838 = vmatprep.subr.bf16.mxu0 %v4187
        %4839 = vmatpush1.bf16.msra.mxu0 %v4186
        %4840 = vmatprep.subr.bf16.mxu0 %v4195
        %4841 = vmatpush1.bf16.msra.mxu0 %v4194
        %4842 = vmatprep.subr.bf16.mxu0 %v4203
        %4843 = vmatpush1.bf16.msra.mxu0 %v4202
        %4844 = vmatprep.subr.bf16.mxu0 %v4211
        %4845 = vmatpush1.bf16.msra.mxu0 %v4210
        %4846 = vmatprep.subr.bf16.mxu0 %v4219
        %4847 = vmatpush1.bf16.msra.mxu0 %v4218
        %4848 = vmatprep.subr.bf16.mxu0 %v4227
        %4849 = vmatpush1.bf16.msra.mxu0 %v4226
        %4850 = vmatprep.subr.bf16.mxu0 %v4235
        %4851 = vmatpush1.bf16.msra.mxu0 %v4234
        %4852 = vmatprep.mubr.bf16.mxu0 %v2954
        %4853 = vmatmul.mubr.bf16.gmra.mrb[0].mxu0 %v2953
        %v4854 = vpop.f32.mrb[0].mxu0
        %v4855 = vadd.f32 %v4814, %v4854
        %v4856 = vpop.f32.mrb[0].mxu0
        %v4857 = vadd.f32 %v4816, %v4856
        %v4858 = vpop.f32.mrb[0].mxu0
        %v4859 = vpop.f32.mrb[0].mxu0
        %4860 = vdwg.mxu0
        %v4869 = vcombine.low %v4609, %v4611
        %v4870 = vcombine.low %v4691, %v4693
        %v4871 = vcombine.low %v4773, %v4775
        %v4872 = vcombine.low %v4855, %v4857
        %v4874 = vunpack.c.l.s4 1966171168
        %v4875 = vunpack.c.0.s8 %v4874
        %v4876 = vlaneseq
        %v4877 = vshrl.u32 %v4876, 7
        %v4878 = vsub.s32 %v4875, %v4877
        %v4879 = vrot.slane %v4869, %v4878
        %v4881 = vunpack.c.l.s4 1966171168
        %v4882 = vunpack.c.0.s8 %v4881
        %v4883 = vlaneseq
        %v4884 = vshrl.u32 %v4883, 7
        %v4885 = vsub.s32 %v4882, %v4884
        %v4886 = vrot.slane %v4870, %v4885
        %v4888 = vunpack.c.l.s4 1966171168
        %v4889 = vunpack.c.0.s8 %v4888
        %v4890 = vlaneseq
        %v4891 = vshrl.u32 %v4890, 7
        %v4892 = vsub.s32 %v4889, %v4891
        %v4893 = vrot.slane %v4871, %v4892
        %v4895 = vunpack.c.l.s4 1966171168
        %v4896 = vunpack.c.0.s8 %v4895
        %v4897 = vlaneseq
        %v4898 = vshrl.u32 %v4897, 7
        %v4899 = vsub.s32 %v4896, %v4898
        %v4900 = vrot.slane %v4872, %v4899
        %v4901 = vcombine.low %v4879, %v4886
        %v4902 = vcombine.low %v4893, %v4900
        %v4904 = vunpack.c.l.s4 1966171168
        %v4905 = vunpack.c.0.s8 %v4904
        %v4906 = vlaneseq
        %v4907 = vshrl.u32 %v4906, 7
        %v4908 = vsub.s32 %v4905, %v4907
        %v4909 = vrot.slane %v4901, %v4908
        %v4911 = vunpack.c.l.s4 1966171168
        %v4912 = vunpack.c.0.s8 %v4911
        %v4913 = vlaneseq
        %v4914 = vshrl.u32 %v4913, 7
        %v4915 = vsub.s32 %v4912, %v4914
        %v4916 = vrot.slane %v4902, %v4915
        %v4917 = vcombine.low %v4909, %v4916
        %4919 = vst [vmem:[%s357] sm:$0xff] %v4917
        %p4920 = scmp.lt.s32.totalorder %s22, 1
        %s4921 = scalar_select %p4920, %s22, 1
        %s4922 = smul.addr %s4921, 8
        %s4923 = scalar_lea.vmem %s9, %s4922
        // Predicated region
        $region65: #{_forward_impl.1} parent=55 // pred_check
          %p4924 = pneg %p234
        $region66: #{_forward_impl.1} parent=55 // pred_check_branch
          %4926 = sbr.rel (%p4924) target = $region68
        $region67: #{_forward_impl.1} parent=55 // pred_region
          _
        $region68: #{_forward_impl.1} parent=55 // pred_fallthru
          _
      $region56: #{_forward_impl.1} parent=5 // pred_fallthru
        _
      %p4927 = scmp.le.s32.totalorder 2, %s17
      // Predicated region
      $region69: #{_forward_impl.1} parent=5 // pred_check
        %p4928 = pneg %p4927
      $region70: #{_forward_impl.1} parent=5 // pred_check_branch
        %4930 = sbr.rel (%p4928) target = $region72
      $region71: #{_forward_impl.1} parent=5 // pred_region
        %s4931 = ssub.s32 %s17, 2
        // Predicated region
        $region73: #{_forward_impl.1} parent=71 // pred_check
          %p4932 = pneg %p240
        $region74: #{_forward_impl.1} parent=71 // pred_check_branch
          %4934 = sbr.rel (%p4932) target = $region76
        $region75: #{_forward_impl.1} parent=71 // pred_region
          %p4935 = scmp.lt.s32.totalorder %s23, 1
          %s4936 = scalar_select %p4935, %s23, 1
          %s4937 = smul.addr %s4936, 8
          %s4938 = scalar_lea.vmem %s9, %s4937
        $region76: #{_forward_impl.1} parent=71 // pred_fallthru
          _
      $region72: #{_forward_impl.1} parent=5 // pred_fallthru
        _
    $region6: #{_forward_impl.1} parent=1 // loop_footer
      %s21 = sadd.s32 1, %s17
    $region7: #{_forward_impl.1} parent=1 // loop_footer_branch
      %16 = sbr.rel target = $region3
    $region8: #{_forward_impl.1} parent=1 // loop_exit
      _
    %4939 = vsyncpa [#allocation3], 1
    %s4940 = scalar_lea.sflag [#allocation3], 1
    %4941 = vsyncpa %s4940, 1
    %4942 = vsyncpa [#allocation5], 1

</llo_original>
